<compile_context>
chip_gen: v7x
topology: tpu7x:2x2x1
jax: 0.10.0
libtpu: 0.0.40
codegen_flags: <defaults>
</compile_context>

<pallas_src>
import jax
import jax.numpy as jnp
import numpy as np
from jax.experimental import pallas as pl
from jax.experimental.pallas import tpu as pltpu


# ----------------------------- slab layouts ---------------------------------

def _misc_offsets(IN, H, S):
    """Row offsets inside the misc slab (width = max(H, S))."""
    m_rw1 = 0                 # (IN, H)  retrieval layer-1 weight
    m_rw2 = m_rw1 + IN        # (H, S)   retrieval layer-2 weight
    m_mem = m_rw2 + H         # (S, H)   episodic memory
    m_gw = m_mem + S          # (2H, H)  update gate weight [gwr; gwe]
    m_rb1 = m_gw + 2 * H      # (1, H)
    m_rb2 = m_rb1 + 1         # (1, S)
    m_gb = m_rb2 + 1          # (1, H)
    rows = m_gb + 1
    return m_rw1, m_rw2, m_mem, m_gw, m_rb1, m_rb2, m_gb, rows


def _lstm_offsets(De, H):
    """Row offsets inside the LSTM slab (width = 4H)."""
    o_wih0 = 0                # (De, 4H)
    o_whh0 = o_wih0 + De      # (H, 4H)
    o_b0 = o_whh0 + H         # (1, 4H)  b_ih0 + b_hh0
    o_w1 = o_b0 + 1           # (2H, 4H) [wih1; whh1]
    o_b1 = o_w1 + 2 * H       # (1, 4H)  b_ih1 + b_hh1
    rows = o_b1 + 1
    return o_wih0, o_whh0, o_b0, o_w1, o_b1, rows


def pack_params(params):
    """Pack the 14 parameter tensors into two contiguous DMA slabs."""
    S, H = params["memory"].shape
    IN = params["rw1"].shape[0]
    De = params["wih0"].shape[0]

    lstm_slab = jnp.concatenate(
        [params["wih0"], params["whh0"], params["b0"],
         params["wih1"], params["whh1"], params["b1"]], axis=0)      # (De+3H+2, 4H)

    Wm = max(H, S)

    def padw(a):
        return jnp.pad(a, ((0, 0), (0, Wm - a.shape[1])))

    misc_slab = jnp.concatenate(
        [padw(params["rw1"]), padw(params["rw2"]), padw(params["memory"]),
         padw(params["gwr"]), padw(params["gwe"]),
         padw(params["rb1"]), padw(params["rb2"]), padw(params["gb"])],
        axis=0)                                                       # (rows, Wm)

    return {"lstm": lstm_slab, "misc": misc_slab,
            "H": H, "S": S, "IN": IN, "De": De}


# ------------------------------- kernel math ---------------------------------

def _sigmoid_t(x):
    # tanh-form sigmoid: one EUP op + cheap VPU ops, no f32 divide.
    return 0.5 * (jnp.tanh(0.5 * x) + 1.0)


def _retrieval_math(q, rw1, rb1, rw2, rb2, mem):
    """retrieval_network (Linear->ReLU->Linear->Softmax) + memory readout."""
    f32 = jnp.float32
    h = jnp.maximum(jnp.dot(q, rw1, preferred_element_type=f32) + rb1, 0.0)
    logits = jnp.dot(h, rw2, preferred_element_type=f32) + rb2
    m = jnp.max(logits, axis=-1, keepdims=True)
    p = jnp.exp(logits - m)
    w = p / jnp.sum(p, axis=-1, keepdims=True)                      # exact softmax
    retrieved = jnp.dot(w, mem, preferred_element_type=f32)         # (B, H)
    return w, retrieved


def _build_retrieval_kernel(B, H, S, IN, OUT_W):
    m_rw1, m_rw2, m_mem, _, m_rb1, m_rb2, _, _ = _misc_offsets(IN, H, S)

    def kernel(q_ref, misc_ref, out_ref):
        f32 = jnp.float32
        rw1 = misc_ref[m_rw1:m_rw1 + IN, :H]
        rw2 = misc_ref[m_rw2:m_rw2 + H, :S]
        mem = misc_ref[m_mem:m_mem + S, :H]
        rb1 = misc_ref[m_rb1:m_rb1 + 1, :H]
        rb2 = misc_ref[m_rb2:m_rb2 + 1, :S]

        w, retrieved = _retrieval_math(q_ref[...], rw1, rb1, rw2, rb2, mem)

        parts = [retrieved.astype(f32), w.astype(f32)]
        if OUT_W > H + S:
            parts.append(jnp.zeros((B, OUT_W - H - S), f32))
        out_ref[...] = jnp.concatenate(parts, axis=-1)

    return kernel


def _build_full_kernel(B, T, De, H, S, IN, OUT_W):
    G = 4 * H
    m_rw1, m_rw2, m_mem, m_gw, m_rb1, m_rb2, m_gb, _ = _misc_offsets(IN, H, S)
    o_wih0, o_whh0, o_b0, o_w1, o_b1, _ = _lstm_offsets(De, H)

    def kernel(q_ref, eps_ref, lstm_ref, misc_ref, out_ref):
        f32 = jnp.float32

        # ---------------- retrieval path ----------------
        rw1 = misc_ref[m_rw1:m_rw1 + IN, :H]
        rw2 = misc_ref[m_rw2:m_rw2 + H, :S]
        mem = misc_ref[m_mem:m_mem + S, :H]
        rb1 = misc_ref[m_rb1:m_rb1 + 1, :H]
        rb2 = misc_ref[m_rb2:m_rb2 + 1, :S]
        w, retrieved = _retrieval_math(q_ref[...], rw1, rb1, rw2, rb2, mem)

        # ---------------- 2-layer LSTM over the experience sequence ----------
        wih0 = lstm_ref[o_wih0:o_wih0 + De, :]       # (De, 4H)
        whh0 = lstm_ref[o_whh0:o_whh0 + H, :]        # (H, 4H)
        b0 = lstm_ref[o_b0:o_b0 + 1, :]              # (1, 4H)
        w1 = lstm_ref[o_w1:o_w1 + 2 * H, :]          # (2H, 4H) = [wih1; whh1]
        b1 = lstm_ref[o_b1:o_b1 + 1, :]              # (1, 4H)

        # Hoisted layer-0 input projection (bias folded in): one big dot with
        # 8x better sublane utilization than T tiny per-step dots.
        eps = eps_ref[...]                                            # (B, T, De)
        xp = jnp.dot(eps.reshape(B * T, De), wih0,
                     preferred_element_type=f32) + b0                 # (B*T, 4H)
        xp = xp.reshape(B, T, G)

        # Hoisted bias broadcast for layer 1 (outside the unrolled loop).
        b1b = jnp.broadcast_to(b1, (B, G))

        def act(g):
            # Whole-vreg passes, sliced afterwards (slice work is free-slot).
            sg = _sigmoid_t(g)                                        # sigmoid(all gates)
            tg = jnp.tanh(g)                                          # tanh(all gates)
            return (sg[:, 0:H], sg[:, H:2 * H],
                    tg[:, 2 * H:3 * H], sg[:, 3 * H:4 * H])           # i, f, g, o

        h1 = c1 = h2 = c2 = jnp.zeros((B, H), f32)
        for t in range(T):                                            # static unroll
            # layer 0: precomputed input projection + recurrent dot
            g0 = xp[:, t, :] + jnp.dot(h1, whh0, preferred_element_type=f32)
            i0, f0, gg0, o0 = act(g0)
            c1 = f0 * c1 + i0 * gg0
            h1 = o0 * jnp.tanh(c1)
            # TODO(synk): nn.LSTM inter-layer dropout(0.1) is identity in eval mode; omitted.
            # layer 1: fused [h1_new | h2_prev] @ [wih1; whh1]
            x1 = jnp.concatenate([h1, h2], axis=-1)                   # (B, 2H)
            g1 = jnp.dot(x1, w1, preferred_element_type=f32) + b1b
            i1, f1, gg1, o1 = act(g1)
            c2 = f1 * c2 + i1 * gg1
            h2 = o1 * jnp.tanh(c2)
        latest = h2                                                    # (B, H)

        # ---------------- memory update gate ----------------
        gw = misc_ref[m_gw:m_gw + 2 * H, :H]                          # (2H, H)
        gb = misc_ref[m_gb:m_gb + 1, :H]                              # (1, H)
        cat = jnp.concatenate([retrieved, latest], axis=-1)           # (B, 2H)
        gate = _sigmoid_t(jnp.dot(cat, gw, preferred_element_type=f32) + gb)
        updated = gate * latest + (1.0 - gate) * retrieved

        # ---------------- packed lane-dense output ----------------
        parts = [updated.astype(f32), w.astype(f32)]
        if OUT_W > H + S:
            parts.append(jnp.zeros((B, OUT_W - H - S), f32))
        out_ref[...] = jnp.concatenate(parts, axis=-1)

    return kernel


# ------------------------------- wrapper -------------------------------------

def _vmem_spec():
    return pl.BlockSpec(memory_space=pltpu.MemorySpace.VMEM)


def memory_augmented_forward(query, packed, experience_sequence=None):
    """Matches AdvancedMemoryAugmentedNetwork.forward (eval mode)."""
    B = query.shape[0]
    H, S, IN, De = packed["H"], packed["S"], packed["IN"], packed["De"]
    OUT_W = 128 * pl.cdiv(H + S, 128)  # lane-dense packed output width

    if experience_sequence is None:
        out = pl.pallas_call(
            _build_retrieval_kernel(B, H, S, IN, OUT_W),
            out_shape=jax.ShapeDtypeStruct((B, OUT_W), jnp.float32),
            in_specs=[_vmem_spec(), _vmem_spec()],
            out_specs=_vmem_spec(),
        )(query, packed["misc"])
    else:
        T = experience_sequence.shape[1]
        out = pl.pallas_call(
            _build_full_kernel(B, T, De, H, S, IN, OUT_W),
            out_shape=jax.ShapeDtypeStruct((B, OUT_W), jnp.float32),
            in_specs=[_vmem_spec()] * 4,
            out_specs=_vmem_spec(),
        )(query, experience_sequence, packed["lstm"], packed["misc"])

    return out[:, :H], out[:, H:H + S]


# ----------------------------- pure-JAX reference ----------------------------

def reference_forward(query, params, experience_sequence=None):
    """Pure-JAX reference matching the PyTorch forward semantics (eval mode)."""
    H = params["memory"].shape[1]
    h = jax.nn.relu(query @ params["rw1"] + params["rb1"])
    w = jax.nn.softmax(h @ params["rw2"] + params["rb2"], axis=-1)
    retrieved = w @ params["memory"]
    if experience_sequence is None:
        return retrieved, w

    B, T, _ = experience_sequence.shape

    def cell(x, h_, c_, wih, whh, b):
        g = x @ wih + h_ @ whh + b
        i = jax.nn.sigmoid(g[:, :H])
        f = jax.nn.sigmoid(g[:, H:2 * H])
        gg = jnp.tanh(g[:, 2 * H:3 * H])
        o = jax.nn.sigmoid(g[:, 3 * H:])
        c_ = f * c_ + i * gg
        h_ = o * jnp.tanh(c_)
        return h_, c_

    h1 = c1 = h2 = c2 = jnp.zeros((B, H), jnp.float32)
    for t in range(T):
        x_t = experience_sequence[:, t]
        h1, c1 = cell(x_t, h1, c1, params["wih0"], params["whh0"], params["b0"])
        h2, c2 = cell(h1, h2, c2, params["wih1"], params["whh1"], params["b1"])
    latest = h2

    gate = jax.nn.sigmoid(retrieved @ params["gwr"] + latest @ params["gwe"]
                          + params["gb"])
    updated = gate * latest + (1.0 - gate) * retrieved
    return updated, w


def init_params(key, input_dim, memory_dim, memory_slots, experience_dim):
    ks = jax.random.split(key, 14)
    s = 0.1
    H = memory_dim
    return {
        "memory": jax.random.normal(ks[0], (memory_slots, H), jnp.float32),
        # retrieval_network
        "rw1": s * jax.random.normal(ks[1], (input_dim, H), jnp.float32),
        "rb1": s * jax.random.normal(ks[2], (1, H), jnp.float32),
        "rw2": s * jax.random.normal(ks[3], (H, memory_slots), jnp.float32),
        "rb2": s * jax.random.normal(ks[4], (1, memory_slots), jnp.float32),
        # experience_encoder (2-layer LSTM), gate order i|f|g|o, b = b_ih + b_hh
        "wih0": s * jax.random.normal(ks[5], (experience_dim, 4 * H), jnp.float32),
        "whh0": s * jax.random.normal(ks[6], (H, 4 * H), jnp.float32),
        "b0": s * jax.random.normal(ks[7], (1, 4 * H), jnp.float32),
        "wih1": s * jax.random.normal(ks[8], (H, 4 * H), jnp.float32),
        "whh1": s * jax.random.normal(ks[9], (H, 4 * H), jnp.float32),
        "b1": s * jax.random.normal(ks[10], (1, 4 * H), jnp.float32),
        # memory_update_gate: Linear(2H -> H), split column-wise [retrieved | latest]
        "gwr": s * jax.random.normal(ks[11], (H, H), jnp.float32),
        "gwe": s * jax.random.normal(ks[12], (H, H), jnp.float32),
        "gb": s * jax.random.normal(ks[13], (1, H), jnp.float32),
    }


if __name__ == "__main__":
    # config (small, consistent with the module)
    B = 8
    input_dim = 32
    memory_dim = 32
    memory_slots = 16
    experience_dim = 16
    seq_len = 8
    # memory_heads = 4  # memory_attention is never used in forward()

    key = jax.random.PRNGKey(0)
    kq, ke, kp = jax.random.split(key, 3)
    query = jax.random.normal(kq, (B, input_dim), jnp.float32)
    exp_seq = jax.random.normal(ke, (B, seq_len, experience_dim), jnp.float32)
    params = init_params(kp, input_dim, memory_dim, memory_slots, experience_dim)
    packed = pack_params(params)
    jax.block_until_ready((packed["lstm"], packed["misc"]))

    # path 1: with experience sequence
    upd, rw = memory_augmented_forward(query, packed, exp_seq)
    jax.block_until_ready((upd, rw))
    ref_upd, ref_rw = reference_forward(query, params, exp_seq)
    assert np.allclose(np.asarray(upd), np.asarray(ref_upd), rtol=2e-3, atol=2e-3)
    assert np.allclose(np.asarray(rw), np.asarray(ref_rw), rtol=2e-3, atol=2e-3)

    # path 2: query only
    ret, rw2 = memory_augmented_forward(query, packed, None)
    jax.block_until_ready((ret, rw2))
    ref_ret, ref_rw2 = reference_forward(query, params, None)
    assert np.allclose(np.asarray(ret), np.asarray(ref_ret), rtol=2e-3, atol=2e-3)
    assert np.allclose(np.asarray(rw2), np.asarray(ref_rw2), rtol=2e-3, atol=2e-3)

    print("KERNEL_OK")
</pallas_src>

<mosaic_0001>
module attributes {stable_mosaic.version = 11 : i64} {
  func.func @kernel(%arg0: memref<8x32xf32, #tpu.memory_space<vmem>>, %arg1: memref<8x8x16xf32, #tpu.memory_space<vmem>>, %arg2: memref<114x128xf32, #tpu.memory_space<vmem>>, %arg3: memref<147x32xf32, #tpu.memory_space<vmem>>, %arg4: memref<8x128xf32, #tpu.memory_space<vmem>>) attributes {dimension_semantics = [], scalar_prefetch = 0 : i64, scratch_operands = 0 : i64, tpu.core_type = #tpu.core_type<tc>} {
    %c0 = arith.constant 0 : index
    %c0_0 = arith.constant 0 : index
    %0 = vector.load %arg3[%c0, %c0_0] : memref<147x32xf32, #tpu.memory_space<vmem>>, vector<32x32xf32>
    %c32 = arith.constant 32 : index
    %c0_1 = arith.constant 0 : index
    %1 = vector.load %arg3[%c32, %c0_1] : memref<147x32xf32, #tpu.memory_space<vmem>>, vector<32x16xf32>
    %c64 = arith.constant 64 : index
    %c0_2 = arith.constant 0 : index
    %2 = vector.load %arg3[%c64, %c0_2] : memref<147x32xf32, #tpu.memory_space<vmem>>, vector<16x32xf32>
    %c144 = arith.constant 144 : index
    %c0_3 = arith.constant 0 : index
    %3 = vector.load %arg3[%c144, %c0_3] : memref<147x32xf32, #tpu.memory_space<vmem>>, vector<1x32xf32>
    %c145 = arith.constant 145 : index
    %c0_4 = arith.constant 0 : index
    %4 = vector.load %arg3[%c145, %c0_4] : memref<147x32xf32, #tpu.memory_space<vmem>>, vector<1x16xf32>
    %c0_5 = arith.constant 0 : index
    %c0_6 = arith.constant 0 : index
    %5 = vector.load %arg0[%c0_5, %c0_6] : memref<8x32xf32, #tpu.memory_space<vmem>>, vector<8x32xf32>
    %cst = arith.constant dense<0.000000e+00> : vector<8x32xf32>
    %6 = tpu.matmul %5, %0, %cst {dimension_numbers = #tpu.dot_dimension_numbers<[1], [0], [0], [1], [0, 0, 1, 1], [], []>} : vector<8x32xf32>, vector<32x32xf32>, vector<8x32xf32> -> vector<8x32xf32>
    %7 = vector.broadcast %3 : vector<1x32xf32> to vector<8x32xf32>
    %8 = arith.addf %6, %7 : vector<8x32xf32>
    %cst_7 = arith.constant 0.000000e+00 : f32
    %9 = vector.broadcast %cst_7 : f32 to vector<8x32xf32>
    %10 = arith.maximumf %8, %9 : vector<8x32xf32>
    %cst_8 = arith.constant dense<0.000000e+00> : vector<8x16xf32>
    %11 = tpu.matmul %10, %1, %cst_8 {dimension_numbers = #tpu.dot_dimension_numbers<[1], [0], [0], [1], [0, 0, 1, 1], [], []>} : vector<8x32xf32>, vector<32x16xf32>, vector<8x16xf32> -> vector<8x16xf32>
    %12 = vector.broadcast %4 : vector<1x16xf32> to vector<8x16xf32>
    %13 = arith.addf %11, %12 : vector<8x16xf32>
    %cst_9 = arith.constant dense<0xFF800000> : vector<8xf32>
    %14 = vector.multi_reduction <maximumf>, %13, %cst_9 [1] : vector<8x16xf32> to vector<8xf32>
    %15 = vector.shape_cast %14 : vector<8xf32> to vector<8x1xf32>
    %16 = vector.broadcast %15 : vector<8x1xf32> to vector<8x16xf32>
    %17 = arith.subf %13, %16 : vector<8x16xf32>
    %18 = math.exp %17 : vector<8x16xf32>
    %cst_10 = arith.constant dense<0.000000e+00> : vector<8xf32>
    %19 = vector.multi_reduction <add>, %18, %cst_10 [1] : vector<8x16xf32> to vector<8xf32>
    %20 = vector.shape_cast %19 : vector<8xf32> to vector<8x1xf32>
    %21 = vector.broadcast %20 : vector<8x1xf32> to vector<8x16xf32>
    %22 = arith.divf %18, %21 : vector<8x16xf32>
    %cst_11 = arith.constant dense<0.000000e+00> : vector<8x32xf32>
    %23 = tpu.matmul %22, %2, %cst_11 {dimension_numbers = #tpu.dot_dimension_numbers<[1], [0], [0], [1], [0, 0, 1, 1], [], []>} : vector<8x16xf32>, vector<16x32xf32>, vector<8x32xf32> -> vector<8x32xf32>
    %c0_12 = arith.constant 0 : index
    %c0_13 = arith.constant 0 : index
    %24 = vector.load %arg2[%c0_12, %c0_13] : memref<114x128xf32, #tpu.memory_space<vmem>>, vector<16x128xf32>
    %c16 = arith.constant 16 : index
    %c0_14 = arith.constant 0 : index
    %25 = vector.load %arg2[%c16, %c0_14] : memref<114x128xf32, #tpu.memory_space<vmem>>, vector<32x128xf32>
    %c48 = arith.constant 48 : index
    %c0_15 = arith.constant 0 : index
    %26 = vector.load %arg2[%c48, %c0_15] : memref<114x128xf32, #tpu.memory_space<vmem>>, vector<1x128xf32>
    %c49 = arith.constant 49 : index
    %c0_16 = arith.constant 0 : index
    %27 = vector.load %arg2[%c49, %c0_16] : memref<114x128xf32, #tpu.memory_space<vmem>>, vector<64x128xf32>
    %c113 = arith.constant 113 : index
    %c0_17 = arith.constant 0 : index
    %28 = vector.load %arg2[%c113, %c0_17] : memref<114x128xf32, #tpu.memory_space<vmem>>, vector<1x128xf32>
    %c0_18 = arith.constant 0 : index
    %c0_19 = arith.constant 0 : index
    %c0_20 = arith.constant 0 : index
    %29 = vector.load %arg1[%c0_18, %c0_19, %c0_20] : memref<8x8x16xf32, #tpu.memory_space<vmem>>, vector<8x8x16xf32>
    %30 = vector.shape_cast %29 : vector<8x8x16xf32> to vector<64x16xf32>
    %cst_21 = arith.constant dense<0.000000e+00> : vector<64x128xf32>
    %31 = tpu.matmul %30, %24, %cst_21 {dimension_numbers = #tpu.dot_dimension_numbers<[1], [0], [0], [1], [0, 0, 1, 1], [], []>} : vector<64x16xf32>, vector<16x128xf32>, vector<64x128xf32> -> vector<64x128xf32>
    %32 = vector.broadcast %26 : vector<1x128xf32> to vector<64x128xf32>
    %33 = arith.addf %31, %32 : vector<64x128xf32>
    %34 = vector.shape_cast %33 : vector<64x128xf32> to vector<8x8x128xf32>
    %35 = vector.shape_cast %28 : vector<1x128xf32> to vector<1x128xf32>
    %36 = vector.broadcast %35 : vector<1x128xf32> to vector<8x128xf32>
    %cst_22 = arith.constant 0.000000e+00 : f32
    %37 = vector.broadcast %cst_22 : f32 to vector<8x32xf32>
    %38 = vector.extract_strided_slice %34 {offsets = [0, 0, 0], sizes = [8, 1, 128], strides = [1, 1, 1]} : vector<8x8x128xf32> to vector<8x1x128xf32>
    %39 = vector.shape_cast %38 : vector<8x1x128xf32> to vector<8x128xf32>
    %cst_23 = arith.constant dense<0.000000e+00> : vector<8x128xf32>
    %40 = tpu.matmul %37, %25, %cst_23 {dimension_numbers = #tpu.dot_dimension_numbers<[1], [0], [0], [1], [0, 0, 1, 1], [], []>} : vector<8x32xf32>, vector<32x128xf32>, vector<8x128xf32> -> vector<8x128xf32>
    %41 = arith.addf %39, %40 : vector<8x128xf32>
    %cst_24 = arith.constant 5.000000e-01 : f32
    %42 = vector.broadcast %cst_24 : f32 to vector<8x128xf32>
    %43 = arith.mulf %42, %41 : vector<8x128xf32>
    %44 = math.tanh %43 : vector<8x128xf32>
    %cst_25 = arith.constant 1.000000e+00 : f32
    %45 = vector.broadcast %cst_25 : f32 to vector<8x128xf32>
    %46 = arith.addf %44, %45 : vector<8x128xf32>
    %cst_26 = arith.constant 5.000000e-01 : f32
    %47 = vector.broadcast %cst_26 : f32 to vector<8x128xf32>
    %48 = arith.mulf %47, %46 : vector<8x128xf32>
    %49 = math.tanh %41 : vector<8x128xf32>
    %50 = vector.extract_strided_slice %48 {offsets = [0, 0], sizes = [8, 32], strides = [1, 1]} : vector<8x128xf32> to vector<8x32xf32>
    %51 = vector.extract_strided_slice %48 {offsets = [0, 32], sizes = [8, 32], strides = [1, 1]} : vector<8x128xf32> to vector<8x32xf32>
    %52 = vector.extract_strided_slice %49 {offsets = [0, 64], sizes = [8, 32], strides = [1, 1]} : vector<8x128xf32> to vector<8x32xf32>
    %53 = vector.extract_strided_slice %48 {offsets = [0, 96], sizes = [8, 32], strides = [1, 1]} : vector<8x128xf32> to vector<8x32xf32>
    %54 = arith.mulf %51, %37 : vector<8x32xf32>
    %55 = arith.mulf %50, %52 : vector<8x32xf32>
    %56 = arith.addf %54, %55 : vector<8x32xf32>
    %57 = math.tanh %56 : vector<8x32xf32>
    %58 = arith.mulf %53, %57 : vector<8x32xf32>
    %59 = tpu.concatenate %58, %37 in 1 : vector<8x32xf32>, vector<8x32xf32> -> vector<8x64xf32>
    %cst_27 = arith.constant dense<0.000000e+00> : vector<8x128xf32>
    %60 = tpu.matmul %59, %27, %cst_27 {dimension_numbers = #tpu.dot_dimension_numbers<[1], [0], [0], [1], [0, 0, 1, 1], [], []>} : vector<8x64xf32>, vector<64x128xf32>, vector<8x128xf32> -> vector<8x128xf32>
    %61 = arith.addf %60, %36 : vector<8x128xf32>
    %cst_28 = arith.constant 5.000000e-01 : f32
    %62 = vector.broadcast %cst_28 : f32 to vector<8x128xf32>
    %63 = arith.mulf %62, %61 : vector<8x128xf32>
    %64 = math.tanh %63 : vector<8x128xf32>
    %cst_29 = arith.constant 1.000000e+00 : f32
    %65 = vector.broadcast %cst_29 : f32 to vector<8x128xf32>
    %66 = arith.addf %64, %65 : vector<8x128xf32>
    %cst_30 = arith.constant 5.000000e-01 : f32
    %67 = vector.broadcast %cst_30 : f32 to vector<8x128xf32>
    %68 = arith.mulf %67, %66 : vector<8x128xf32>
    %69 = math.tanh %61 : vector<8x128xf32>
    %70 = vector.extract_strided_slice %68 {offsets = [0, 0], sizes = [8, 32], strides = [1, 1]} : vector<8x128xf32> to vector<8x32xf32>
    %71 = vector.extract_strided_slice %68 {offsets = [0, 32], sizes = [8, 32], strides = [1, 1]} : vector<8x128xf32> to vector<8x32xf32>
    %72 = vector.extract_strided_slice %69 {offsets = [0, 64], sizes = [8, 32], strides = [1, 1]} : vector<8x128xf32> to vector<8x32xf32>
    %73 = vector.extract_strided_slice %68 {offsets = [0, 96], sizes = [8, 32], strides = [1, 1]} : vector<8x128xf32> to vector<8x32xf32>
    %74 = arith.mulf %71, %37 : vector<8x32xf32>
    %75 = arith.mulf %70, %72 : vector<8x32xf32>
    %76 = arith.addf %74, %75 : vector<8x32xf32>
    %77 = math.tanh %76 : vector<8x32xf32>
    %78 = arith.mulf %73, %77 : vector<8x32xf32>
    %79 = vector.extract_strided_slice %34 {offsets = [0, 1, 0], sizes = [8, 1, 128], strides = [1, 1, 1]} : vector<8x8x128xf32> to vector<8x1x128xf32>
    %80 = vector.shape_cast %79 : vector<8x1x128xf32> to vector<8x128xf32>
    %cst_31 = arith.constant dense<0.000000e+00> : vector<8x128xf32>
    %81 = tpu.matmul %58, %25, %cst_31 {dimension_numbers = #tpu.dot_dimension_numbers<[1], [0], [0], [1], [0, 0, 1, 1], [], []>} : vector<8x32xf32>, vector<32x128xf32>, vector<8x128xf32> -> vector<8x128xf32>
    %82 = arith.addf %80, %81 : vector<8x128xf32>
    %cst_32 = arith.constant 5.000000e-01 : f32
    %83 = vector.broadcast %cst_32 : f32 to vector<8x128xf32>
    %84 = arith.mulf %83, %82 : vector<8x128xf32>
    %85 = math.tanh %84 : vector<8x128xf32>
    %cst_33 = arith.constant 1.000000e+00 : f32
    %86 = vector.broadcast %cst_33 : f32 to vector<8x128xf32>
    %87 = arith.addf %85, %86 : vector<8x128xf32>
    %cst_34 = arith.constant 5.000000e-01 : f32
    %88 = vector.broadcast %cst_34 : f32 to vector<8x128xf32>
    %89 = arith.mulf %88, %87 : vector<8x128xf32>
    %90 = math.tanh %82 : vector<8x128xf32>
    %91 = vector.extract_strided_slice %89 {offsets = [0, 0], sizes = [8, 32], strides = [1, 1]} : vector<8x128xf32> to vector<8x32xf32>
    %92 = vector.extract_strided_slice %89 {offsets = [0, 32], sizes = [8, 32], strides = [1, 1]} : vector<8x128xf32> to vector<8x32xf32>
    %93 = vector.extract_strided_slice %90 {offsets = [0, 64], sizes = [8, 32], strides = [1, 1]} : vector<8x128xf32> to vector<8x32xf32>
    %94 = vector.extract_strided_slice %89 {offsets = [0, 96], sizes = [8, 32], strides = [1, 1]} : vector<8x128xf32> to vector<8x32xf32>
    %95 = arith.mulf %92, %56 : vector<8x32xf32>
    %96 = arith.mulf %91, %93 : vector<8x32xf32>
    %97 = arith.addf %95, %96 : vector<8x32xf32>
    %98 = math.tanh %97 : vector<8x32xf32>
    %99 = arith.mulf %94, %98 : vector<8x32xf32>
    %100 = tpu.concatenate %99, %78 in 1 : vector<8x32xf32>, vector<8x32xf32> -> vector<8x64xf32>
    %cst_35 = arith.constant dense<0.000000e+00> : vector<8x128xf32>
    %101 = tpu.matmul %100, %27, %cst_35 {dimension_numbers = #tpu.dot_dimension_numbers<[1], [0], [0], [1], [0, 0, 1, 1], [], []>} : vector<8x64xf32>, vector<64x128xf32>, vector<8x128xf32> -> vector<8x128xf32>
    %102 = arith.addf %101, %36 : vector<8x128xf32>
    %cst_36 = arith.constant 5.000000e-01 : f32
    %103 = vector.broadcast %cst_36 : f32 to vector<8x128xf32>
    %104 = arith.mulf %103, %102 : vector<8x128xf32>
    %105 = math.tanh %104 : vector<8x128xf32>
    %cst_37 = arith.constant 1.000000e+00 : f32
    %106 = vector.broadcast %cst_37 : f32 to vector<8x128xf32>
    %107 = arith.addf %105, %106 : vector<8x128xf32>
    %cst_38 = arith.constant 5.000000e-01 : f32
    %108 = vector.broadcast %cst_38 : f32 to vector<8x128xf32>
    %109 = arith.mulf %108, %107 : vector<8x128xf32>
    %110 = math.tanh %102 : vector<8x128xf32>
    %111 = vector.extract_strided_slice %109 {offsets = [0, 0], sizes = [8, 32], strides = [1, 1]} : vector<8x128xf32> to vector<8x32xf32>
    %112 = vector.extract_strided_slice %109 {offsets = [0, 32], sizes = [8, 32], strides = [1, 1]} : vector<8x128xf32> to vector<8x32xf32>
    %113 = vector.extract_strided_slice %110 {offsets = [0, 64], sizes = [8, 32], strides = [1, 1]} : vector<8x128xf32> to vector<8x32xf32>
    %114 = vector.extract_strided_slice %109 {offsets = [0, 96], sizes = [8, 32], strides = [1, 1]} : vector<8x128xf32> to vector<8x32xf32>
    %115 = arith.mulf %112, %76 : vector<8x32xf32>
    %116 = arith.mulf %111, %113 : vector<8x32xf32>
    %117 = arith.addf %115, %116 : vector<8x32xf32>
    %118 = math.tanh %117 : vector<8x32xf32>
    %119 = arith.mulf %114, %118 : vector<8x32xf32>
    %120 = vector.extract_strided_slice %34 {offsets = [0, 2, 0], sizes = [8, 1, 128], strides = [1, 1, 1]} : vector<8x8x128xf32> to vector<8x1x128xf32>
    %121 = vector.shape_cast %120 : vector<8x1x128xf32> to vector<8x128xf32>
    %cst_39 = arith.constant dense<0.000000e+00> : vector<8x128xf32>
    %122 = tpu.matmul %99, %25, %cst_39 {dimension_numbers = #tpu.dot_dimension_numbers<[1], [0], [0], [1], [0, 0, 1, 1], [], []>} : vector<8x32xf32>, vector<32x128xf32>, vector<8x128xf32> -> vector<8x128xf32>
    %123 = arith.addf %121, %122 : vector<8x128xf32>
    %cst_40 = arith.constant 5.000000e-01 : f32
    %124 = vector.broadcast %cst_40 : f32 to vector<8x128xf32>
    %125 = arith.mulf %124, %123 : vector<8x128xf32>
    %126 = math.tanh %125 : vector<8x128xf32>
    %cst_41 = arith.constant 1.000000e+00 : f32
    %127 = vector.broadcast %cst_41 : f32 to vector<8x128xf32>
    %128 = arith.addf %126, %127 : vector<8x128xf32>
    %cst_42 = arith.constant 5.000000e-01 : f32
    %129 = vector.broadcast %cst_42 : f32 to vector<8x128xf32>
    %130 = arith.mulf %129, %128 : vector<8x128xf32>
    %131 = math.tanh %123 : vector<8x128xf32>
    %132 = vector.extract_strided_slice %130 {offsets = [0, 0], sizes = [8, 32], strides = [1, 1]} : vector<8x128xf32> to vector<8x32xf32>
    %133 = vector.extract_strided_slice %130 {offsets = [0, 32], sizes = [8, 32], strides = [1, 1]} : vector<8x128xf32> to vector<8x32xf32>
    %134 = vector.extract_strided_slice %131 {offsets = [0, 64], sizes = [8, 32], strides = [1, 1]} : vector<8x128xf32> to vector<8x32xf32>
    %135 = vector.extract_strided_slice %130 {offsets = [0, 96], sizes = [8, 32], strides = [1, 1]} : vector<8x128xf32> to vector<8x32xf32>
    %136 = arith.mulf %133, %97 : vector<8x32xf32>
    %137 = arith.mulf %132, %134 : vector<8x32xf32>
    %138 = arith.addf %136, %137 : vector<8x32xf32>
    %139 = math.tanh %138 : vector<8x32xf32>
    %140 = arith.mulf %135, %139 : vector<8x32xf32>
    %141 = tpu.concatenate %140, %119 in 1 : vector<8x32xf32>, vector<8x32xf32> -> vector<8x64xf32>
    %cst_43 = arith.constant dense<0.000000e+00> : vector<8x128xf32>
    %142 = tpu.matmul %141, %27, %cst_43 {dimension_numbers = #tpu.dot_dimension_numbers<[1], [0], [0], [1], [0, 0, 1, 1], [], []>} : vector<8x64xf32>, vector<64x128xf32>, vector<8x128xf32> -> vector<8x128xf32>
    %143 = arith.addf %142, %36 : vector<8x128xf32>
    %cst_44 = arith.constant 5.000000e-01 : f32
    %144 = vector.broadcast %cst_44 : f32 to vector<8x128xf32>
    %145 = arith.mulf %144, %143 : vector<8x128xf32>
    %146 = math.tanh %145 : vector<8x128xf32>
    %cst_45 = arith.constant 1.000000e+00 : f32
    %147 = vector.broadcast %cst_45 : f32 to vector<8x128xf32>
    %148 = arith.addf %146, %147 : vector<8x128xf32>
    %cst_46 = arith.constant 5.000000e-01 : f32
    %149 = vector.broadcast %cst_46 : f32 to vector<8x128xf32>
    %150 = arith.mulf %149, %148 : vector<8x128xf32>
    %151 = math.tanh %143 : vector<8x128xf32>
    %152 = vector.extract_strided_slice %150 {offsets = [0, 0], sizes = [8, 32], strides = [1, 1]} : vector<8x128xf32> to vector<8x32xf32>
    %153 = vector.extract_strided_slice %150 {offsets = [0, 32], sizes = [8, 32], strides = [1, 1]} : vector<8x128xf32> to vector<8x32xf32>
    %154 = vector.extract_strided_slice %151 {offsets = [0, 64], sizes = [8, 32], strides = [1, 1]} : vector<8x128xf32> to vector<8x32xf32>
    %155 = vector.extract_strided_slice %150 {offsets = [0, 96], sizes = [8, 32], strides = [1, 1]} : vector<8x128xf32> to vector<8x32xf32>
    %156 = arith.mulf %153, %117 : vector<8x32xf32>
    %157 = arith.mulf %152, %154 : vector<8x32xf32>
    %158 = arith.addf %156, %157 : vector<8x32xf32>
    %159 = math.tanh %158 : vector<8x32xf32>
    %160 = arith.mulf %155, %159 : vector<8x32xf32>
    %161 = vector.extract_strided_slice %34 {offsets = [0, 3, 0], sizes = [8, 1, 128], strides = [1, 1, 1]} : vector<8x8x128xf32> to vector<8x1x128xf32>
    %162 = vector.shape_cast %161 : vector<8x1x128xf32> to vector<8x128xf32>
    %cst_47 = arith.constant dense<0.000000e+00> : vector<8x128xf32>
    %163 = tpu.matmul %140, %25, %cst_47 {dimension_numbers = #tpu.dot_dimension_numbers<[1], [0], [0], [1], [0, 0, 1, 1], [], []>} : vector<8x32xf32>, vector<32x128xf32>, vector<8x128xf32> -> vector<8x128xf32>
    %164 = arith.addf %162, %163 : vector<8x128xf32>
    %cst_48 = arith.constant 5.000000e-01 : f32
    %165 = vector.broadcast %cst_48 : f32 to vector<8x128xf32>
    %166 = arith.mulf %165, %164 : vector<8x128xf32>
    %167 = math.tanh %166 : vector<8x128xf32>
    %cst_49 = arith.constant 1.000000e+00 : f32
    %168 = vector.broadcast %cst_49 : f32 to vector<8x128xf32>
    %169 = arith.addf %167, %168 : vector<8x128xf32>
    %cst_50 = arith.constant 5.000000e-01 : f32
    %170 = vector.broadcast %cst_50 : f32 to vector<8x128xf32>
    %171 = arith.mulf %170, %169 : vector<8x128xf32>
    %172 = math.tanh %164 : vector<8x128xf32>
    %173 = vector.extract_strided_slice %171 {offsets = [0, 0], sizes = [8, 32], strides = [1, 1]} : vector<8x128xf32> to vector<8x32xf32>
    %174 = vector.extract_strided_slice %171 {offsets = [0, 32], sizes = [8, 32], strides = [1, 1]} : vector<8x128xf32> to vector<8x32xf32>
    %175 = vector.extract_strided_slice %172 {offsets = [0, 64], sizes = [8, 32], strides = [1, 1]} : vector<8x128xf32> to vector<8x32xf32>
    %176 = vector.extract_strided_slice %171 {offsets = [0, 96], sizes = [8, 32], strides = [1, 1]} : vector<8x128xf32> to vector<8x32xf32>
    %177 = arith.mulf %174, %138 : vector<8x32xf32>
    %178 = arith.mulf %173, %175 : vector<8x32xf32>
    %179 = arith.addf %177, %178 : vector<8x32xf32>
    %180 = math.tanh %179 : vector<8x32xf32>
    %181 = arith.mulf %176, %180 : vector<8x32xf32>
    %182 = tpu.concatenate %181, %160 in 1 : vector<8x32xf32>, vector<8x32xf32> -> vector<8x64xf32>
    %cst_51 = arith.constant dense<0.000000e+00> : vector<8x128xf32>
    %183 = tpu.matmul %182, %27, %cst_51 {dimension_numbers = #tpu.dot_dimension_numbers<[1], [0], [0], [1], [0, 0, 1, 1], [], []>} : vector<8x64xf32>, vector<64x128xf32>, vector<8x128xf32> -> vector<8x128xf32>
    %184 = arith.addf %183, %36 : vector<8x128xf32>
    %cst_52 = arith.constant 5.000000e-01 : f32
    %185 = vector.broadcast %cst_52 : f32 to vector<8x128xf32>
    %186 = arith.mulf %185, %184 : vector<8x128xf32>
    %187 = math.tanh %186 : vector<8x128xf32>
    %cst_53 = arith.constant 1.000000e+00 : f32
    %188 = vector.broadcast %cst_53 : f32 to vector<8x128xf32>
    %189 = arith.addf %187, %188 : vector<8x128xf32>
    %cst_54 = arith.constant 5.000000e-01 : f32
    %190 = vector.broadcast %cst_54 : f32 to vector<8x128xf32>
    %191 = arith.mulf %190, %189 : vector<8x128xf32>
    %192 = math.tanh %184 : vector<8x128xf32>
    %193 = vector.extract_strided_slice %191 {offsets = [0, 0], sizes = [8, 32], strides = [1, 1]} : vector<8x128xf32> to vector<8x32xf32>
    %194 = vector.extract_strided_slice %191 {offsets = [0, 32], sizes = [8, 32], strides = [1, 1]} : vector<8x128xf32> to vector<8x32xf32>
    %195 = vector.extract_strided_slice %192 {offsets = [0, 64], sizes = [8, 32], strides = [1, 1]} : vector<8x128xf32> to vector<8x32xf32>
    %196 = vector.extract_strided_slice %191 {offsets = [0, 96], sizes = [8, 32], strides = [1, 1]} : vector<8x128xf32> to vector<8x32xf32>
    %197 = arith.mulf %194, %158 : vector<8x32xf32>
    %198 = arith.mulf %193, %195 : vector<8x32xf32>
    %199 = arith.addf %197, %198 : vector<8x32xf32>
    %200 = math.tanh %199 : vector<8x32xf32>
    %201 = arith.mulf %196, %200 : vector<8x32xf32>
    %202 = vector.extract_strided_slice %34 {offsets = [0, 4, 0], sizes = [8, 1, 128], strides = [1, 1, 1]} : vector<8x8x128xf32> to vector<8x1x128xf32>
    %203 = vector.shape_cast %202 : vector<8x1x128xf32> to vector<8x128xf32>
    %cst_55 = arith.constant dense<0.000000e+00> : vector<8x128xf32>
    %204 = tpu.matmul %181, %25, %cst_55 {dimension_numbers = #tpu.dot_dimension_numbers<[1], [0], [0], [1], [0, 0, 1, 1], [], []>} : vector<8x32xf32>, vector<32x128xf32>, vector<8x128xf32> -> vector<8x128xf32>
    %205 = arith.addf %203, %204 : vector<8x128xf32>
    %cst_56 = arith.constant 5.000000e-01 : f32
    %206 = vector.broadcast %cst_56 : f32 to vector<8x128xf32>
    %207 = arith.mulf %206, %205 : vector<8x128xf32>
    %208 = math.tanh %207 : vector<8x128xf32>
    %cst_57 = arith.constant 1.000000e+00 : f32
    %209 = vector.broadcast %cst_57 : f32 to vector<8x128xf32>
    %210 = arith.addf %208, %209 : vector<8x128xf32>
    %cst_58 = arith.constant 5.000000e-01 : f32
    %211 = vector.broadcast %cst_58 : f32 to vector<8x128xf32>
    %212 = arith.mulf %211, %210 : vector<8x128xf32>
    %213 = math.tanh %205 : vector<8x128xf32>
    %214 = vector.extract_strided_slice %212 {offsets = [0, 0], sizes = [8, 32], strides = [1, 1]} : vector<8x128xf32> to vector<8x32xf32>
    %215 = vector.extract_strided_slice %212 {offsets = [0, 32], sizes = [8, 32], strides = [1, 1]} : vector<8x128xf32> to vector<8x32xf32>
    %216 = vector.extract_strided_slice %213 {offsets = [0, 64], sizes = [8, 32], strides = [1, 1]} : vector<8x128xf32> to vector<8x32xf32>
    %217 = vector.extract_strided_slice %212 {offsets = [0, 96], sizes = [8, 32], strides = [1, 1]} : vector<8x128xf32> to vector<8x32xf32>
    %218 = arith.mulf %215, %179 : vector<8x32xf32>
    %219 = arith.mulf %214, %216 : vector<8x32xf32>
    %220 = arith.addf %218, %219 : vector<8x32xf32>
    %221 = math.tanh %220 : vector<8x32xf32>
    %222 = arith.mulf %217, %221 : vector<8x32xf32>
    %223 = tpu.concatenate %222, %201 in 1 : vector<8x32xf32>, vector<8x32xf32> -> vector<8x64xf32>
    %cst_59 = arith.constant dense<0.000000e+00> : vector<8x128xf32>
    %224 = tpu.matmul %223, %27, %cst_59 {dimension_numbers = #tpu.dot_dimension_numbers<[1], [0], [0], [1], [0, 0, 1, 1], [], []>} : vector<8x64xf32>, vector<64x128xf32>, vector<8x128xf32> -> vector<8x128xf32>
    %225 = arith.addf %224, %36 : vector<8x128xf32>
    %cst_60 = arith.constant 5.000000e-01 : f32
    %226 = vector.broadcast %cst_60 : f32 to vector<8x128xf32>
    %227 = arith.mulf %226, %225 : vector<8x128xf32>
    %228 = math.tanh %227 : vector<8x128xf32>
    %cst_61 = arith.constant 1.000000e+00 : f32
    %229 = vector.broadcast %cst_61 : f32 to vector<8x128xf32>
    %230 = arith.addf %228, %229 : vector<8x128xf32>
    %cst_62 = arith.constant 5.000000e-01 : f32
    %231 = vector.broadcast %cst_62 : f32 to vector<8x128xf32>
    %232 = arith.mulf %231, %230 : vector<8x128xf32>
    %233 = math.tanh %225 : vector<8x128xf32>
    %234 = vector.extract_strided_slice %232 {offsets = [0, 0], sizes = [8, 32], strides = [1, 1]} : vector<8x128xf32> to vector<8x32xf32>
    %235 = vector.extract_strided_slice %232 {offsets = [0, 32], sizes = [8, 32], strides = [1, 1]} : vector<8x128xf32> to vector<8x32xf32>
    %236 = vector.extract_strided_slice %233 {offsets = [0, 64], sizes = [8, 32], strides = [1, 1]} : vector<8x128xf32> to vector<8x32xf32>
    %237 = vector.extract_strided_slice %232 {offsets = [0, 96], sizes = [8, 32], strides = [1, 1]} : vector<8x128xf32> to vector<8x32xf32>
    %238 = arith.mulf %235, %199 : vector<8x32xf32>
    %239 = arith.mulf %234, %236 : vector<8x32xf32>
    %240 = arith.addf %238, %239 : vector<8x32xf32>
    %241 = math.tanh %240 : vector<8x32xf32>
    %242 = arith.mulf %237, %241 : vector<8x32xf32>
    %243 = vector.extract_strided_slice %34 {offsets = [0, 5, 0], sizes = [8, 1, 128], strides = [1, 1, 1]} : vector<8x8x128xf32> to vector<8x1x128xf32>
    %244 = vector.shape_cast %243 : vector<8x1x128xf32> to vector<8x128xf32>
    %cst_63 = arith.constant dense<0.000000e+00> : vector<8x128xf32>
    %245 = tpu.matmul %222, %25, %cst_63 {dimension_numbers = #tpu.dot_dimension_numbers<[1], [0], [0], [1], [0, 0, 1, 1], [], []>} : vector<8x32xf32>, vector<32x128xf32>, vector<8x128xf32> -> vector<8x128xf32>
    %246 = arith.addf %244, %245 : vector<8x128xf32>
    %cst_64 = arith.constant 5.000000e-01 : f32
    %247 = vector.broadcast %cst_64 : f32 to vector<8x128xf32>
    %248 = arith.mulf %247, %246 : vector<8x128xf32>
    %249 = math.tanh %248 : vector<8x128xf32>
    %cst_65 = arith.constant 1.000000e+00 : f32
    %250 = vector.broadcast %cst_65 : f32 to vector<8x128xf32>
    %251 = arith.addf %249, %250 : vector<8x128xf32>
    %cst_66 = arith.constant 5.000000e-01 : f32
    %252 = vector.broadcast %cst_66 : f32 to vector<8x128xf32>
    %253 = arith.mulf %252, %251 : vector<8x128xf32>
    %254 = math.tanh %246 : vector<8x128xf32>
    %255 = vector.extract_strided_slice %253 {offsets = [0, 0], sizes = [8, 32], strides = [1, 1]} : vector<8x128xf32> to vector<8x32xf32>
    %256 = vector.extract_strided_slice %253 {offsets = [0, 32], sizes = [8, 32], strides = [1, 1]} : vector<8x128xf32> to vector<8x32xf32>
    %257 = vector.extract_strided_slice %254 {offsets = [0, 64], sizes = [8, 32], strides = [1, 1]} : vector<8x128xf32> to vector<8x32xf32>
    %258 = vector.extract_strided_slice %253 {offsets = [0, 96], sizes = [8, 32], strides = [1, 1]} : vector<8x128xf32> to vector<8x32xf32>
    %259 = arith.mulf %256, %220 : vector<8x32xf32>
    %260 = arith.mulf %255, %257 : vector<8x32xf32>
    %261 = arith.addf %259, %260 : vector<8x32xf32>
    %262 = math.tanh %261 : vector<8x32xf32>
    %263 = arith.mulf %258, %262 : vector<8x32xf32>
    %264 = tpu.concatenate %263, %242 in 1 : vector<8x32xf32>, vector<8x32xf32> -> vector<8x64xf32>
    %cst_67 = arith.constant dense<0.000000e+00> : vector<8x128xf32>
    %265 = tpu.matmul %264, %27, %cst_67 {dimension_numbers = #tpu.dot_dimension_numbers<[1], [0], [0], [1], [0, 0, 1, 1], [], []>} : vector<8x64xf32>, vector<64x128xf32>, vector<8x128xf32> -> vector<8x128xf32>
    %266 = arith.addf %265, %36 : vector<8x128xf32>
    %cst_68 = arith.constant 5.000000e-01 : f32
    %267 = vector.broadcast %cst_68 : f32 to vector<8x128xf32>
    %268 = arith.mulf %267, %266 : vector<8x128xf32>
    %269 = math.tanh %268 : vector<8x128xf32>
    %cst_69 = arith.constant 1.000000e+00 : f32
    %270 = vector.broadcast %cst_69 : f32 to vector<8x128xf32>
    %271 = arith.addf %269, %270 : vector<8x128xf32>
    %cst_70 = arith.constant 5.000000e-01 : f32
    %272 = vector.broadcast %cst_70 : f32 to vector<8x128xf32>
    %273 = arith.mulf %272, %271 : vector<8x128xf32>
    %274 = math.tanh %266 : vector<8x128xf32>
    %275 = vector.extract_strided_slice %273 {offsets = [0, 0], sizes = [8, 32], strides = [1, 1]} : vector<8x128xf32> to vector<8x32xf32>
    %276 = vector.extract_strided_slice %273 {offsets = [0, 32], sizes = [8, 32], strides = [1, 1]} : vector<8x128xf32> to vector<8x32xf32>
    %277 = vector.extract_strided_slice %274 {offsets = [0, 64], sizes = [8, 32], strides = [1, 1]} : vector<8x128xf32> to vector<8x32xf32>
    %278 = vector.extract_strided_slice %273 {offsets = [0, 96], sizes = [8, 32], strides = [1, 1]} : vector<8x128xf32> to vector<8x32xf32>
    %279 = arith.mulf %276, %240 : vector<8x32xf32>
    %280 = arith.mulf %275, %277 : vector<8x32xf32>
    %281 = arith.addf %279, %280 : vector<8x32xf32>
    %282 = math.tanh %281 : vector<8x32xf32>
    %283 = arith.mulf %278, %282 : vector<8x32xf32>
    %284 = vector.extract_strided_slice %34 {offsets = [0, 6, 0], sizes = [8, 1, 128], strides = [1, 1, 1]} : vector<8x8x128xf32> to vector<8x1x128xf32>
    %285 = vector.shape_cast %284 : vector<8x1x128xf32> to vector<8x128xf32>
    %cst_71 = arith.constant dense<0.000000e+00> : vector<8x128xf32>
    %286 = tpu.matmul %263, %25, %cst_71 {dimension_numbers = #tpu.dot_dimension_numbers<[1], [0], [0], [1], [0, 0, 1, 1], [], []>} : vector<8x32xf32>, vector<32x128xf32>, vector<8x128xf32> -> vector<8x128xf32>
    %287 = arith.addf %285, %286 : vector<8x128xf32>
    %cst_72 = arith.constant 5.000000e-01 : f32
    %288 = vector.broadcast %cst_72 : f32 to vector<8x128xf32>
    %289 = arith.mulf %288, %287 : vector<8x128xf32>
    %290 = math.tanh %289 : vector<8x128xf32>
    %cst_73 = arith.constant 1.000000e+00 : f32
    %291 = vector.broadcast %cst_73 : f32 to vector<8x128xf32>
    %292 = arith.addf %290, %291 : vector<8x128xf32>
    %cst_74 = arith.constant 5.000000e-01 : f32
    %293 = vector.broadcast %cst_74 : f32 to vector<8x128xf32>
    %294 = arith.mulf %293, %292 : vector<8x128xf32>
    %295 = math.tanh %287 : vector<8x128xf32>
    %296 = vector.extract_strided_slice %294 {offsets = [0, 0], sizes = [8, 32], strides = [1, 1]} : vector<8x128xf32> to vector<8x32xf32>
    %297 = vector.extract_strided_slice %294 {offsets = [0, 32], sizes = [8, 32], strides = [1, 1]} : vector<8x128xf32> to vector<8x32xf32>
    %298 = vector.extract_strided_slice %295 {offsets = [0, 64], sizes = [8, 32], strides = [1, 1]} : vector<8x128xf32> to vector<8x32xf32>
    %299 = vector.extract_strided_slice %294 {offsets = [0, 96], sizes = [8, 32], strides = [1, 1]} : vector<8x128xf32> to vector<8x32xf32>
    %300 = arith.mulf %297, %261 : vector<8x32xf32>
    %301 = arith.mulf %296, %298 : vector<8x32xf32>
    %302 = arith.addf %300, %301 : vector<8x32xf32>
    %303 = math.tanh %302 : vector<8x32xf32>
    %304 = arith.mulf %299, %303 : vector<8x32xf32>
    %305 = tpu.concatenate %304, %283 in 1 : vector<8x32xf32>, vector<8x32xf32> -> vector<8x64xf32>
    %cst_75 = arith.constant dense<0.000000e+00> : vector<8x128xf32>
    %306 = tpu.matmul %305, %27, %cst_75 {dimension_numbers = #tpu.dot_dimension_numbers<[1], [0], [0], [1], [0, 0, 1, 1], [], []>} : vector<8x64xf32>, vector<64x128xf32>, vector<8x128xf32> -> vector<8x128xf32>
    %307 = arith.addf %306, %36 : vector<8x128xf32>
    %cst_76 = arith.constant 5.000000e-01 : f32
    %308 = vector.broadcast %cst_76 : f32 to vector<8x128xf32>
    %309 = arith.mulf %308, %307 : vector<8x128xf32>
    %310 = math.tanh %309 : vector<8x128xf32>
    %cst_77 = arith.constant 1.000000e+00 : f32
    %311 = vector.broadcast %cst_77 : f32 to vector<8x128xf32>
    %312 = arith.addf %310, %311 : vector<8x128xf32>
    %cst_78 = arith.constant 5.000000e-01 : f32
    %313 = vector.broadcast %cst_78 : f32 to vector<8x128xf32>
    %314 = arith.mulf %313, %312 : vector<8x128xf32>
    %315 = math.tanh %307 : vector<8x128xf32>
    %316 = vector.extract_strided_slice %314 {offsets = [0, 0], sizes = [8, 32], strides = [1, 1]} : vector<8x128xf32> to vector<8x32xf32>
    %317 = vector.extract_strided_slice %314 {offsets = [0, 32], sizes = [8, 32], strides = [1, 1]} : vector<8x128xf32> to vector<8x32xf32>
    %318 = vector.extract_strided_slice %315 {offsets = [0, 64], sizes = [8, 32], strides = [1, 1]} : vector<8x128xf32> to vector<8x32xf32>
    %319 = vector.extract_strided_slice %314 {offsets = [0, 96], sizes = [8, 32], strides = [1, 1]} : vector<8x128xf32> to vector<8x32xf32>
    %320 = arith.mulf %317, %281 : vector<8x32xf32>
    %321 = arith.mulf %316, %318 : vector<8x32xf32>
    %322 = arith.addf %320, %321 : vector<8x32xf32>
    %323 = math.tanh %322 : vector<8x32xf32>
    %324 = arith.mulf %319, %323 : vector<8x32xf32>
    %325 = vector.extract_strided_slice %34 {offsets = [0, 7, 0], sizes = [8, 1, 128], strides = [1, 1, 1]} : vector<8x8x128xf32> to vector<8x1x128xf32>
    %326 = vector.shape_cast %325 : vector<8x1x128xf32> to vector<8x128xf32>
    %cst_79 = arith.constant dense<0.000000e+00> : vector<8x128xf32>
    %327 = tpu.matmul %304, %25, %cst_79 {dimension_numbers = #tpu.dot_dimension_numbers<[1], [0], [0], [1], [0, 0, 1, 1], [], []>} : vector<8x32xf32>, vector<32x128xf32>, vector<8x128xf32> -> vector<8x128xf32>
    %328 = arith.addf %326, %327 : vector<8x128xf32>
    %cst_80 = arith.constant 5.000000e-01 : f32
    %329 = vector.broadcast %cst_80 : f32 to vector<8x128xf32>
    %330 = arith.mulf %329, %328 : vector<8x128xf32>
    %331 = math.tanh %330 : vector<8x128xf32>
    %cst_81 = arith.constant 1.000000e+00 : f32
    %332 = vector.broadcast %cst_81 : f32 to vector<8x128xf32>
    %333 = arith.addf %331, %332 : vector<8x128xf32>
    %cst_82 = arith.constant 5.000000e-01 : f32
    %334 = vector.broadcast %cst_82 : f32 to vector<8x128xf32>
    %335 = arith.mulf %334, %333 : vector<8x128xf32>
    %336 = math.tanh %328 : vector<8x128xf32>
    %337 = vector.extract_strided_slice %335 {offsets = [0, 0], sizes = [8, 32], strides = [1, 1]} : vector<8x128xf32> to vector<8x32xf32>
    %338 = vector.extract_strided_slice %335 {offsets = [0, 32], sizes = [8, 32], strides = [1, 1]} : vector<8x128xf32> to vector<8x32xf32>
    %339 = vector.extract_strided_slice %336 {offsets = [0, 64], sizes = [8, 32], strides = [1, 1]} : vector<8x128xf32> to vector<8x32xf32>
    %340 = vector.extract_strided_slice %335 {offsets = [0, 96], sizes = [8, 32], strides = [1, 1]} : vector<8x128xf32> to vector<8x32xf32>
    %341 = arith.mulf %338, %302 : vector<8x32xf32>
    %342 = arith.mulf %337, %339 : vector<8x32xf32>
    %343 = arith.addf %341, %342 : vector<8x32xf32>
    %344 = math.tanh %343 : vector<8x32xf32>
    %345 = arith.mulf %340, %344 : vector<8x32xf32>
    %346 = tpu.concatenate %345, %324 in 1 : vector<8x32xf32>, vector<8x32xf32> -> vector<8x64xf32>
    %cst_83 = arith.constant dense<0.000000e+00> : vector<8x128xf32>
    %347 = tpu.matmul %346, %27, %cst_83 {dimension_numbers = #tpu.dot_dimension_numbers<[1], [0], [0], [1], [0, 0, 1, 1], [], []>} : vector<8x64xf32>, vector<64x128xf32>, vector<8x128xf32> -> vector<8x128xf32>
    %348 = arith.addf %347, %36 : vector<8x128xf32>
    %cst_84 = arith.constant 5.000000e-01 : f32
    %349 = vector.broadcast %cst_84 : f32 to vector<8x128xf32>
    %350 = arith.mulf %349, %348 : vector<8x128xf32>
    %351 = math.tanh %350 : vector<8x128xf32>
    %cst_85 = arith.constant 1.000000e+00 : f32
    %352 = vector.broadcast %cst_85 : f32 to vector<8x128xf32>
    %353 = arith.addf %351, %352 : vector<8x128xf32>
    %cst_86 = arith.constant 5.000000e-01 : f32
    %354 = vector.broadcast %cst_86 : f32 to vector<8x128xf32>
    %355 = arith.mulf %354, %353 : vector<8x128xf32>
    %356 = math.tanh %348 : vector<8x128xf32>
    %357 = vector.extract_strided_slice %355 {offsets = [0, 0], sizes = [8, 32], strides = [1, 1]} : vector<8x128xf32> to vector<8x32xf32>
    %358 = vector.extract_strided_slice %355 {offsets = [0, 32], sizes = [8, 32], strides = [1, 1]} : vector<8x128xf32> to vector<8x32xf32>
    %359 = vector.extract_strided_slice %356 {offsets = [0, 64], sizes = [8, 32], strides = [1, 1]} : vector<8x128xf32> to vector<8x32xf32>
    %360 = vector.extract_strided_slice %355 {offsets = [0, 96], sizes = [8, 32], strides = [1, 1]} : vector<8x128xf32> to vector<8x32xf32>
    %361 = arith.mulf %358, %322 : vector<8x32xf32>
    %362 = arith.mulf %357, %359 : vector<8x32xf32>
    %363 = arith.addf %361, %362 : vector<8x32xf32>
    %364 = math.tanh %363 : vector<8x32xf32>
    %365 = arith.mulf %360, %364 : vector<8x32xf32>
    %c80 = arith.constant 80 : index
    %c0_87 = arith.constant 0 : index
    %366 = vector.load %arg3[%c80, %c0_87] : memref<147x32xf32, #tpu.memory_space<vmem>>, vector<64x32xf32>
    %c146 = arith.constant 146 : index
    %c0_88 = arith.constant 0 : index
    %367 = vector.load %arg3[%c146, %c0_88] : memref<147x32xf32, #tpu.memory_space<vmem>>, vector<1x32xf32>
    %368 = tpu.concatenate %23, %365 in 1 : vector<8x32xf32>, vector<8x32xf32> -> vector<8x64xf32>
    %cst_89 = arith.constant dense<0.000000e+00> : vector<8x32xf32>
    %369 = tpu.matmul %368, %366, %cst_89 {dimension_numbers = #tpu.dot_dimension_numbers<[1], [0], [0], [1], [0, 0, 1, 1], [], []>} : vector<8x64xf32>, vector<64x32xf32>, vector<8x32xf32> -> vector<8x32xf32>
    %370 = vector.broadcast %367 : vector<1x32xf32> to vector<8x32xf32>
    %371 = arith.addf %369, %370 : vector<8x32xf32>
    %cst_90 = arith.constant 5.000000e-01 : f32
    %372 = vector.broadcast %cst_90 : f32 to vector<8x32xf32>
    %373 = arith.mulf %372, %371 : vector<8x32xf32>
    %374 = math.tanh %373 : vector<8x32xf32>
    %cst_91 = arith.constant 1.000000e+00 : f32
    %375 = vector.broadcast %cst_91 : f32 to vector<8x32xf32>
    %376 = arith.addf %374, %375 : vector<8x32xf32>
    %cst_92 = arith.constant 5.000000e-01 : f32
    %377 = vector.broadcast %cst_92 : f32 to vector<8x32xf32>
    %378 = arith.mulf %377, %376 : vector<8x32xf32>
    %379 = arith.mulf %378, %365 : vector<8x32xf32>
    %cst_93 = arith.constant 1.000000e+00 : f32
    %380 = vector.broadcast %cst_93 : f32 to vector<8x32xf32>
    %381 = arith.subf %380, %378 : vector<8x32xf32>
    %382 = arith.mulf %381, %23 : vector<8x32xf32>
    %383 = arith.addf %379, %382 : vector<8x32xf32>
    %cst_94 = arith.constant 0.000000e+00 : f32
    %384 = vector.broadcast %cst_94 : f32 to vector<8x80xf32>
    %385 = tpu.concatenate %383, %22, %384 in 1 : vector<8x32xf32>, vector<8x16xf32>, vector<8x80xf32> -> vector<8x128xf32>
    %c0_95 = arith.constant 0 : index
    %c0_96 = arith.constant 0 : index
    %386 = vector.load %arg4[%c0_95, %c0_96] : memref<8x128xf32, #tpu.memory_space<vmem>>, vector<8x128xf32>
    tpu.vector_store %arg4[%c0_95, %c0_96], %385 {strides = array<i32>} : memref<8x128xf32, #tpu.memory_space<vmem>>, vector<8x128xf32>,
    return
  }
}

</mosaic_0001>

<llo_original>
// kernel: tpu_custom_call.1
$region0: #{tpu_custom_call.1}
  #allocation0 [shape = 'u32[]', space=smem, size = 0x4, offset = 0x4, fixed_abs, tag = 'smem constant byte address 0x4 - core index']
  #allocation1 [shape = 'u32[144,128]{1,0:T(1,128)}', space=vmem, size = 0x12000, scoped, tag = 'internal scratch']
  %s0 = inlined_call_operand.vmem [shape: f32[8,32], index: 0, kind: input, shape index: {}]
  %s1 = inlined_call_operand.vmem [shape: f32[8,8,16], index: 1, kind: input, shape index: {}]
  %s2 = inlined_call_operand.vmem [shape: f32[114,128], index: 2, kind: input, shape index: {}]
  %s3 = inlined_call_operand.vmem [shape: f32[147,32], index: 3, kind: input, shape index: {}]
  %s4 = inlined_call_operand.hbm [shape: f32[8,128], index: 4, kind: output, shape index: {}]
  %s5 = sld [smem:[#allocation0]]
  $region26: #{tpu_custom_call.1} parent=0
    _
  %s7 = ssub.s32 1, %s5
  %s8 = scalar_select 0, %s7, %s5
  $region1: #{tpu_custom_call.1} parent=0
    #allocation2 [shape = 'u8[4096]{0}', space=vmem, size = 0x1000, scoped, tag = 'output window, operand 0, single buffered']
    #allocation3 [shape = 's32[1]{0}', space=sflag, size = 0x4, scoped, tag = 'scoped memory for tpu_custom_call.1']
    %9 = vsyncpa [#allocation3], 0
    // Predicated region
    $region2: #{tpu_custom_call.1} parent=1 // pred_check
      _
    $region3: #{tpu_custom_call.1} parent=1 // pred_check_branch
      %11 = sbr.rel (0) target = $region5
    $region4: #{tpu_custom_call.1} parent=1 // pred_region
      _
    $region5: #{tpu_custom_call.1} parent=1 // pred_fallthru
      _
    // Predicated region
    $region6: #{tpu_custom_call.1} parent=1 // pred_check
      _
    $region7: #{tpu_custom_call.1} parent=1 // pred_check_branch
      %13 = sbr.rel (0) target = $region9
    $region8: #{tpu_custom_call.1} parent=1 // pred_region
      _
    $region9: #{tpu_custom_call.1} parent=1 // pred_fallthru
      _
    // Predicated region
    $region10: #{tpu_custom_call.1} parent=1 // pred_check
      _
    $region11: #{tpu_custom_call.1} parent=1 // pred_check_branch
      %15 = sbr.rel (0) target = $region13
    $region12: #{tpu_custom_call.1} parent=1 // pred_region
      _
    $region13: #{tpu_custom_call.1} parent=1 // pred_fallthru
      _
    // Predicated region
    $region14: #{tpu_custom_call.1} parent=1 // pred_check
      _
    $region15: #{tpu_custom_call.1} parent=1 // pred_check_branch
      %17 = sbr.rel (0) target = $region17
    $region16: #{tpu_custom_call.1} parent=1 // pred_region
      _
    $region17: #{tpu_custom_call.1} parent=1 // pred_fallthru
      _
    %v18 = vld [vmem:[%s3] sm:$0xff]
    %v19 = vld [vmem:[%s3 + $0x8] sm:$0xff]
    %v20 = vld [vmem:[%s3 + $0x10] sm:$0xff]
    %v21 = vld [vmem:[%s3 + $0x18] sm:$0xff]
    %v22 = vld [vmem:[%s3 + $0x20] sm:$0xff]
    %v23 = vld [vmem:[%s3 + $0x28] sm:$0xff]
    %v24 = vld [vmem:[%s3 + $0x30] sm:$0xff]
    %v25 = vld [vmem:[%s3 + $0x38] sm:$0xff]
    %v26 = vld [vmem:[%s3 + $0x40] sm:$0xff]
    %v27 = vld [vmem:[%s3 + $0x48] sm:$0xff]
    %v28 = vld [vmem:[%s3 + $0x90] sm:$0x1]
    %v29 = vld [vmem:[%s3 + $0x91] sm:$0x1]
    %v30 = vld [vmem:[%s0] sm:$0xff]
    %v31 = vlaneseq
    %v32 = vshrl.u32 %v31, 7
    %v33 = vsub.s32 0, %v32
    %v34 = vrot.slane %v28, %v33
    %vm35 = vcmask 261120
    %v37 = vsel %vm35, %v30, 0
    %39 = vmatprep.subr.mxu0 0.0
    %40 = vmatpush1.msra.mxu0 %v18
    %41 = vmatprep.subr.mxu0 0.0
    %42 = vmatpush1.msra.mxu0 %v19
    %43 = vmatprep.subr.mxu0 0.0
    %44 = vmatpush1.msra.mxu0 %v20
    %45 = vmatprep.subr.mxu0 0.0
    %46 = vmatpush1.msra.mxu0 %v21
    %47 = vmatprep.subr.mxu0 0.0
    %48 = vmatpush1.msra.mxu0 0.0
    %49 = vmatprep.subr.mxu0 0.0
    %50 = vmatpush1.msra.mxu0 0.0
    %51 = vmatprep.subr.mxu0 0.0
    %52 = vmatpush1.msra.mxu0 0.0
    %53 = vmatprep.subr.mxu0 0.0
    %54 = vmatpush1.msra.mxu0 0.0
    %55 = vmatprep.subr.mxu0 0.0
    %56 = vmatpush1.msra.mxu0 0.0
    %57 = vmatprep.subr.mxu0 0.0
    %58 = vmatpush1.msra.mxu0 0.0
    %59 = vmatprep.subr.mxu0 0.0
    %60 = vmatpush1.msra.mxu0 0.0
    %61 = vmatprep.subr.mxu0 0.0
    %62 = vmatpush1.msra.mxu0 0.0
    %63 = vmatprep.subr.mxu0 0.0
    %64 = vmatpush1.msra.mxu0 0.0
    %65 = vmatprep.subr.mxu0 0.0
    %66 = vmatpush1.msra.mxu0 0.0
    %67 = vmatprep.subr.mxu0 0.0
    %68 = vmatpush1.msra.mxu0 0.0
    %69 = vmatprep.subr.mxu0 0.0
    %70 = vmatpush1.msra.mxu0 0.0
    %71 = vmatprep.subr.mxu0 0.0
    %72 = vmatpush1.msra.mxu0 0.0
    %73 = vmatprep.subr.mxu0 0.0
    %74 = vmatpush1.msra.mxu0 0.0
    %75 = vmatprep.subr.mxu0 0.0
    %76 = vmatpush1.msra.mxu0 0.0
    %77 = vmatprep.subr.mxu0 0.0
    %78 = vmatpush1.msra.mxu0 0.0
    %79 = vmatprep.subr.mxu0 0.0
    %80 = vmatpush1.msra.mxu0 0.0
    %81 = vmatprep.subr.mxu0 0.0
    %82 = vmatpush1.msra.mxu0 0.0
    %83 = vmatprep.subr.mxu0 0.0
    %84 = vmatpush1.msra.mxu0 0.0
    %85 = vmatprep.subr.mxu0 0.0
    %86 = vmatpush1.msra.mxu0 0.0
    %87 = vmatprep.subr.mxu0 0.0
    %88 = vmatpush1.msra.mxu0 0.0
    %89 = vmatprep.subr.mxu0 0.0
    %90 = vmatpush1.msra.mxu0 0.0
    %91 = vmatprep.subr.mxu0 0.0
    %92 = vmatpush1.msra.mxu0 0.0
    %93 = vmatprep.subr.mxu0 0.0
    %94 = vmatpush1.msra.mxu0 0.0
    %95 = vmatprep.subr.mxu0 0.0
    %96 = vmatpush1.msra.mxu0 0.0
    %97 = vmatprep.subr.mxu0 0.0
    %98 = vmatpush1.msra.mxu0 0.0
    %99 = vmatprep.subr.mxu0 0.0
    %100 = vmatpush1.msra.mxu0 0.0
    %101 = vmatprep.subr.mxu0 0.0
    %102 = vmatpush1.msra.mxu0 0.0
    %103 = vmatprep.mubr.f32.mxu0 0.0
    %104 = vmatmul.mubr.f32.gmra.mrb[0].mxu0 %v37
    %v105 = vpop.f32.mrb[0].mxu0
    %v106 = vadd.f32 %v34, %v105
    %v107 = vpop.f32.mrb[0].mxu0
    %108 = vdwg.mxu0
    %v109 = vmax.f32 %v106, 0.0
    %v110 = vlaneseq
    %v111 = vshrl.u32 %v110, 7
    %v112 = vsub.s32 0, %v111
    %v113 = vrot.slane %v29, %v112
    %v115 = vsel %vm35, %v109, 0
    %117 = vmatprep.subr.mxu0 0.0
    %118 = vmatpush1.msra.mxu0 %v22
    %119 = vmatprep.subr.mxu0 0.0
    %120 = vmatpush1.msra.mxu0 %v23
    %121 = vmatprep.subr.mxu0 0.0
    %122 = vmatpush1.msra.mxu0 %v24
    %123 = vmatprep.subr.mxu0 0.0
    %124 = vmatpush1.msra.mxu0 %v25
    %125 = vmatprep.subr.mxu0 0.0
    %126 = vmatpush1.msra.mxu0 0.0
    %127 = vmatprep.subr.mxu0 0.0
    %128 = vmatpush1.msra.mxu0 0.0
    %129 = vmatprep.subr.mxu0 0.0
    %130 = vmatpush1.msra.mxu0 0.0
    %131 = vmatprep.subr.mxu0 0.0
    %132 = vmatpush1.msra.mxu0 0.0
    %133 = vmatprep.subr.mxu0 0.0
    %134 = vmatpush1.msra.mxu0 0.0
    %135 = vmatprep.subr.mxu0 0.0
    %136 = vmatpush1.msra.mxu0 0.0
    %137 = vmatprep.subr.mxu0 0.0
    %138 = vmatpush1.msra.mxu0 0.0
    %139 = vmatprep.subr.mxu0 0.0
    %140 = vmatpush1.msra.mxu0 0.0
    %141 = vmatprep.subr.mxu0 0.0
    %142 = vmatpush1.msra.mxu0 0.0
    %143 = vmatprep.subr.mxu0 0.0
    %144 = vmatpush1.msra.mxu0 0.0
    %145 = vmatprep.subr.mxu0 0.0
    %146 = vmatpush1.msra.mxu0 0.0
    %147 = vmatprep.subr.mxu0 0.0
    %148 = vmatpush1.msra.mxu0 0.0
    %149 = vmatprep.subr.mxu0 0.0
    %150 = vmatpush1.msra.mxu0 0.0
    %151 = vmatprep.subr.mxu0 0.0
    %152 = vmatpush1.msra.mxu0 0.0
    %153 = vmatprep.subr.mxu0 0.0
    %154 = vmatpush1.msra.mxu0 0.0
    %155 = vmatprep.subr.mxu0 0.0
    %156 = vmatpush1.msra.mxu0 0.0
    %157 = vmatprep.subr.mxu0 0.0
    %158 = vmatpush1.msra.mxu0 0.0
    %159 = vmatprep.subr.mxu0 0.0
    %160 = vmatpush1.msra.mxu0 0.0
    %161 = vmatprep.subr.mxu0 0.0
    %162 = vmatpush1.msra.mxu0 0.0
    %163 = vmatprep.subr.mxu0 0.0
    %164 = vmatpush1.msra.mxu0 0.0
    %165 = vmatprep.subr.mxu0 0.0
    %166 = vmatpush1.msra.mxu0 0.0
    %167 = vmatprep.subr.mxu0 0.0
    %168 = vmatpush1.msra.mxu0 0.0
    %169 = vmatprep.subr.mxu0 0.0
    %170 = vmatpush1.msra.mxu0 0.0
    %171 = vmatprep.subr.mxu0 0.0
    %172 = vmatpush1.msra.mxu0 0.0
    %173 = vmatprep.subr.mxu0 0.0
    %174 = vmatpush1.msra.mxu0 0.0
    %175 = vmatprep.subr.mxu0 0.0
    %176 = vmatpush1.msra.mxu0 0.0
    %177 = vmatprep.subr.mxu0 0.0
    %178 = vmatpush1.msra.mxu0 0.0
    %179 = vmatprep.subr.mxu0 0.0
    %180 = vmatpush1.msra.mxu0 0.0
    %181 = vmatprep.mubr.f32.mxu0 0.0
    %182 = vmatmul.mubr.f32.gmra.mrb[0].mxu0 %v115
    %v183 = vpop.f32.mrb[0].mxu0
    %v184 = vadd.f32 %v113, %v183
    %v185 = vpop.f32.mrb[0].mxu0
    %186 = vdwg.mxu0
    %vm187 = vcmask 130048
    %v188 = vsel %vm187, %v184, -inf
    %189 = vmax.xlane.f32.xlu0 %v188
    %v190 = vpop.xlane.xlu0 %189
    %v191 = vsub.f32 %v184, %v190
    %v192 = vmul.f32 %v191, 1.442695
    %v193 = vpow.pop %v192
    %v194 = vsel %vm187, %v193, 0.0
    %195 = vadd.xlane.f32.xlu0 %v194
    %v196 = vpop.xlane.xlu0 %195
    %v197 = vrcp.pop %v196
    %v198 = vmul.f32 %v193, %v197
    %v200 = vsel %vm187, %v198, 0
    %202 = vmatprep.subr.mxu0 0.0
    %203 = vmatpush1.msra.mxu0 %v26
    %204 = vmatprep.subr.mxu0 0.0
    %205 = vmatpush1.msra.mxu0 %v27
    %206 = vmatprep.subr.mxu0 0.0
    %207 = vmatpush1.msra.mxu0 0.0
    %208 = vmatprep.subr.mxu0 0.0
    %209 = vmatpush1.msra.mxu0 0.0
    %210 = vmatprep.subr.mxu0 0.0
    %211 = vmatpush1.msra.mxu0 0.0
    %212 = vmatprep.subr.mxu0 0.0
    %213 = vmatpush1.msra.mxu0 0.0
    %214 = vmatprep.subr.mxu0 0.0
    %215 = vmatpush1.msra.mxu0 0.0
    %216 = vmatprep.subr.mxu0 0.0
    %217 = vmatpush1.msra.mxu0 0.0
    %218 = vmatprep.subr.mxu0 0.0
    %219 = vmatpush1.msra.mxu0 0.0
    %220 = vmatprep.subr.mxu0 0.0
    %221 = vmatpush1.msra.mxu0 0.0
    %222 = vmatprep.subr.mxu0 0.0
    %223 = vmatpush1.msra.mxu0 0.0
    %224 = vmatprep.subr.mxu0 0.0
    %225 = vmatpush1.msra.mxu0 0.0
    %226 = vmatprep.subr.mxu0 0.0
    %227 = vmatpush1.msra.mxu0 0.0
    %228 = vmatprep.subr.mxu0 0.0
    %229 = vmatpush1.msra.mxu0 0.0
    %230 = vmatprep.subr.mxu0 0.0
    %231 = vmatpush1.msra.mxu0 0.0
    %232 = vmatprep.subr.mxu0 0.0
    %233 = vmatpush1.msra.mxu0 0.0
    %234 = vmatprep.subr.mxu0 0.0
    %235 = vmatpush1.msra.mxu0 0.0
    %236 = vmatprep.subr.mxu0 0.0
    %237 = vmatpush1.msra.mxu0 0.0
    %238 = vmatprep.subr.mxu0 0.0
    %239 = vmatpush1.msra.mxu0 0.0
    %240 = vmatprep.subr.mxu0 0.0
    %241 = vmatpush1.msra.mxu0 0.0
    %242 = vmatprep.subr.mxu0 0.0
    %243 = vmatpush1.msra.mxu0 0.0
    %244 = vmatprep.subr.mxu0 0.0
    %245 = vmatpush1.msra.mxu0 0.0
    %246 = vmatprep.subr.mxu0 0.0
    %247 = vmatpush1.msra.mxu0 0.0
    %248 = vmatprep.subr.mxu0 0.0
    %249 = vmatpush1.msra.mxu0 0.0
    %250 = vmatprep.subr.mxu0 0.0
    %251 = vmatpush1.msra.mxu0 0.0
    %252 = vmatprep.subr.mxu0 0.0
    %253 = vmatpush1.msra.mxu0 0.0
    %254 = vmatprep.subr.mxu0 0.0
    %255 = vmatpush1.msra.mxu0 0.0
    %256 = vmatprep.subr.mxu0 0.0
    %257 = vmatpush1.msra.mxu0 0.0
    %258 = vmatprep.subr.mxu0 0.0
    %259 = vmatpush1.msra.mxu0 0.0
    %260 = vmatprep.subr.mxu0 0.0
    %261 = vmatpush1.msra.mxu0 0.0
    %262 = vmatprep.subr.mxu0 0.0
    %263 = vmatpush1.msra.mxu0 0.0
    %264 = vmatprep.subr.mxu0 0.0
    %265 = vmatpush1.msra.mxu0 0.0
    %266 = vmatprep.mubr.f32.mxu0 0.0
    %267 = vmatmul.mubr.f32.gmra.mrb[0].mxu0 %v200
    %v268 = vpop.f32.mrb[0].mxu0
    %v269 = vadd.f32 0.0, %v268
    %v270 = vpop.f32.mrb[0].mxu0
    %271 = vdwg.mxu0
    %v272 = vld [vmem:[%s2] sm:$0xff]
    %v273 = vld [vmem:[%s2 + $0x8] sm:$0xff]
    %v274 = vld [vmem:[%s2 + $0x10] sm:$0xff]
    %v275 = vld [vmem:[%s2 + $0x18] sm:$0xff]
    %v276 = vld [vmem:[%s2 + $0x20] sm:$0xff]
    %v277 = vld [vmem:[%s2 + $0x28] sm:$0xff]
    %v278 = vld [vmem:[%s2 + $0x30] sm:$0x1]
    %v279 = vld [vmem:[%s2 + $0x31] sm:$0xff]
    %v280 = vld [vmem:[%s2 + $0x39] sm:$0xff]
    %v281 = vld [vmem:[%s2 + $0x41] sm:$0xff]
    %v282 = vld [vmem:[%s2 + $0x49] sm:$0xff]
    %v283 = vld [vmem:[%s2 + $0x51] sm:$0xff]
    %v284 = vld [vmem:[%s2 + $0x59] sm:$0xff]
    %v285 = vld [vmem:[%s2 + $0x61] sm:$0xff]
    %v286 = vld [vmem:[%s2 + $0x69] sm:$0xff]
    %v287 = vld [vmem:[%s2 + $0x71] sm:$0x1]
    %v288 = vld [vmem:[%s1] sm:$0xff]
    %v289 = vld [vmem:[%s1 + $0x8] sm:$0xff]
    %v290 = vld [vmem:[%s1 + $0x10] sm:$0xff]
    %v291 = vld [vmem:[%s1 + $0x18] sm:$0xff]
    %v292 = vld [vmem:[%s1 + $0x20] sm:$0xff]
    %v293 = vld [vmem:[%s1 + $0x28] sm:$0xff]
    %v294 = vld [vmem:[%s1 + $0x30] sm:$0xff]
    %v295 = vld [vmem:[%s1 + $0x38] sm:$0xff]
    %v296 = vlaneseq
    %v297 = vshrl.u32 %v296, 7
    %v298 = vsub.s32 0, %v297
    %v299 = vrot.slane %v278, %v298
    %v301 = vsel %vm187, %v288, 0
    %v304 = vsel %vm187, %v289, 0
    %v307 = vsel %vm187, %v290, 0
    %v310 = vsel %vm187, %v291, 0
    %v313 = vsel %vm187, %v292, 0
    %v316 = vsel %vm187, %v293, 0
    %v319 = vsel %vm187, %v294, 0
    %v322 = vsel %vm187, %v295, 0
    %324 = vmatprep.subr.mxu0 0.0
    %325 = vmatpush1.msra.mxu0 %v272
    %326 = vmatprep.subr.mxu0 0.0
    %327 = vmatpush1.msra.mxu0 %v273
    %328 = vmatprep.subr.mxu0 0.0
    %329 = vmatpush1.msra.mxu0 0.0
    %330 = vmatprep.subr.mxu0 0.0
    %331 = vmatpush1.msra.mxu0 0.0
    %332 = vmatprep.subr.mxu0 0.0
    %333 = vmatpush1.msra.mxu0 0.0
    %334 = vmatprep.subr.mxu0 0.0
    %335 = vmatpush1.msra.mxu0 0.0
    %336 = vmatprep.subr.mxu0 0.0
    %337 = vmatpush1.msra.mxu0 0.0
    %338 = vmatprep.subr.mxu0 0.0
    %339 = vmatpush1.msra.mxu0 0.0
    %340 = vmatprep.subr.mxu0 0.0
    %341 = vmatpush1.msra.mxu0 0.0
    %342 = vmatprep.subr.mxu0 0.0
    %343 = vmatpush1.msra.mxu0 0.0
    %344 = vmatprep.subr.mxu0 0.0
    %345 = vmatpush1.msra.mxu0 0.0
    %346 = vmatprep.subr.mxu0 0.0
    %347 = vmatpush1.msra.mxu0 0.0
    %348 = vmatprep.subr.mxu0 0.0
    %349 = vmatpush1.msra.mxu0 0.0
    %350 = vmatprep.subr.mxu0 0.0
    %351 = vmatpush1.msra.mxu0 0.0
    %352 = vmatprep.subr.mxu0 0.0
    %353 = vmatpush1.msra.mxu0 0.0
    %354 = vmatprep.subr.mxu0 0.0
    %355 = vmatpush1.msra.mxu0 0.0
    %356 = vmatprep.subr.mxu0 0.0
    %357 = vmatpush1.msra.mxu0 0.0
    %358 = vmatprep.subr.mxu0 0.0
    %359 = vmatpush1.msra.mxu0 0.0
    %360 = vmatprep.subr.mxu0 0.0
    %361 = vmatpush1.msra.mxu0 0.0
    %362 = vmatprep.subr.mxu0 0.0
    %363 = vmatpush1.msra.mxu0 0.0
    %364 = vmatprep.subr.mxu0 0.0
    %365 = vmatpush1.msra.mxu0 0.0
    %366 = vmatprep.subr.mxu0 0.0
    %367 = vmatpush1.msra.mxu0 0.0
    %368 = vmatprep.subr.mxu0 0.0
    %369 = vmatpush1.msra.mxu0 0.0
    %370 = vmatprep.subr.mxu0 0.0
    %371 = vmatpush1.msra.mxu0 0.0
    %372 = vmatprep.subr.mxu0 0.0
    %373 = vmatpush1.msra.mxu0 0.0
    %374 = vmatprep.subr.mxu0 0.0
    %375 = vmatpush1.msra.mxu0 0.0
    %376 = vmatprep.subr.mxu0 0.0
    %377 = vmatpush1.msra.mxu0 0.0
    %378 = vmatprep.subr.mxu0 0.0
    %379 = vmatpush1.msra.mxu0 0.0
    %380 = vmatprep.subr.mxu0 0.0
    %381 = vmatpush1.msra.mxu0 0.0
    %382 = vmatprep.subr.mxu0 0.0
    %383 = vmatpush1.msra.mxu0 0.0
    %384 = vmatprep.subr.mxu0 0.0
    %385 = vmatpush1.msra.mxu0 0.0
    %386 = vmatprep.subr.mxu0 0.0
    %387 = vmatpush1.msra.mxu0 0.0
    %388 = vmatprep.mubr.f32.mxu0 0.0
    %389 = vmatmul.mubr.f32.gmra.mrb[0].mxu0 %v301
    %v390 = vpop.f32.mrb[0].mxu0
    %v391 = vadd.f32 %v299, %v390
    %v392 = vpop.f32.mrb[0].mxu0
    %393 = vmatprep.mubr.f32.mxu0 0.0
    %394 = vmatmul.mubr.f32.gmra.mrb[0].mxu0 %v304
    %v395 = vpop.f32.mrb[0].mxu0
    %v396 = vadd.f32 %v299, %v395
    %v397 = vpop.f32.mrb[0].mxu0
    %398 = vmatprep.mubr.f32.mxu0 0.0
    %399 = vmatmul.mubr.f32.gmra.mrb[0].mxu0 %v307
    %v400 = vpop.f32.mrb[0].mxu0
    %v401 = vadd.f32 %v299, %v400
    %v402 = vpop.f32.mrb[0].mxu0
    %403 = vmatprep.mubr.f32.mxu0 0.0
    %404 = vmatmul.mubr.f32.gmra.mrb[0].mxu0 %v310
    %v405 = vpop.f32.mrb[0].mxu0
    %v406 = vadd.f32 %v299, %v405
    %v407 = vpop.f32.mrb[0].mxu0
    %408 = vmatprep.mubr.f32.mxu0 0.0
    %409 = vmatmul.mubr.f32.gmra.mrb[0].mxu0 %v313
    %v410 = vpop.f32.mrb[0].mxu0
    %v411 = vadd.f32 %v299, %v410
    %v412 = vpop.f32.mrb[0].mxu0
    %413 = vmatprep.mubr.f32.mxu0 0.0
    %414 = vmatmul.mubr.f32.gmra.mrb[0].mxu0 %v316
    %v415 = vpop.f32.mrb[0].mxu0
    %v416 = vadd.f32 %v299, %v415
    %v417 = vpop.f32.mrb[0].mxu0
    %418 = vmatprep.mubr.f32.mxu0 0.0
    %419 = vmatmul.mubr.f32.gmra.mrb[0].mxu0 %v319
    %v420 = vpop.f32.mrb[0].mxu0
    %v421 = vadd.f32 %v299, %v420
    %v422 = vpop.f32.mrb[0].mxu0
    %423 = vmatprep.mubr.f32.mxu0 0.0
    %424 = vmatmul.mubr.f32.gmra.mrb[0].mxu0 %v322
    %v425 = vpop.f32.mrb[0].mxu0
    %v426 = vadd.f32 %v299, %v425
    %v427 = vpop.f32.mrb[0].mxu0
    %428 = vdwg.mxu0
    %v429 = vlaneseq
    %v430 = vshrl.u32 %v429, 7
    %v431 = vsub.s32 0, %v430
    %v432 = vrot.slane %v287, %v431
    %v434 = vsel %vm35, 0.0, 0
    %436 = vmatprep.subr.mxu0 0.0
    %437 = vmatpush1.msra.mxu0 %v274
    %438 = vmatprep.subr.mxu0 0.0
    %439 = vmatpush1.msra.mxu0 %v275
    %440 = vmatprep.subr.mxu0 0.0
    %441 = vmatpush1.msra.mxu0 %v276
    %442 = vmatprep.subr.mxu0 0.0
    %443 = vmatpush1.msra.mxu0 %v277
    %444 = vmatprep.subr.mxu0 0.0
    %445 = vmatpush1.msra.mxu0 0.0
    %446 = vmatprep.subr.mxu0 0.0
    %447 = vmatpush1.msra.mxu0 0.0
    %448 = vmatprep.subr.mxu0 0.0
    %449 = vmatpush1.msra.mxu0 0.0
    %450 = vmatprep.subr.mxu0 0.0
    %451 = vmatpush1.msra.mxu0 0.0
    %452 = vmatprep.subr.mxu0 0.0
    %453 = vmatpush1.msra.mxu0 0.0
    %454 = vmatprep.subr.mxu0 0.0
    %455 = vmatpush1.msra.mxu0 0.0
    %456 = vmatprep.subr.mxu0 0.0
    %457 = vmatpush1.msra.mxu0 0.0
    %458 = vmatprep.subr.mxu0 0.0
    %459 = vmatpush1.msra.mxu0 0.0
    %460 = vmatprep.subr.mxu0 0.0
    %461 = vmatpush1.msra.mxu0 0.0
    %462 = vmatprep.subr.mxu0 0.0
    %463 = vmatpush1.msra.mxu0 0.0
    %464 = vmatprep.subr.mxu0 0.0
    %465 = vmatpush1.msra.mxu0 0.0
    %466 = vmatprep.subr.mxu0 0.0
    %467 = vmatpush1.msra.mxu0 0.0
    %468 = vmatprep.subr.mxu0 0.0
    %469 = vmatpush1.msra.mxu0 0.0
    %470 = vmatprep.subr.mxu0 0.0
    %471 = vmatpush1.msra.mxu0 0.0
    %472 = vmatprep.subr.mxu0 0.0
    %473 = vmatpush1.msra.mxu0 0.0
    %474 = vmatprep.subr.mxu0 0.0
    %475 = vmatpush1.msra.mxu0 0.0
    %476 = vmatprep.subr.mxu0 0.0
    %477 = vmatpush1.msra.mxu0 0.0
    %478 = vmatprep.subr.mxu0 0.0
    %479 = vmatpush1.msra.mxu0 0.0
    %480 = vmatprep.subr.mxu0 0.0
    %481 = vmatpush1.msra.mxu0 0.0
    %482 = vmatprep.subr.mxu0 0.0
    %483 = vmatpush1.msra.mxu0 0.0
    %484 = vmatprep.subr.mxu0 0.0
    %485 = vmatpush1.msra.mxu0 0.0
    %486 = vmatprep.subr.mxu0 0.0
    %487 = vmatpush1.msra.mxu0 0.0
    %488 = vmatprep.subr.mxu0 0.0
    %489 = vmatpush1.msra.mxu0 0.0
    %490 = vmatprep.subr.mxu0 0.0
    %491 = vmatpush1.msra.mxu0 0.0
    %492 = vmatprep.subr.mxu0 0.0
    %493 = vmatpush1.msra.mxu0 0.0
    %494 = vmatprep.subr.mxu0 0.0
    %495 = vmatpush1.msra.mxu0 0.0
    %496 = vmatprep.subr.mxu0 0.0
    %497 = vmatpush1.msra.mxu0 0.0
    %498 = vmatprep.subr.mxu0 0.0
    %499 = vmatpush1.msra.mxu0 0.0
    %500 = vmatprep.mubr.f32.mxu0 0.0
    %501 = vmatmul.mubr.f32.gmra.mrb[0].mxu0 %v434
    %v502 = vpop.f32.mrb[0].mxu0
    %v503 = vadd.f32 0.0, %v502
    %v504 = vpop.f32.mrb[0].mxu0
    %505 = vdwg.mxu0
    %v507 = vrot.slane %v503, 1
    %v508 = vrot.slane %v503, 2
    %v509 = vrot.slane %v503, 3
    %v510 = vrot.slane %v503, 4
    %v511 = vrot.slane %v503, 5
    %v512 = vrot.slane %v503, 6
    %v513 = vrot.slane %v503, 7
    %v522 = vadd.f32 %v391, %v503
    %v523 = vadd.f32 %v396, %v507
    %v524 = vadd.f32 %v401, %v508
    %v525 = vadd.f32 %v406, %v509
    %v526 = vadd.f32 %v411, %v510
    %v527 = vadd.f32 %v416, %v511
    %v528 = vadd.f32 %v421, %v512
    %v529 = vadd.f32 %v426, %v513
    %v530 = vmul.f32 %v522, 0.5
    %v531 = vmul.f32 %v523, 0.5
    %v532 = vmul.f32 %v524, 0.5
    %v533 = vmul.f32 %v525, 0.5
    %v534 = vmul.f32 %v526, 0.5
    %v535 = vmul.f32 %v527, 0.5
    %v536 = vmul.f32 %v528, 0.5
    %v537 = vmul.f32 %v529, 0.5
    %v538 = vtanh.pop %v530
    %v539 = vtanh.pop %v531
    %v540 = vtanh.pop %v532
    %v541 = vtanh.pop %v533
    %v542 = vtanh.pop %v534
    %v543 = vtanh.pop %v535
    %v544 = vtanh.pop %v536
    %v545 = vtanh.pop %v537
    %v546 = vadd.f32 %v538, 1.0
    %v547 = vadd.f32 %v539, 1.0
    %v548 = vadd.f32 %v540, 1.0
    %v549 = vadd.f32 %v541, 1.0
    %v550 = vadd.f32 %v542, 1.0
    %v551 = vadd.f32 %v543, 1.0
    %v552 = vadd.f32 %v544, 1.0
    %v553 = vadd.f32 %v545, 1.0
    %v554 = vmul.f32 %v546, 0.5
    %v555 = vmul.f32 %v547, 0.5
    %v556 = vmul.f32 %v548, 0.5
    %v557 = vmul.f32 %v549, 0.5
    %v558 = vmul.f32 %v550, 0.5
    %v559 = vmul.f32 %v551, 0.5
    %v560 = vmul.f32 %v552, 0.5
    %v561 = vmul.f32 %v553, 0.5
    %v562 = vtanh.pop %v522
    %v563 = vtanh.pop %v523
    %v564 = vtanh.pop %v524
    %v565 = vtanh.pop %v525
    %v566 = vtanh.pop %v526
    %v567 = vtanh.pop %v527
    %v568 = vtanh.pop %v528
    %v569 = vtanh.pop %v529
    %v570 = vmul.f32 %v554, 0.0
    %v571 = vmul.f32 %v555, 0.0
    %v572 = vmul.f32 %v556, 0.0
    %v573 = vmul.f32 %v557, 0.0
    %v574 = vmul.f32 %v558, 0.0
    %v575 = vmul.f32 %v559, 0.0
    %v576 = vmul.f32 %v560, 0.0
    %v577 = vmul.f32 %v561, 0.0
    %586 = vrot.lane.b32.xlu0 %v562, 64
    %v587 = vpop.permute.xlu0 %586
    %588 = vrot.lane.b32.xlu0 %v563, 64
    %v589 = vpop.permute.xlu0 %588
    %590 = vrot.lane.b32.xlu0 %v564, 64
    %v591 = vpop.permute.xlu0 %590
    %592 = vrot.lane.b32.xlu0 %v565, 64
    %v593 = vpop.permute.xlu0 %592
    %594 = vrot.lane.b32.xlu0 %v566, 64
    %v595 = vpop.permute.xlu0 %594
    %596 = vrot.lane.b32.xlu0 %v567, 64
    %v597 = vpop.permute.xlu0 %596
    %598 = vrot.lane.b32.xlu0 %v568, 64
    %v599 = vpop.permute.xlu0 %598
    %600 = vrot.lane.b32.xlu0 %v569, 64
    %v601 = vpop.permute.xlu0 %600
    %v610 = vmul.f32 %v554, %v587
    %v611 = vmul.f32 %v555, %v589
    %v612 = vmul.f32 %v556, %v591
    %v613 = vmul.f32 %v557, %v593
    %v614 = vmul.f32 %v558, %v595
    %v615 = vmul.f32 %v559, %v597
    %v616 = vmul.f32 %v560, %v599
    %v617 = vmul.f32 %v561, %v601
    %626 = vrot.lane.b32.xlu0 %v610, 32
    %v627 = vpop.permute.xlu0 %626
    %628 = vrot.lane.b32.xlu0 %v611, 32
    %v629 = vpop.permute.xlu0 %628
    %630 = vrot.lane.b32.xlu0 %v612, 32
    %v631 = vpop.permute.xlu0 %630
    %632 = vrot.lane.b32.xlu0 %v613, 32
    %v633 = vpop.permute.xlu0 %632
    %634 = vrot.lane.b32.xlu0 %v614, 32
    %v635 = vpop.permute.xlu0 %634
    %636 = vrot.lane.b32.xlu0 %v615, 32
    %v637 = vpop.permute.xlu0 %636
    %638 = vrot.lane.b32.xlu0 %v616, 32
    %v639 = vpop.permute.xlu0 %638
    %640 = vrot.lane.b32.xlu0 %v617, 32
    %v641 = vpop.permute.xlu0 %640
    %v650 = vadd.f32 %v570, %v627
    %v651 = vadd.f32 %v571, %v629
    %v652 = vadd.f32 %v572, %v631
    %v653 = vadd.f32 %v573, %v633
    %v654 = vadd.f32 %v574, %v635
    %v655 = vadd.f32 %v575, %v637
    %v656 = vadd.f32 %v576, %v639
    %v657 = vadd.f32 %v577, %v641
    %v658 = vtanh.pop %v650
    %v659 = vtanh.pop %v651
    %v660 = vtanh.pop %v652
    %v661 = vtanh.pop %v653
    %v662 = vtanh.pop %v654
    %v663 = vtanh.pop %v655
    %v664 = vtanh.pop %v656
    %v665 = vtanh.pop %v657
    %674 = vrot.lane.b32.xlu0 %v658, 64
    %v675 = vpop.permute.xlu0 %674
    %676 = vrot.lane.b32.xlu0 %v659, 64
    %v677 = vpop.permute.xlu0 %676
    %678 = vrot.lane.b32.xlu0 %v660, 64
    %v679 = vpop.permute.xlu0 %678
    %680 = vrot.lane.b32.xlu0 %v661, 64
    %v681 = vpop.permute.xlu0 %680
    %682 = vrot.lane.b32.xlu0 %v662, 64
    %v683 = vpop.permute.xlu0 %682
    %684 = vrot.lane.b32.xlu0 %v663, 64
    %v685 = vpop.permute.xlu0 %684
    %686 = vrot.lane.b32.xlu0 %v664, 64
    %v687 = vpop.permute.xlu0 %686
    %688 = vrot.lane.b32.xlu0 %v665, 64
    %v689 = vpop.permute.xlu0 %688
    %v698 = vmul.f32 %v554, %v675
    %v699 = vmul.f32 %v555, %v677
    %v700 = vmul.f32 %v556, %v679
    %v701 = vmul.f32 %v557, %v681
    %v702 = vmul.f32 %v558, %v683
    %v703 = vmul.f32 %v559, %v685
    %v704 = vmul.f32 %v560, %v687
    %v705 = vmul.f32 %v561, %v689
    %v714 = vrot.slane %v699, 7
    %vm715 = vcmask 1041409
    %v716 = vsel %vm715, %v714, %v698
    %v717 = vrot.slane %v700, 6
    %vm718 = vcmask 1042434
    %v719 = vsel %vm718, %v717, %v716
    %v720 = vrot.slane %v701, 5
    %vm721 = vcmask 1043459
    %v722 = vsel %vm721, %v720, %v719
    %v723 = vrot.slane %v702, 4
    %vm724 = vcmask 1044484
    %v725 = vsel %vm724, %v723, %v722
    %v726 = vrot.slane %v703, 3
    %vm727 = vcmask 1045509
    %v728 = vsel %vm727, %v726, %v725
    %v729 = vrot.slane %v704, 2
    %vm730 = vcmask 1046534
    %v731 = vsel %vm730, %v729, %v728
    %v732 = vrot.slane %v705, 1
    %vm733 = vcmask 1047559
    %v734 = vsel %vm733, %v732, %v731
    %735 = vrot.lane.b32.xlu0 %v734, 32
    %v736 = vpop.permute.xlu0 %735
    %v738 = vsel %vm35, %v736, 0.0
    %vm739 = vcmask 523264
    %v741 = vsel %vm739, %v738, 0
    %743 = vmatprep.subr.mxu0 0.0
    %744 = vmatpush1.msra.mxu0 %v279
    %745 = vmatprep.subr.mxu0 0.0
    %746 = vmatpush1.msra.mxu0 %v280
    %747 = vmatprep.subr.mxu0 0.0
    %748 = vmatpush1.msra.mxu0 %v281
    %749 = vmatprep.subr.mxu0 0.0
    %750 = vmatpush1.msra.mxu0 %v282
    %751 = vmatprep.subr.mxu0 0.0
    %752 = vmatpush1.msra.mxu0 %v283
    %753 = vmatprep.subr.mxu0 0.0
    %754 = vmatpush1.msra.mxu0 %v284
    %755 = vmatprep.subr.mxu0 0.0
    %756 = vmatpush1.msra.mxu0 %v285
    %757 = vmatprep.subr.mxu0 0.0
    %758 = vmatpush1.msra.mxu0 %v286
    %759 = vmatprep.subr.mxu0 0.0
    %760 = vmatpush1.msra.mxu0 0.0
    %761 = vmatprep.subr.mxu0 0.0
    %762 = vmatpush1.msra.mxu0 0.0
    %763 = vmatprep.subr.mxu0 0.0
    %764 = vmatpush1.msra.mxu0 0.0
    %765 = vmatprep.subr.mxu0 0.0
    %766 = vmatpush1.msra.mxu0 0.0
    %767 = vmatprep.subr.mxu0 0.0
    %768 = vmatpush1.msra.mxu0 0.0
    %769 = vmatprep.subr.mxu0 0.0
    %770 = vmatpush1.msra.mxu0 0.0
    %771 = vmatprep.subr.mxu0 0.0
    %772 = vmatpush1.msra.mxu0 0.0
    %773 = vmatprep.subr.mxu0 0.0
    %774 = vmatpush1.msra.mxu0 0.0
    %775 = vmatprep.subr.mxu0 0.0
    %776 = vmatpush1.msra.mxu0 0.0
    %777 = vmatprep.subr.mxu0 0.0
    %778 = vmatpush1.msra.mxu0 0.0
    %779 = vmatprep.subr.mxu0 0.0
    %780 = vmatpush1.msra.mxu0 0.0
    %781 = vmatprep.subr.mxu0 0.0
    %782 = vmatpush1.msra.mxu0 0.0
    %783 = vmatprep.subr.mxu0 0.0
    %784 = vmatpush1.msra.mxu0 0.0
    %785 = vmatprep.subr.mxu0 0.0
    %786 = vmatpush1.msra.mxu0 0.0
    %787 = vmatprep.subr.mxu0 0.0
    %788 = vmatpush1.msra.mxu0 0.0
    %789 = vmatprep.subr.mxu0 0.0
    %790 = vmatpush1.msra.mxu0 0.0
    %791 = vmatprep.subr.mxu0 0.0
    %792 = vmatpush1.msra.mxu0 0.0
    %793 = vmatprep.subr.mxu0 0.0
    %794 = vmatpush1.msra.mxu0 0.0
    %795 = vmatprep.subr.mxu0 0.0
    %796 = vmatpush1.msra.mxu0 0.0
    %797 = vmatprep.subr.mxu0 0.0
    %798 = vmatpush1.msra.mxu0 0.0
    %799 = vmatprep.subr.mxu0 0.0
    %800 = vmatpush1.msra.mxu0 0.0
    %801 = vmatprep.subr.mxu0 0.0
    %802 = vmatpush1.msra.mxu0 0.0
    %803 = vmatprep.subr.mxu0 0.0
    %804 = vmatpush1.msra.mxu0 0.0
    %805 = vmatprep.subr.mxu0 0.0
    %806 = vmatpush1.msra.mxu0 0.0
    %807 = vmatprep.mubr.f32.mxu0 0.0
    %808 = vmatmul.mubr.f32.gmra.mrb[0].mxu0 %v741
    %v809 = vpop.f32.mrb[0].mxu0
    %v810 = vadd.f32 %v432, %v809
    %v811 = vpop.f32.mrb[0].mxu0
    %812 = vdwg.mxu0
    %v813 = vmul.f32 %v810, 0.5
    %v814 = vtanh.pop %v813
    %v815 = vadd.f32 %v814, 1.0
    %v816 = vmul.f32 %v815, 0.5
    %v817 = vtanh.pop %v810
    %v818 = vmul.f32 %v816, 0.0
    %820 = vrot.lane.b32.xlu0 %v817, 64
    %v821 = vpop.permute.xlu0 %820
    %v823 = vmul.f32 %v816, %v821
    %825 = vrot.lane.b32.xlu0 %v823, 32
    %v826 = vpop.permute.xlu0 %825
    %v828 = vadd.f32 %v818, %v826
    %v829 = vtanh.pop %v828
    %831 = vrot.lane.b32.xlu0 %v829, 64
    %v832 = vpop.permute.xlu0 %831
    %v834 = vmul.f32 %v816, %v832
    %v835 = vsel %vm35, %v736, 0
    %837 = vmatprep.subr.mxu0 0.0
    %838 = vmatpush1.msra.mxu0 %v274
    %839 = vmatprep.subr.mxu0 0.0
    %840 = vmatpush1.msra.mxu0 %v275
    %841 = vmatprep.subr.mxu0 0.0
    %842 = vmatpush1.msra.mxu0 %v276
    %843 = vmatprep.subr.mxu0 0.0
    %844 = vmatpush1.msra.mxu0 %v277
    %845 = vmatprep.subr.mxu0 0.0
    %846 = vmatpush1.msra.mxu0 0.0
    %847 = vmatprep.subr.mxu0 0.0
    %848 = vmatpush1.msra.mxu0 0.0
    %849 = vmatprep.subr.mxu0 0.0
    %850 = vmatpush1.msra.mxu0 0.0
    %851 = vmatprep.subr.mxu0 0.0
    %852 = vmatpush1.msra.mxu0 0.0
    %853 = vmatprep.subr.mxu0 0.0
    %854 = vmatpush1.msra.mxu0 0.0
    %855 = vmatprep.subr.mxu0 0.0
    %856 = vmatpush1.msra.mxu0 0.0
    %857 = vmatprep.subr.mxu0 0.0
    %858 = vmatpush1.msra.mxu0 0.0
    %859 = vmatprep.subr.mxu0 0.0
    %860 = vmatpush1.msra.mxu0 0.0
    %861 = vmatprep.subr.mxu0 0.0
    %862 = vmatpush1.msra.mxu0 0.0
    %863 = vmatprep.subr.mxu0 0.0
    %864 = vmatpush1.msra.mxu0 0.0
    %865 = vmatprep.subr.mxu0 0.0
    %866 = vmatpush1.msra.mxu0 0.0
    %867 = vmatprep.subr.mxu0 0.0
    %868 = vmatpush1.msra.mxu0 0.0
    %869 = vmatprep.subr.mxu0 0.0
    %870 = vmatpush1.msra.mxu0 0.0
    %871 = vmatprep.subr.mxu0 0.0
    %872 = vmatpush1.msra.mxu0 0.0
    %873 = vmatprep.subr.mxu0 0.0
    %874 = vmatpush1.msra.mxu0 0.0
    %875 = vmatprep.subr.mxu0 0.0
    %876 = vmatpush1.msra.mxu0 0.0
    %877 = vmatprep.subr.mxu0 0.0
    %878 = vmatpush1.msra.mxu0 0.0
    %879 = vmatprep.subr.mxu0 0.0
    %880 = vmatpush1.msra.mxu0 0.0
    %881 = vmatprep.subr.mxu0 0.0
    %882 = vmatpush1.msra.mxu0 0.0
    %883 = vmatprep.subr.mxu0 0.0
    %884 = vmatpush1.msra.mxu0 0.0
    %885 = vmatprep.subr.mxu0 0.0
    %886 = vmatpush1.msra.mxu0 0.0
    %887 = vmatprep.subr.mxu0 0.0
    %888 = vmatpush1.msra.mxu0 0.0
    %889 = vmatprep.subr.mxu0 0.0
    %890 = vmatpush1.msra.mxu0 0.0
    %891 = vmatprep.subr.mxu0 0.0
    %892 = vmatpush1.msra.mxu0 0.0
    %893 = vmatprep.subr.mxu0 0.0
    %894 = vmatpush1.msra.mxu0 0.0
    %895 = vmatprep.subr.mxu0 0.0
    %896 = vmatpush1.msra.mxu0 0.0
    %897 = vmatprep.subr.mxu0 0.0
    %898 = vmatpush1.msra.mxu0 0.0
    %899 = vmatprep.subr.mxu0 0.0
    %900 = vmatpush1.msra.mxu0 0.0
    %901 = vmatprep.mubr.f32.mxu0 0.0
    %902 = vmatmul.mubr.f32.gmra.mrb[0].mxu0 %v835
    %v903 = vpop.f32.mrb[0].mxu0
    %v904 = vadd.f32 0.0, %v903
    %v905 = vpop.f32.mrb[0].mxu0
    %906 = vdwg.mxu0
    %v908 = vrot.slane %v904, 7
    %v909 = vrot.slane %v904, 1
    %v910 = vrot.slane %v904, 2
    %v911 = vrot.slane %v904, 3
    %v912 = vrot.slane %v904, 4
    %v913 = vrot.slane %v904, 5
    %v914 = vrot.slane %v904, 6
    %v923 = vadd.f32 %v391, %v908
    %v924 = vadd.f32 %v396, %v904
    %v925 = vadd.f32 %v401, %v909
    %v926 = vadd.f32 %v406, %v910
    %v927 = vadd.f32 %v411, %v911
    %v928 = vadd.f32 %v416, %v912
    %v929 = vadd.f32 %v421, %v913
    %v930 = vadd.f32 %v426, %v914
    %v931 = vmul.f32 %v923, 0.5
    %v932 = vmul.f32 %v924, 0.5
    %v933 = vmul.f32 %v925, 0.5
    %v934 = vmul.f32 %v926, 0.5
    %v935 = vmul.f32 %v927, 0.5
    %v936 = vmul.f32 %v928, 0.5
    %v937 = vmul.f32 %v929, 0.5
    %v938 = vmul.f32 %v930, 0.5
    %v939 = vtanh.pop %v931
    %v940 = vtanh.pop %v932
    %v941 = vtanh.pop %v933
    %v942 = vtanh.pop %v934
    %v943 = vtanh.pop %v935
    %v944 = vtanh.pop %v936
    %v945 = vtanh.pop %v937
    %v946 = vtanh.pop %v938
    %v947 = vadd.f32 %v939, 1.0
    %v948 = vadd.f32 %v940, 1.0
    %v949 = vadd.f32 %v941, 1.0
    %v950 = vadd.f32 %v942, 1.0
    %v951 = vadd.f32 %v943, 1.0
    %v952 = vadd.f32 %v944, 1.0
    %v953 = vadd.f32 %v945, 1.0
    %v954 = vadd.f32 %v946, 1.0
    %v955 = vmul.f32 %v947, 0.5
    %v956 = vmul.f32 %v948, 0.5
    %v957 = vmul.f32 %v949, 0.5
    %v958 = vmul.f32 %v950, 0.5
    %v959 = vmul.f32 %v951, 0.5
    %v960 = vmul.f32 %v952, 0.5
    %v961 = vmul.f32 %v953, 0.5
    %v962 = vmul.f32 %v954, 0.5
    %v963 = vtanh.pop %v923
    %v964 = vtanh.pop %v924
    %v965 = vtanh.pop %v925
    %v966 = vtanh.pop %v926
    %v967 = vtanh.pop %v927
    %v968 = vtanh.pop %v928
    %v969 = vtanh.pop %v929
    %v970 = vtanh.pop %v930
    %v979 = vrot.slane %v650, 7
    %v980 = vrot.slane %v651, 7
    %v981 = vrot.slane %v652, 7
    %v982 = vrot.slane %v653, 7
    %v983 = vrot.slane %v654, 7
    %v984 = vrot.slane %v655, 7
    %v985 = vrot.slane %v656, 7
    %v986 = vrot.slane %v657, 7
    %v995 = vmul.f32 %v955, %v979
    %v996 = vmul.f32 %v956, %v980
    %v997 = vmul.f32 %v957, %v981
    %v998 = vmul.f32 %v958, %v982
    %v999 = vmul.f32 %v959, %v983
    %v1000 = vmul.f32 %v960, %v984
    %v1001 = vmul.f32 %v961, %v985
    %v1002 = vmul.f32 %v962, %v986
    %1011 = vrot.lane.b32.xlu0 %v963, 64
    %v1012 = vpop.permute.xlu0 %1011
    %1013 = vrot.lane.b32.xlu0 %v964, 64
    %v1014 = vpop.permute.xlu0 %1013
    %1015 = vrot.lane.b32.xlu0 %v965, 64
    %v1016 = vpop.permute.xlu0 %1015
    %1017 = vrot.lane.b32.xlu0 %v966, 64
    %v1018 = vpop.permute.xlu0 %1017
    %1019 = vrot.lane.b32.xlu0 %v967, 64
    %v1020 = vpop.permute.xlu0 %1019
    %1021 = vrot.lane.b32.xlu0 %v968, 64
    %v1022 = vpop.permute.xlu0 %1021
    %1023 = vrot.lane.b32.xlu0 %v969, 64
    %v1024 = vpop.permute.xlu0 %1023
    %1025 = vrot.lane.b32.xlu0 %v970, 64
    %v1026 = vpop.permute.xlu0 %1025
    %v1035 = vmul.f32 %v955, %v1012
    %v1036 = vmul.f32 %v956, %v1014
    %v1037 = vmul.f32 %v957, %v1016
    %v1038 = vmul.f32 %v958, %v1018
    %v1039 = vmul.f32 %v959, %v1020
    %v1040 = vmul.f32 %v960, %v1022
    %v1041 = vmul.f32 %v961, %v1024
    %v1042 = vmul.f32 %v962, %v1026
    %1051 = vrot.lane.b32.xlu0 %v1035, 32
    %v1052 = vpop.permute.xlu0 %1051
    %1053 = vrot.lane.b32.xlu0 %v1036, 32
    %v1054 = vpop.permute.xlu0 %1053
    %1055 = vrot.lane.b32.xlu0 %v1037, 32
    %v1056 = vpop.permute.xlu0 %1055
    %1057 = vrot.lane.b32.xlu0 %v1038, 32
    %v1058 = vpop.permute.xlu0 %1057
    %1059 = vrot.lane.b32.xlu0 %v1039, 32
    %v1060 = vpop.permute.xlu0 %1059
    %1061 = vrot.lane.b32.xlu0 %v1040, 32
    %v1062 = vpop.permute.xlu0 %1061
    %1063 = vrot.lane.b32.xlu0 %v1041, 32
    %v1064 = vpop.permute.xlu0 %1063
    %1065 = vrot.lane.b32.xlu0 %v1042, 32
    %v1066 = vpop.permute.xlu0 %1065
    %v1075 = vadd.f32 %v995, %v1052
    %v1076 = vadd.f32 %v996, %v1054
    %v1077 = vadd.f32 %v997, %v1056
    %v1078 = vadd.f32 %v998, %v1058
    %v1079 = vadd.f32 %v999, %v1060
    %v1080 = vadd.f32 %v1000, %v1062
    %v1081 = vadd.f32 %v1001, %v1064
    %v1082 = vadd.f32 %v1002, %v1066
    %v1083 = vtanh.pop %v1075
    %v1084 = vtanh.pop %v1076
    %v1085 = vtanh.pop %v1077
    %v1086 = vtanh.pop %v1078
    %v1087 = vtanh.pop %v1079
    %v1088 = vtanh.pop %v1080
    %v1089 = vtanh.pop %v1081
    %v1090 = vtanh.pop %v1082
    %1099 = vrot.lane.b32.xlu0 %v1083, 64
    %v1100 = vpop.permute.xlu0 %1099
    %1101 = vrot.lane.b32.xlu0 %v1084, 64
    %v1102 = vpop.permute.xlu0 %1101
    %1103 = vrot.lane.b32.xlu0 %v1085, 64
    %v1104 = vpop.permute.xlu0 %1103
    %1105 = vrot.lane.b32.xlu0 %v1086, 64
    %v1106 = vpop.permute.xlu0 %1105
    %1107 = vrot.lane.b32.xlu0 %v1087, 64
    %v1108 = vpop.permute.xlu0 %1107
    %1109 = vrot.lane.b32.xlu0 %v1088, 64
    %v1110 = vpop.permute.xlu0 %1109
    %1111 = vrot.lane.b32.xlu0 %v1089, 64
    %v1112 = vpop.permute.xlu0 %1111
    %1113 = vrot.lane.b32.xlu0 %v1090, 64
    %v1114 = vpop.permute.xlu0 %1113
    %v1123 = vmul.f32 %v955, %v1100
    %v1124 = vmul.f32 %v956, %v1102
    %v1125 = vmul.f32 %v957, %v1104
    %v1126 = vmul.f32 %v958, %v1106
    %v1127 = vmul.f32 %v959, %v1108
    %v1128 = vmul.f32 %v960, %v1110
    %v1129 = vmul.f32 %v961, %v1112
    %v1130 = vmul.f32 %v962, %v1114
    %v1139 = vrot.slane %v1124, 7
    %v1140 = vsel %vm718, %v1139, %v1123
    %v1141 = vrot.slane %v1125, 6
    %v1142 = vsel %vm721, %v1141, %v1140
    %v1143 = vrot.slane %v1126, 5
    %v1144 = vsel %vm724, %v1143, %v1142
    %v1145 = vrot.slane %v1127, 4
    %v1146 = vsel %vm727, %v1145, %v1144
    %v1147 = vrot.slane %v1128, 3
    %v1148 = vsel %vm730, %v1147, %v1146
    %v1149 = vrot.slane %v1129, 2
    %v1150 = vsel %vm733, %v1149, %v1148
    %v1151 = vrot.slane %v1130, 1
    %1152 = vrot.lane.b32.xlu0 %v1150, 32
    %v1153 = vpop.permute.xlu0 %1152
    %1154 = vrot.lane.b32.xlu0 %v1151, 32
    %v1155 = vpop.permute.xlu0 %1154
    %v1159 = vrot.slane %v834, 7
    %1160 = vrot.lane.b32.xlu0 %v1159, 64
    %v1161 = vpop.permute.xlu0 %1160
    %v1163 = vsel %vm35, %v1153, %v1161
    %v1164 = vsel %vm35, %v1155, %v1161
    %vm1167 = vcmask 1046528
    %v1168 = vrot.slane %v1163, 1
    %v1169 = vrot.slane %v1164, 1
    %v1170 = vsel %vm1167, %v1168, %v1169
    %v1171 = vsel %vm739, %v1170, 0
    %1173 = vmatprep.subr.mxu0 0.0
    %1174 = vmatpush1.msra.mxu0 %v279
    %1175 = vmatprep.subr.mxu0 0.0
    %1176 = vmatpush1.msra.mxu0 %v280
    %1177 = vmatprep.subr.mxu0 0.0
    %1178 = vmatpush1.msra.mxu0 %v281
    %1179 = vmatprep.subr.mxu0 0.0
    %1180 = vmatpush1.msra.mxu0 %v282
    %1181 = vmatprep.subr.mxu0 0.0
    %1182 = vmatpush1.msra.mxu0 %v283
    %1183 = vmatprep.subr.mxu0 0.0
    %1184 = vmatpush1.msra.mxu0 %v284
    %1185 = vmatprep.subr.mxu0 0.0
    %1186 = vmatpush1.msra.mxu0 %v285
    %1187 = vmatprep.subr.mxu0 0.0
    %1188 = vmatpush1.msra.mxu0 %v286
    %1189 = vmatprep.subr.mxu0 0.0
    %1190 = vmatpush1.msra.mxu0 0.0
    %1191 = vmatprep.subr.mxu0 0.0
    %1192 = vmatpush1.msra.mxu0 0.0
    %1193 = vmatprep.subr.mxu0 0.0
    %1194 = vmatpush1.msra.mxu0 0.0
    %1195 = vmatprep.subr.mxu0 0.0
    %1196 = vmatpush1.msra.mxu0 0.0
    %1197 = vmatprep.subr.mxu0 0.0
    %1198 = vmatpush1.msra.mxu0 0.0
    %1199 = vmatprep.subr.mxu0 0.0
    %1200 = vmatpush1.msra.mxu0 0.0
    %1201 = vmatprep.subr.mxu0 0.0
    %1202 = vmatpush1.msra.mxu0 0.0
    %1203 = vmatprep.subr.mxu0 0.0
    %1204 = vmatpush1.msra.mxu0 0.0
    %1205 = vmatprep.subr.mxu0 0.0
    %1206 = vmatpush1.msra.mxu0 0.0
    %1207 = vmatprep.subr.mxu0 0.0
    %1208 = vmatpush1.msra.mxu0 0.0
    %1209 = vmatprep.subr.mxu0 0.0
    %1210 = vmatpush1.msra.mxu0 0.0
    %1211 = vmatprep.subr.mxu0 0.0
    %1212 = vmatpush1.msra.mxu0 0.0
    %1213 = vmatprep.subr.mxu0 0.0
    %1214 = vmatpush1.msra.mxu0 0.0
    %1215 = vmatprep.subr.mxu0 0.0
    %1216 = vmatpush1.msra.mxu0 0.0
    %1217 = vmatprep.subr.mxu0 0.0
    %1218 = vmatpush1.msra.mxu0 0.0
    %1219 = vmatprep.subr.mxu0 0.0
    %1220 = vmatpush1.msra.mxu0 0.0
    %1221 = vmatprep.subr.mxu0 0.0
    %1222 = vmatpush1.msra.mxu0 0.0
    %1223 = vmatprep.subr.mxu0 0.0
    %1224 = vmatpush1.msra.mxu0 0.0
    %1225 = vmatprep.subr.mxu0 0.0
    %1226 = vmatpush1.msra.mxu0 0.0
    %1227 = vmatprep.subr.mxu0 0.0
    %1228 = vmatpush1.msra.mxu0 0.0
    %1229 = vmatprep.subr.mxu0 0.0
    %1230 = vmatpush1.msra.mxu0 0.0
    %1231 = vmatprep.subr.mxu0 0.0
    %1232 = vmatpush1.msra.mxu0 0.0
    %1233 = vmatprep.subr.mxu0 0.0
    %1234 = vmatpush1.msra.mxu0 0.0
    %1235 = vmatprep.subr.mxu0 0.0
    %1236 = vmatpush1.msra.mxu0 0.0
    %1237 = vmatprep.mubr.f32.mxu0 0.0
    %1238 = vmatmul.mubr.f32.gmra.mrb[0].mxu0 %v1171
    %v1239 = vpop.f32.mrb[0].mxu0
    %v1240 = vadd.f32 %v432, %v1239
    %v1241 = vpop.f32.mrb[0].mxu0
    %1242 = vdwg.mxu0
    %v1243 = vmul.f32 %v1240, 0.5
    %v1244 = vtanh.pop %v1243
    %v1245 = vadd.f32 %v1244, 1.0
    %v1246 = vmul.f32 %v1245, 0.5
    %v1247 = vtanh.pop %v1240
    %v1248 = vmul.f32 %v1246, %v828
    %1250 = vrot.lane.b32.xlu0 %v1247, 64
    %v1251 = vpop.permute.xlu0 %1250
    %v1253 = vmul.f32 %v1246, %v1251
    %1255 = vrot.lane.b32.xlu0 %v1253, 32
    %v1256 = vpop.permute.xlu0 %1255
    %v1258 = vadd.f32 %v1248, %v1256
    %v1259 = vtanh.pop %v1258
    %1261 = vrot.lane.b32.xlu0 %v1259, 64
    %v1262 = vpop.permute.xlu0 %1261
    %v1264 = vmul.f32 %v1246, %v1262
    %v1265 = vrot.slane %v1123, 1
    %v1266 = vsel %vm715, %v1124, %v1265
    %v1267 = vrot.slane %v1125, 7
    %v1268 = vsel %vm718, %v1267, %v1266
    %v1269 = vrot.slane %v1126, 6
    %v1270 = vsel %vm721, %v1269, %v1268
    %v1271 = vrot.slane %v1127, 5
    %v1272 = vsel %vm724, %v1271, %v1270
    %v1273 = vrot.slane %v1128, 4
    %v1274 = vsel %vm727, %v1273, %v1272
    %v1275 = vrot.slane %v1129, 3
    %v1276 = vsel %vm730, %v1275, %v1274
    %v1277 = vrot.slane %v1130, 2
    %v1278 = vsel %vm733, %v1277, %v1276
    %1279 = vrot.lane.b32.xlu0 %v1278, 32
    %v1280 = vpop.permute.xlu0 %1279
    %v1281 = vsel %vm35, %v1280, 0
    %1283 = vmatprep.subr.mxu0 0.0
    %1284 = vmatpush1.msra.mxu0 %v274
    %1285 = vmatprep.subr.mxu0 0.0
    %1286 = vmatpush1.msra.mxu0 %v275
    %1287 = vmatprep.subr.mxu0 0.0
    %1288 = vmatpush1.msra.mxu0 %v276
    %1289 = vmatprep.subr.mxu0 0.0
    %1290 = vmatpush1.msra.mxu0 %v277
    %1291 = vmatprep.subr.mxu0 0.0
    %1292 = vmatpush1.msra.mxu0 0.0
    %1293 = vmatprep.subr.mxu0 0.0
    %1294 = vmatpush1.msra.mxu0 0.0
    %1295 = vmatprep.subr.mxu0 0.0
    %1296 = vmatpush1.msra.mxu0 0.0
    %1297 = vmatprep.subr.mxu0 0.0
    %1298 = vmatpush1.msra.mxu0 0.0
    %1299 = vmatprep.subr.mxu0 0.0
    %1300 = vmatpush1.msra.mxu0 0.0
    %1301 = vmatprep.subr.mxu0 0.0
    %1302 = vmatpush1.msra.mxu0 0.0
    %1303 = vmatprep.subr.mxu0 0.0
    %1304 = vmatpush1.msra.mxu0 0.0
    %1305 = vmatprep.subr.mxu0 0.0
    %1306 = vmatpush1.msra.mxu0 0.0
    %1307 = vmatprep.subr.mxu0 0.0
    %1308 = vmatpush1.msra.mxu0 0.0
    %1309 = vmatprep.subr.mxu0 0.0
    %1310 = vmatpush1.msra.mxu0 0.0
    %1311 = vmatprep.subr.mxu0 0.0
    %1312 = vmatpush1.msra.mxu0 0.0
    %1313 = vmatprep.subr.mxu0 0.0
    %1314 = vmatpush1.msra.mxu0 0.0
    %1315 = vmatprep.subr.mxu0 0.0
    %1316 = vmatpush1.msra.mxu0 0.0
    %1317 = vmatprep.subr.mxu0 0.0
    %1318 = vmatpush1.msra.mxu0 0.0
    %1319 = vmatprep.subr.mxu0 0.0
    %1320 = vmatpush1.msra.mxu0 0.0
    %1321 = vmatprep.subr.mxu0 0.0
    %1322 = vmatpush1.msra.mxu0 0.0
    %1323 = vmatprep.subr.mxu0 0.0
    %1324 = vmatpush1.msra.mxu0 0.0
    %1325 = vmatprep.subr.mxu0 0.0
    %1326 = vmatpush1.msra.mxu0 0.0
    %1327 = vmatprep.subr.mxu0 0.0
    %1328 = vmatpush1.msra.mxu0 0.0
    %1329 = vmatprep.subr.mxu0 0.0
    %1330 = vmatpush1.msra.mxu0 0.0
    %1331 = vmatprep.subr.mxu0 0.0
    %1332 = vmatpush1.msra.mxu0 0.0
    %1333 = vmatprep.subr.mxu0 0.0
    %1334 = vmatpush1.msra.mxu0 0.0
    %1335 = vmatprep.subr.mxu0 0.0
    %1336 = vmatpush1.msra.mxu0 0.0
    %1337 = vmatprep.subr.mxu0 0.0
    %1338 = vmatpush1.msra.mxu0 0.0
    %1339 = vmatprep.subr.mxu0 0.0
    %1340 = vmatpush1.msra.mxu0 0.0
    %1341 = vmatprep.subr.mxu0 0.0
    %1342 = vmatpush1.msra.mxu0 0.0
    %1343 = vmatprep.subr.mxu0 0.0
    %1344 = vmatpush1.msra.mxu0 0.0
    %1345 = vmatprep.subr.mxu0 0.0
    %1346 = vmatpush1.msra.mxu0 0.0
    %1347 = vmatprep.mubr.f32.mxu0 0.0
    %1348 = vmatmul.mubr.f32.gmra.mrb[0].mxu0 %v1281
    %v1349 = vpop.f32.mrb[0].mxu0
    %v1350 = vadd.f32 0.0, %v1349
    %v1351 = vpop.f32.mrb[0].mxu0
    %1352 = vdwg.mxu0
    %v1354 = vrot.slane %v1350, 6
    %v1355 = vrot.slane %v1350, 7
    %v1356 = vrot.slane %v1350, 1
    %v1357 = vrot.slane %v1350, 2
    %v1358 = vrot.slane %v1350, 3
    %v1359 = vrot.slane %v1350, 4
    %v1360 = vrot.slane %v1350, 5
    %v1369 = vadd.f32 %v391, %v1354
    %v1370 = vadd.f32 %v396, %v1355
    %v1371 = vadd.f32 %v401, %v1350
    %v1372 = vadd.f32 %v406, %v1356
    %v1373 = vadd.f32 %v411, %v1357
    %v1374 = vadd.f32 %v416, %v1358
    %v1375 = vadd.f32 %v421, %v1359
    %v1376 = vadd.f32 %v426, %v1360
    %v1377 = vmul.f32 %v1369, 0.5
    %v1378 = vmul.f32 %v1370, 0.5
    %v1379 = vmul.f32 %v1371, 0.5
    %v1380 = vmul.f32 %v1372, 0.5
    %v1381 = vmul.f32 %v1373, 0.5
    %v1382 = vmul.f32 %v1374, 0.5
    %v1383 = vmul.f32 %v1375, 0.5
    %v1384 = vmul.f32 %v1376, 0.5
    %v1385 = vtanh.pop %v1377
    %v1386 = vtanh.pop %v1378
    %v1387 = vtanh.pop %v1379
    %v1388 = vtanh.pop %v1380
    %v1389 = vtanh.pop %v1381
    %v1390 = vtanh.pop %v1382
    %v1391 = vtanh.pop %v1383
    %v1392 = vtanh.pop %v1384
    %v1393 = vadd.f32 %v1385, 1.0
    %v1394 = vadd.f32 %v1386, 1.0
    %v1395 = vadd.f32 %v1387, 1.0
    %v1396 = vadd.f32 %v1388, 1.0
    %v1397 = vadd.f32 %v1389, 1.0
    %v1398 = vadd.f32 %v1390, 1.0
    %v1399 = vadd.f32 %v1391, 1.0
    %v1400 = vadd.f32 %v1392, 1.0
    %v1401 = vmul.f32 %v1393, 0.5
    %v1402 = vmul.f32 %v1394, 0.5
    %v1403 = vmul.f32 %v1395, 0.5
    %v1404 = vmul.f32 %v1396, 0.5
    %v1405 = vmul.f32 %v1397, 0.5
    %v1406 = vmul.f32 %v1398, 0.5
    %v1407 = vmul.f32 %v1399, 0.5
    %v1408 = vmul.f32 %v1400, 0.5
    %v1409 = vtanh.pop %v1369
    %v1410 = vtanh.pop %v1370
    %v1411 = vtanh.pop %v1371
    %v1412 = vtanh.pop %v1372
    %v1413 = vtanh.pop %v1373
    %v1414 = vtanh.pop %v1374
    %v1415 = vtanh.pop %v1375
    %v1416 = vtanh.pop %v1376
    %v1425 = vrot.slane %v1075, 7
    %v1426 = vrot.slane %v1076, 7
    %v1427 = vrot.slane %v1077, 7
    %v1428 = vrot.slane %v1078, 7
    %v1429 = vrot.slane %v1079, 7
    %v1430 = vrot.slane %v1080, 7
    %v1431 = vrot.slane %v1081, 7
    %v1432 = vrot.slane %v1082, 7
    %v1441 = vmul.f32 %v1401, %v1425
    %v1442 = vmul.f32 %v1402, %v1426
    %v1443 = vmul.f32 %v1403, %v1427
    %v1444 = vmul.f32 %v1404, %v1428
    %v1445 = vmul.f32 %v1405, %v1429
    %v1446 = vmul.f32 %v1406, %v1430
    %v1447 = vmul.f32 %v1407, %v1431
    %v1448 = vmul.f32 %v1408, %v1432
    %1457 = vrot.lane.b32.xlu0 %v1409, 64
    %v1458 = vpop.permute.xlu0 %1457
    %1459 = vrot.lane.b32.xlu0 %v1410, 64
    %v1460 = vpop.permute.xlu0 %1459
    %1461 = vrot.lane.b32.xlu0 %v1411, 64
    %v1462 = vpop.permute.xlu0 %1461
    %1463 = vrot.lane.b32.xlu0 %v1412, 64
    %v1464 = vpop.permute.xlu0 %1463
    %1465 = vrot.lane.b32.xlu0 %v1413, 64
    %v1466 = vpop.permute.xlu0 %1465
    %1467 = vrot.lane.b32.xlu0 %v1414, 64
    %v1468 = vpop.permute.xlu0 %1467
    %1469 = vrot.lane.b32.xlu0 %v1415, 64
    %v1470 = vpop.permute.xlu0 %1469
    %1471 = vrot.lane.b32.xlu0 %v1416, 64
    %v1472 = vpop.permute.xlu0 %1471
    %v1481 = vmul.f32 %v1401, %v1458
    %v1482 = vmul.f32 %v1402, %v1460
    %v1483 = vmul.f32 %v1403, %v1462
    %v1484 = vmul.f32 %v1404, %v1464
    %v1485 = vmul.f32 %v1405, %v1466
    %v1486 = vmul.f32 %v1406, %v1468
    %v1487 = vmul.f32 %v1407, %v1470
    %v1488 = vmul.f32 %v1408, %v1472
    %1497 = vrot.lane.b32.xlu0 %v1481, 32
    %v1498 = vpop.permute.xlu0 %1497
    %1499 = vrot.lane.b32.xlu0 %v1482, 32
    %v1500 = vpop.permute.xlu0 %1499
    %1501 = vrot.lane.b32.xlu0 %v1483, 32
    %v1502 = vpop.permute.xlu0 %1501
    %1503 = vrot.lane.b32.xlu0 %v1484, 32
    %v1504 = vpop.permute.xlu0 %1503
    %1505 = vrot.lane.b32.xlu0 %v1485, 32
    %v1506 = vpop.permute.xlu0 %1505
    %1507 = vrot.lane.b32.xlu0 %v1486, 32
    %v1508 = vpop.permute.xlu0 %1507
    %1509 = vrot.lane.b32.xlu0 %v1487, 32
    %v1510 = vpop.permute.xlu0 %1509
    %1511 = vrot.lane.b32.xlu0 %v1488, 32
    %v1512 = vpop.permute.xlu0 %1511
    %v1521 = vadd.f32 %v1441, %v1498
    %v1522 = vadd.f32 %v1442, %v1500
    %v1523 = vadd.f32 %v1443, %v1502
    %v1524 = vadd.f32 %v1444, %v1504
    %v1525 = vadd.f32 %v1445, %v1506
    %v1526 = vadd.f32 %v1446, %v1508
    %v1527 = vadd.f32 %v1447, %v1510
    %v1528 = vadd.f32 %v1448, %v1512
    %v1529 = vtanh.pop %v1521
    %v1530 = vtanh.pop %v1522
    %v1531 = vtanh.pop %v1523
    %v1532 = vtanh.pop %v1524
    %v1533 = vtanh.pop %v1525
    %v1534 = vtanh.pop %v1526
    %v1535 = vtanh.pop %v1527
    %v1536 = vtanh.pop %v1528
    %1545 = vrot.lane.b32.xlu0 %v1529, 64
    %v1546 = vpop.permute.xlu0 %1545
    %1547 = vrot.lane.b32.xlu0 %v1530, 64
    %v1548 = vpop.permute.xlu0 %1547
    %1549 = vrot.lane.b32.xlu0 %v1531, 64
    %v1550 = vpop.permute.xlu0 %1549
    %1551 = vrot.lane.b32.xlu0 %v1532, 64
    %v1552 = vpop.permute.xlu0 %1551
    %1553 = vrot.lane.b32.xlu0 %v1533, 64
    %v1554 = vpop.permute.xlu0 %1553
    %1555 = vrot.lane.b32.xlu0 %v1534, 64
    %v1556 = vpop.permute.xlu0 %1555
    %1557 = vrot.lane.b32.xlu0 %v1535, 64
    %v1558 = vpop.permute.xlu0 %1557
    %1559 = vrot.lane.b32.xlu0 %v1536, 64
    %v1560 = vpop.permute.xlu0 %1559
    %v1569 = vmul.f32 %v1401, %v1546
    %v1570 = vmul.f32 %v1402, %v1548
    %v1571 = vmul.f32 %v1403, %v1550
    %v1572 = vmul.f32 %v1404, %v1552
    %v1573 = vmul.f32 %v1405, %v1554
    %v1574 = vmul.f32 %v1406, %v1556
    %v1575 = vmul.f32 %v1407, %v1558
    %v1576 = vmul.f32 %v1408, %v1560
    %v1585 = vrot.slane %v1570, 7
    %v1586 = vsel %vm721, %v1585, %v1569
    %v1587 = vrot.slane %v1571, 6
    %v1588 = vsel %vm724, %v1587, %v1586
    %v1589 = vrot.slane %v1572, 5
    %v1590 = vsel %vm727, %v1589, %v1588
    %v1591 = vrot.slane %v1573, 4
    %v1592 = vsel %vm730, %v1591, %v1590
    %v1593 = vrot.slane %v1574, 3
    %v1594 = vsel %vm733, %v1593, %v1592
    %v1595 = vrot.slane %v1575, 2
    %v1596 = vrot.slane %v1576, 1
    %v1597 = vsel %vm715, %v1596, %v1595
    %1598 = vrot.lane.b32.xlu0 %v1594, 32
    %v1599 = vpop.permute.xlu0 %1598
    %1600 = vrot.lane.b32.xlu0 %v1597, 32
    %v1601 = vpop.permute.xlu0 %1600
    %v1605 = vrot.slane %v1264, 6
    %1606 = vrot.lane.b32.xlu0 %v1605, 64
    %v1607 = vpop.permute.xlu0 %1606
    %v1609 = vsel %vm35, %v1599, %v1607
    %v1610 = vsel %vm35, %v1601, %v1607
    %vm1613 = vcmask 1045504
    %v1614 = vrot.slane %v1609, 2
    %v1615 = vrot.slane %v1610, 2
    %v1616 = vsel %vm1613, %v1614, %v1615
    %v1617 = vsel %vm739, %v1616, 0
    %1619 = vmatprep.subr.mxu0 0.0
    %1620 = vmatpush1.msra.mxu0 %v279
    %1621 = vmatprep.subr.mxu0 0.0
    %1622 = vmatpush1.msra.mxu0 %v280
    %1623 = vmatprep.subr.mxu0 0.0
    %1624 = vmatpush1.msra.mxu0 %v281
    %1625 = vmatprep.subr.mxu0 0.0
    %1626 = vmatpush1.msra.mxu0 %v282
    %1627 = vmatprep.subr.mxu0 0.0
    %1628 = vmatpush1.msra.mxu0 %v283
    %1629 = vmatprep.subr.mxu0 0.0
    %1630 = vmatpush1.msra.mxu0 %v284
    %1631 = vmatprep.subr.mxu0 0.0
    %1632 = vmatpush1.msra.mxu0 %v285
    %1633 = vmatprep.subr.mxu0 0.0
    %1634 = vmatpush1.msra.mxu0 %v286
    %1635 = vmatprep.subr.mxu0 0.0
    %1636 = vmatpush1.msra.mxu0 0.0
    %1637 = vmatprep.subr.mxu0 0.0
    %1638 = vmatpush1.msra.mxu0 0.0
    %1639 = vmatprep.subr.mxu0 0.0
    %1640 = vmatpush1.msra.mxu0 0.0
    %1641 = vmatprep.subr.mxu0 0.0
    %1642 = vmatpush1.msra.mxu0 0.0
    %1643 = vmatprep.subr.mxu0 0.0
    %1644 = vmatpush1.msra.mxu0 0.0
    %1645 = vmatprep.subr.mxu0 0.0
    %1646 = vmatpush1.msra.mxu0 0.0
    %1647 = vmatprep.subr.mxu0 0.0
    %1648 = vmatpush1.msra.mxu0 0.0
    %1649 = vmatprep.subr.mxu0 0.0
    %1650 = vmatpush1.msra.mxu0 0.0
    %1651 = vmatprep.subr.mxu0 0.0
    %1652 = vmatpush1.msra.mxu0 0.0
    %1653 = vmatprep.subr.mxu0 0.0
    %1654 = vmatpush1.msra.mxu0 0.0
    %1655 = vmatprep.subr.mxu0 0.0
    %1656 = vmatpush1.msra.mxu0 0.0
    %1657 = vmatprep.subr.mxu0 0.0
    %1658 = vmatpush1.msra.mxu0 0.0
    %1659 = vmatprep.subr.mxu0 0.0
    %1660 = vmatpush1.msra.mxu0 0.0
    %1661 = vmatprep.subr.mxu0 0.0
    %1662 = vmatpush1.msra.mxu0 0.0
    %1663 = vmatprep.subr.mxu0 0.0
    %1664 = vmatpush1.msra.mxu0 0.0
    %1665 = vmatprep.subr.mxu0 0.0
    %1666 = vmatpush1.msra.mxu0 0.0
    %1667 = vmatprep.subr.mxu0 0.0
    %1668 = vmatpush1.msra.mxu0 0.0
    %1669 = vmatprep.subr.mxu0 0.0
    %1670 = vmatpush1.msra.mxu0 0.0
    %1671 = vmatprep.subr.mxu0 0.0
    %1672 = vmatpush1.msra.mxu0 0.0
    %1673 = vmatprep.subr.mxu0 0.0
    %1674 = vmatpush1.msra.mxu0 0.0
    %1675 = vmatprep.subr.mxu0 0.0
    %1676 = vmatpush1.msra.mxu0 0.0
    %1677 = vmatprep.subr.mxu0 0.0
    %1678 = vmatpush1.msra.mxu0 0.0
    %1679 = vmatprep.subr.mxu0 0.0
    %1680 = vmatpush1.msra.mxu0 0.0
    %1681 = vmatprep.subr.mxu0 0.0
    %1682 = vmatpush1.msra.mxu0 0.0
    %1683 = vmatprep.mubr.f32.mxu0 0.0
    %1684 = vmatmul.mubr.f32.gmra.mrb[0].mxu0 %v1617
    %v1685 = vpop.f32.mrb[0].mxu0
    %v1686 = vadd.f32 %v432, %v1685
    %v1687 = vpop.f32.mrb[0].mxu0
    %1688 = vdwg.mxu0
    %v1689 = vmul.f32 %v1686, 0.5
    %v1690 = vtanh.pop %v1689
    %v1691 = vadd.f32 %v1690, 1.0
    %v1692 = vmul.f32 %v1691, 0.5
    %v1693 = vtanh.pop %v1686
    %v1694 = vmul.f32 %v1692, %v1258
    %1696 = vrot.lane.b32.xlu0 %v1693, 64
    %v1697 = vpop.permute.xlu0 %1696
    %v1699 = vmul.f32 %v1692, %v1697
    %1701 = vrot.lane.b32.xlu0 %v1699, 32
    %v1702 = vpop.permute.xlu0 %1701
    %v1704 = vadd.f32 %v1694, %v1702
    %v1705 = vtanh.pop %v1704
    %1707 = vrot.lane.b32.xlu0 %v1705, 64
    %v1708 = vpop.permute.xlu0 %1707
    %v1710 = vmul.f32 %v1692, %v1708
    %v1711 = vrot.slane %v1569, 2
    %v1712 = vrot.slane %v1570, 1
    %v1713 = vsel %vm715, %v1712, %v1711
    %v1714 = vsel %vm718, %v1571, %v1713
    %v1715 = vrot.slane %v1572, 7
    %v1716 = vsel %vm721, %v1715, %v1714
    %v1717 = vrot.slane %v1573, 6
    %v1718 = vsel %vm724, %v1717, %v1716
    %v1719 = vrot.slane %v1574, 5
    %v1720 = vsel %vm727, %v1719, %v1718
    %v1721 = vrot.slane %v1575, 4
    %v1722 = vsel %vm730, %v1721, %v1720
    %v1723 = vrot.slane %v1576, 3
    %v1724 = vsel %vm733, %v1723, %v1722
    %1725 = vrot.lane.b32.xlu0 %v1724, 32
    %v1726 = vpop.permute.xlu0 %1725
    %v1727 = vsel %vm35, %v1726, 0
    %1729 = vmatprep.subr.mxu0 0.0
    %1730 = vmatpush1.msra.mxu0 %v274
    %1731 = vmatprep.subr.mxu0 0.0
    %1732 = vmatpush1.msra.mxu0 %v275
    %1733 = vmatprep.subr.mxu0 0.0
    %1734 = vmatpush1.msra.mxu0 %v276
    %1735 = vmatprep.subr.mxu0 0.0
    %1736 = vmatpush1.msra.mxu0 %v277
    %1737 = vmatprep.subr.mxu0 0.0
    %1738 = vmatpush1.msra.mxu0 0.0
    %1739 = vmatprep.subr.mxu0 0.0
    %1740 = vmatpush1.msra.mxu0 0.0
    %1741 = vmatprep.subr.mxu0 0.0
    %1742 = vmatpush1.msra.mxu0 0.0
    %1743 = vmatprep.subr.mxu0 0.0
    %1744 = vmatpush1.msra.mxu0 0.0
    %1745 = vmatprep.subr.mxu0 0.0
    %1746 = vmatpush1.msra.mxu0 0.0
    %1747 = vmatprep.subr.mxu0 0.0
    %1748 = vmatpush1.msra.mxu0 0.0
    %1749 = vmatprep.subr.mxu0 0.0
    %1750 = vmatpush1.msra.mxu0 0.0
    %1751 = vmatprep.subr.mxu0 0.0
    %1752 = vmatpush1.msra.mxu0 0.0
    %1753 = vmatprep.subr.mxu0 0.0
    %1754 = vmatpush1.msra.mxu0 0.0
    %1755 = vmatprep.subr.mxu0 0.0
    %1756 = vmatpush1.msra.mxu0 0.0
    %1757 = vmatprep.subr.mxu0 0.0
    %1758 = vmatpush1.msra.mxu0 0.0
    %1759 = vmatprep.subr.mxu0 0.0
    %1760 = vmatpush1.msra.mxu0 0.0
    %1761 = vmatprep.subr.mxu0 0.0
    %1762 = vmatpush1.msra.mxu0 0.0
    %1763 = vmatprep.subr.mxu0 0.0
    %1764 = vmatpush1.msra.mxu0 0.0
    %1765 = vmatprep.subr.mxu0 0.0
    %1766 = vmatpush1.msra.mxu0 0.0
    %1767 = vmatprep.subr.mxu0 0.0
    %1768 = vmatpush1.msra.mxu0 0.0
    %1769 = vmatprep.subr.mxu0 0.0
    %1770 = vmatpush1.msra.mxu0 0.0
    %1771 = vmatprep.subr.mxu0 0.0
    %1772 = vmatpush1.msra.mxu0 0.0
    %1773 = vmatprep.subr.mxu0 0.0
    %1774 = vmatpush1.msra.mxu0 0.0
    %1775 = vmatprep.subr.mxu0 0.0
    %1776 = vmatpush1.msra.mxu0 0.0
    %1777 = vmatprep.subr.mxu0 0.0
    %1778 = vmatpush1.msra.mxu0 0.0
    %1779 = vmatprep.subr.mxu0 0.0
    %1780 = vmatpush1.msra.mxu0 0.0
    %1781 = vmatprep.subr.mxu0 0.0
    %1782 = vmatpush1.msra.mxu0 0.0
    %1783 = vmatprep.subr.mxu0 0.0
    %1784 = vmatpush1.msra.mxu0 0.0
    %1785 = vmatprep.subr.mxu0 0.0
    %1786 = vmatpush1.msra.mxu0 0.0
    %1787 = vmatprep.subr.mxu0 0.0
    %1788 = vmatpush1.msra.mxu0 0.0
    %1789 = vmatprep.subr.mxu0 0.0
    %1790 = vmatpush1.msra.mxu0 0.0
    %1791 = vmatprep.subr.mxu0 0.0
    %1792 = vmatpush1.msra.mxu0 0.0
    %1793 = vmatprep.mubr.f32.mxu0 0.0
    %1794 = vmatmul.mubr.f32.gmra.mrb[0].mxu0 %v1727
    %v1795 = vpop.f32.mrb[0].mxu0
    %v1796 = vadd.f32 0.0, %v1795
    %v1797 = vpop.f32.mrb[0].mxu0
    %1798 = vdwg.mxu0
    %v1800 = vrot.slane %v1796, 5
    %v1801 = vrot.slane %v1796, 6
    %v1802 = vrot.slane %v1796, 7
    %v1803 = vrot.slane %v1796, 1
    %v1804 = vrot.slane %v1796, 2
    %v1805 = vrot.slane %v1796, 3
    %v1806 = vrot.slane %v1796, 4
    %v1815 = vadd.f32 %v391, %v1800
    %v1816 = vadd.f32 %v396, %v1801
    %v1817 = vadd.f32 %v401, %v1802
    %v1818 = vadd.f32 %v406, %v1796
    %v1819 = vadd.f32 %v411, %v1803
    %v1820 = vadd.f32 %v416, %v1804
    %v1821 = vadd.f32 %v421, %v1805
    %v1822 = vadd.f32 %v426, %v1806
    %v1823 = vmul.f32 %v1815, 0.5
    %v1824 = vmul.f32 %v1816, 0.5
    %v1825 = vmul.f32 %v1817, 0.5
    %v1826 = vmul.f32 %v1818, 0.5
    %v1827 = vmul.f32 %v1819, 0.5
    %v1828 = vmul.f32 %v1820, 0.5
    %v1829 = vmul.f32 %v1821, 0.5
    %v1830 = vmul.f32 %v1822, 0.5
    %v1831 = vtanh.pop %v1823
    %v1832 = vtanh.pop %v1824
    %v1833 = vtanh.pop %v1825
    %v1834 = vtanh.pop %v1826
    %v1835 = vtanh.pop %v1827
    %v1836 = vtanh.pop %v1828
    %v1837 = vtanh.pop %v1829
    %v1838 = vtanh.pop %v1830
    %v1839 = vadd.f32 %v1831, 1.0
    %v1840 = vadd.f32 %v1832, 1.0
    %v1841 = vadd.f32 %v1833, 1.0
    %v1842 = vadd.f32 %v1834, 1.0
    %v1843 = vadd.f32 %v1835, 1.0
    %v1844 = vadd.f32 %v1836, 1.0
    %v1845 = vadd.f32 %v1837, 1.0
    %v1846 = vadd.f32 %v1838, 1.0
    %v1847 = vmul.f32 %v1839, 0.5
    %v1848 = vmul.f32 %v1840, 0.5
    %v1849 = vmul.f32 %v1841, 0.5
    %v1850 = vmul.f32 %v1842, 0.5
    %v1851 = vmul.f32 %v1843, 0.5
    %v1852 = vmul.f32 %v1844, 0.5
    %v1853 = vmul.f32 %v1845, 0.5
    %v1854 = vmul.f32 %v1846, 0.5
    %v1855 = vtanh.pop %v1815
    %v1856 = vtanh.pop %v1816
    %v1857 = vtanh.pop %v1817
    %v1858 = vtanh.pop %v1818
    %v1859 = vtanh.pop %v1819
    %v1860 = vtanh.pop %v1820
    %v1861 = vtanh.pop %v1821
    %v1862 = vtanh.pop %v1822
    %v1871 = vrot.slane %v1521, 7
    %v1872 = vrot.slane %v1522, 7
    %v1873 = vrot.slane %v1523, 7
    %v1874 = vrot.slane %v1524, 7
    %v1875 = vrot.slane %v1525, 7
    %v1876 = vrot.slane %v1526, 7
    %v1877 = vrot.slane %v1527, 7
    %v1878 = vrot.slane %v1528, 7
    %v1887 = vmul.f32 %v1847, %v1871
    %v1888 = vmul.f32 %v1848, %v1872
    %v1889 = vmul.f32 %v1849, %v1873
    %v1890 = vmul.f32 %v1850, %v1874
    %v1891 = vmul.f32 %v1851, %v1875
    %v1892 = vmul.f32 %v1852, %v1876
    %v1893 = vmul.f32 %v1853, %v1877
    %v1894 = vmul.f32 %v1854, %v1878
    %1903 = vrot.lane.b32.xlu0 %v1855, 64
    %v1904 = vpop.permute.xlu0 %1903
    %1905 = vrot.lane.b32.xlu0 %v1856, 64
    %v1906 = vpop.permute.xlu0 %1905
    %1907 = vrot.lane.b32.xlu0 %v1857, 64
    %v1908 = vpop.permute.xlu0 %1907
    %1909 = vrot.lane.b32.xlu0 %v1858, 64
    %v1910 = vpop.permute.xlu0 %1909
    %1911 = vrot.lane.b32.xlu0 %v1859, 64
    %v1912 = vpop.permute.xlu0 %1911
    %1913 = vrot.lane.b32.xlu0 %v1860, 64
    %v1914 = vpop.permute.xlu0 %1913
    %1915 = vrot.lane.b32.xlu0 %v1861, 64
    %v1916 = vpop.permute.xlu0 %1915
    %1917 = vrot.lane.b32.xlu0 %v1862, 64
    %v1918 = vpop.permute.xlu0 %1917
    %v1927 = vmul.f32 %v1847, %v1904
    %v1928 = vmul.f32 %v1848, %v1906
    %v1929 = vmul.f32 %v1849, %v1908
    %v1930 = vmul.f32 %v1850, %v1910
    %v1931 = vmul.f32 %v1851, %v1912
    %v1932 = vmul.f32 %v1852, %v1914
    %v1933 = vmul.f32 %v1853, %v1916
    %v1934 = vmul.f32 %v1854, %v1918
    %1943 = vrot.lane.b32.xlu0 %v1927, 32
    %v1944 = vpop.permute.xlu0 %1943
    %1945 = vrot.lane.b32.xlu0 %v1928, 32
    %v1946 = vpop.permute.xlu0 %1945
    %1947 = vrot.lane.b32.xlu0 %v1929, 32
    %v1948 = vpop.permute.xlu0 %1947
    %1949 = vrot.lane.b32.xlu0 %v1930, 32
    %v1950 = vpop.permute.xlu0 %1949
    %1951 = vrot.lane.b32.xlu0 %v1931, 32
    %v1952 = vpop.permute.xlu0 %1951
    %1953 = vrot.lane.b32.xlu0 %v1932, 32
    %v1954 = vpop.permute.xlu0 %1953
    %1955 = vrot.lane.b32.xlu0 %v1933, 32
    %v1956 = vpop.permute.xlu0 %1955
    %1957 = vrot.lane.b32.xlu0 %v1934, 32
    %v1958 = vpop.permute.xlu0 %1957
    %v1967 = vadd.f32 %v1887, %v1944
    %v1968 = vadd.f32 %v1888, %v1946
    %v1969 = vadd.f32 %v1889, %v1948
    %v1970 = vadd.f32 %v1890, %v1950
    %v1971 = vadd.f32 %v1891, %v1952
    %v1972 = vadd.f32 %v1892, %v1954
    %v1973 = vadd.f32 %v1893, %v1956
    %v1974 = vadd.f32 %v1894, %v1958
    %v1975 = vtanh.pop %v1967
    %v1976 = vtanh.pop %v1968
    %v1977 = vtanh.pop %v1969
    %v1978 = vtanh.pop %v1970
    %v1979 = vtanh.pop %v1971
    %v1980 = vtanh.pop %v1972
    %v1981 = vtanh.pop %v1973
    %v1982 = vtanh.pop %v1974
    %1991 = vrot.lane.b32.xlu0 %v1975, 64
    %v1992 = vpop.permute.xlu0 %1991
    %1993 = vrot.lane.b32.xlu0 %v1976, 64
    %v1994 = vpop.permute.xlu0 %1993
    %1995 = vrot.lane.b32.xlu0 %v1977, 64
    %v1996 = vpop.permute.xlu0 %1995
    %1997 = vrot.lane.b32.xlu0 %v1978, 64
    %v1998 = vpop.permute.xlu0 %1997
    %1999 = vrot.lane.b32.xlu0 %v1979, 64
    %v2000 = vpop.permute.xlu0 %1999
    %2001 = vrot.lane.b32.xlu0 %v1980, 64
    %v2002 = vpop.permute.xlu0 %2001
    %2003 = vrot.lane.b32.xlu0 %v1981, 64
    %v2004 = vpop.permute.xlu0 %2003
    %2005 = vrot.lane.b32.xlu0 %v1982, 64
    %v2006 = vpop.permute.xlu0 %2005
    %v2015 = vmul.f32 %v1847, %v1992
    %v2016 = vmul.f32 %v1848, %v1994
    %v2017 = vmul.f32 %v1849, %v1996
    %v2018 = vmul.f32 %v1850, %v1998
    %v2019 = vmul.f32 %v1851, %v2000
    %v2020 = vmul.f32 %v1852, %v2002
    %v2021 = vmul.f32 %v1853, %v2004
    %v2022 = vmul.f32 %v1854, %v2006
    %v2031 = vrot.slane %v2016, 7
    %v2032 = vsel %vm724, %v2031, %v2015
    %v2033 = vrot.slane %v2017, 6
    %v2034 = vsel %vm727, %v2033, %v2032
    %v2035 = vrot.slane %v2018, 5
    %v2036 = vsel %vm730, %v2035, %v2034
    %v2037 = vrot.slane %v2019, 4
    %v2038 = vsel %vm733, %v2037, %v2036
    %v2039 = vrot.slane %v2020, 3
    %v2040 = vrot.slane %v2021, 2
    %v2041 = vsel %vm715, %v2040, %v2039
    %v2042 = vrot.slane %v2022, 1
    %v2043 = vsel %vm718, %v2042, %v2041
    %2044 = vrot.lane.b32.xlu0 %v2038, 32
    %v2045 = vpop.permute.xlu0 %2044
    %2046 = vrot.lane.b32.xlu0 %v2043, 32
    %v2047 = vpop.permute.xlu0 %2046
    %v2051 = vrot.slane %v1710, 5
    %2052 = vrot.lane.b32.xlu0 %v2051, 64
    %v2053 = vpop.permute.xlu0 %2052
    %v2055 = vsel %vm35, %v2045, %v2053
    %v2056 = vsel %vm35, %v2047, %v2053
    %vm2059 = vcmask 1044480
    %v2060 = vrot.slane %v2055, 3
    %v2061 = vrot.slane %v2056, 3
    %v2062 = vsel %vm2059, %v2060, %v2061
    %v2063 = vsel %vm739, %v2062, 0
    %2065 = vmatprep.subr.mxu0 0.0
    %2066 = vmatpush1.msra.mxu0 %v279
    %2067 = vmatprep.subr.mxu0 0.0
    %2068 = vmatpush1.msra.mxu0 %v280
    %2069 = vmatprep.subr.mxu0 0.0
    %2070 = vmatpush1.msra.mxu0 %v281
    %2071 = vmatprep.subr.mxu0 0.0
    %2072 = vmatpush1.msra.mxu0 %v282
    %2073 = vmatprep.subr.mxu0 0.0
    %2074 = vmatpush1.msra.mxu0 %v283
    %2075 = vmatprep.subr.mxu0 0.0
    %2076 = vmatpush1.msra.mxu0 %v284
    %2077 = vmatprep.subr.mxu0 0.0
    %2078 = vmatpush1.msra.mxu0 %v285
    %2079 = vmatprep.subr.mxu0 0.0
    %2080 = vmatpush1.msra.mxu0 %v286
    %2081 = vmatprep.subr.mxu0 0.0
    %2082 = vmatpush1.msra.mxu0 0.0
    %2083 = vmatprep.subr.mxu0 0.0
    %2084 = vmatpush1.msra.mxu0 0.0
    %2085 = vmatprep.subr.mxu0 0.0
    %2086 = vmatpush1.msra.mxu0 0.0
    %2087 = vmatprep.subr.mxu0 0.0
    %2088 = vmatpush1.msra.mxu0 0.0
    %2089 = vmatprep.subr.mxu0 0.0
    %2090 = vmatpush1.msra.mxu0 0.0
    %2091 = vmatprep.subr.mxu0 0.0
    %2092 = vmatpush1.msra.mxu0 0.0
    %2093 = vmatprep.subr.mxu0 0.0
    %2094 = vmatpush1.msra.mxu0 0.0
    %2095 = vmatprep.subr.mxu0 0.0
    %2096 = vmatpush1.msra.mxu0 0.0
    %2097 = vmatprep.subr.mxu0 0.0
    %2098 = vmatpush1.msra.mxu0 0.0
    %2099 = vmatprep.subr.mxu0 0.0
    %2100 = vmatpush1.msra.mxu0 0.0
    %2101 = vmatprep.subr.mxu0 0.0
    %2102 = vmatpush1.msra.mxu0 0.0
    %2103 = vmatprep.subr.mxu0 0.0
    %2104 = vmatpush1.msra.mxu0 0.0
    %2105 = vmatprep.subr.mxu0 0.0
    %2106 = vmatpush1.msra.mxu0 0.0
    %2107 = vmatprep.subr.mxu0 0.0
    %2108 = vmatpush1.msra.mxu0 0.0
    %2109 = vmatprep.subr.mxu0 0.0
    %2110 = vmatpush1.msra.mxu0 0.0
    %2111 = vmatprep.subr.mxu0 0.0
    %2112 = vmatpush1.msra.mxu0 0.0
    %2113 = vmatprep.subr.mxu0 0.0
    %2114 = vmatpush1.msra.mxu0 0.0
    %2115 = vmatprep.subr.mxu0 0.0
    %2116 = vmatpush1.msra.mxu0 0.0
    %2117 = vmatprep.subr.mxu0 0.0
    %2118 = vmatpush1.msra.mxu0 0.0
    %2119 = vmatprep.subr.mxu0 0.0
    %2120 = vmatpush1.msra.mxu0 0.0
    %2121 = vmatprep.subr.mxu0 0.0
    %2122 = vmatpush1.msra.mxu0 0.0
    %2123 = vmatprep.subr.mxu0 0.0
    %2124 = vmatpush1.msra.mxu0 0.0
    %2125 = vmatprep.subr.mxu0 0.0
    %2126 = vmatpush1.msra.mxu0 0.0
    %2127 = vmatprep.subr.mxu0 0.0
    %2128 = vmatpush1.msra.mxu0 0.0
    %2129 = vmatprep.mubr.f32.mxu0 0.0
    %2130 = vmatmul.mubr.f32.gmra.mrb[0].mxu0 %v2063
    %v2131 = vpop.f32.mrb[0].mxu0
    %v2132 = vadd.f32 %v432, %v2131
    %v2133 = vpop.f32.mrb[0].mxu0
    %2134 = vdwg.mxu0
    %v2135 = vmul.f32 %v2132, 0.5
    %v2136 = vtanh.pop %v2135
    %v2137 = vadd.f32 %v2136, 1.0
    %v2138 = vmul.f32 %v2137, 0.5
    %v2139 = vtanh.pop %v2132
    %v2140 = vmul.f32 %v2138, %v1704
    %2142 = vrot.lane.b32.xlu0 %v2139, 64
    %v2143 = vpop.permute.xlu0 %2142
    %v2145 = vmul.f32 %v2138, %v2143
    %2147 = vrot.lane.b32.xlu0 %v2145, 32
    %v2148 = vpop.permute.xlu0 %2147
    %v2150 = vadd.f32 %v2140, %v2148
    %v2151 = vtanh.pop %v2150
    %2153 = vrot.lane.b32.xlu0 %v2151, 64
    %v2154 = vpop.permute.xlu0 %2153
    %v2156 = vmul.f32 %v2138, %v2154
    %v2157 = vrot.slane %v2015, 3
    %v2158 = vrot.slane %v2016, 2
    %v2159 = vsel %vm715, %v2158, %v2157
    %v2160 = vrot.slane %v2017, 1
    %v2161 = vsel %vm718, %v2160, %v2159
    %v2162 = vsel %vm721, %v2018, %v2161
    %v2163 = vrot.slane %v2019, 7
    %v2164 = vsel %vm724, %v2163, %v2162
    %v2165 = vrot.slane %v2020, 6
    %v2166 = vsel %vm727, %v2165, %v2164
    %v2167 = vrot.slane %v2021, 5
    %v2168 = vsel %vm730, %v2167, %v2166
    %v2169 = vrot.slane %v2022, 4
    %v2170 = vsel %vm733, %v2169, %v2168
    %2171 = vrot.lane.b32.xlu0 %v2170, 32
    %v2172 = vpop.permute.xlu0 %2171
    %v2173 = vsel %vm35, %v2172, 0
    %2175 = vmatprep.subr.mxu0 0.0
    %2176 = vmatpush1.msra.mxu0 %v274
    %2177 = vmatprep.subr.mxu0 0.0
    %2178 = vmatpush1.msra.mxu0 %v275
    %2179 = vmatprep.subr.mxu0 0.0
    %2180 = vmatpush1.msra.mxu0 %v276
    %2181 = vmatprep.subr.mxu0 0.0
    %2182 = vmatpush1.msra.mxu0 %v277
    %2183 = vmatprep.subr.mxu0 0.0
    %2184 = vmatpush1.msra.mxu0 0.0
    %2185 = vmatprep.subr.mxu0 0.0
    %2186 = vmatpush1.msra.mxu0 0.0
    %2187 = vmatprep.subr.mxu0 0.0
    %2188 = vmatpush1.msra.mxu0 0.0
    %2189 = vmatprep.subr.mxu0 0.0
    %2190 = vmatpush1.msra.mxu0 0.0
    %2191 = vmatprep.subr.mxu0 0.0
    %2192 = vmatpush1.msra.mxu0 0.0
    %2193 = vmatprep.subr.mxu0 0.0
    %2194 = vmatpush1.msra.mxu0 0.0
    %2195 = vmatprep.subr.mxu0 0.0
    %2196 = vmatpush1.msra.mxu0 0.0
    %2197 = vmatprep.subr.mxu0 0.0
    %2198 = vmatpush1.msra.mxu0 0.0
    %2199 = vmatprep.subr.mxu0 0.0
    %2200 = vmatpush1.msra.mxu0 0.0
    %2201 = vmatprep.subr.mxu0 0.0
    %2202 = vmatpush1.msra.mxu0 0.0
    %2203 = vmatprep.subr.mxu0 0.0
    %2204 = vmatpush1.msra.mxu0 0.0
    %2205 = vmatprep.subr.mxu0 0.0
    %2206 = vmatpush1.msra.mxu0 0.0
    %2207 = vmatprep.subr.mxu0 0.0
    %2208 = vmatpush1.msra.mxu0 0.0
    %2209 = vmatprep.subr.mxu0 0.0
    %2210 = vmatpush1.msra.mxu0 0.0
    %2211 = vmatprep.subr.mxu0 0.0
    %2212 = vmatpush1.msra.mxu0 0.0
    %2213 = vmatprep.subr.mxu0 0.0
    %2214 = vmatpush1.msra.mxu0 0.0
    %2215 = vmatprep.subr.mxu0 0.0
    %2216 = vmatpush1.msra.mxu0 0.0
    %2217 = vmatprep.subr.mxu0 0.0
    %2218 = vmatpush1.msra.mxu0 0.0
    %2219 = vmatprep.subr.mxu0 0.0
    %2220 = vmatpush1.msra.mxu0 0.0
    %2221 = vmatprep.subr.mxu0 0.0
    %2222 = vmatpush1.msra.mxu0 0.0
    %2223 = vmatprep.subr.mxu0 0.0
    %2224 = vmatpush1.msra.mxu0 0.0
    %2225 = vmatprep.subr.mxu0 0.0
    %2226 = vmatpush1.msra.mxu0 0.0
    %2227 = vmatprep.subr.mxu0 0.0
    %2228 = vmatpush1.msra.mxu0 0.0
    %2229 = vmatprep.subr.mxu0 0.0
    %2230 = vmatpush1.msra.mxu0 0.0
    %2231 = vmatprep.subr.mxu0 0.0
    %2232 = vmatpush1.msra.mxu0 0.0
    %2233 = vmatprep.subr.mxu0 0.0
    %2234 = vmatpush1.msra.mxu0 0.0
    %2235 = vmatprep.subr.mxu0 0.0
    %2236 = vmatpush1.msra.mxu0 0.0
    %2237 = vmatprep.subr.mxu0 0.0
    %2238 = vmatpush1.msra.mxu0 0.0
    %2239 = vmatprep.mubr.f32.mxu0 0.0
    %2240 = vmatmul.mubr.f32.gmra.mrb[0].mxu0 %v2173
    %v2241 = vpop.f32.mrb[0].mxu0
    %v2242 = vadd.f32 0.0, %v2241
    %v2243 = vpop.f32.mrb[0].mxu0
    %2244 = vdwg.mxu0
    %v2246 = vrot.slane %v2242, 4
    %v2247 = vrot.slane %v2242, 5
    %v2248 = vrot.slane %v2242, 6
    %v2249 = vrot.slane %v2242, 7
    %v2250 = vrot.slane %v2242, 1
    %v2251 = vrot.slane %v2242, 2
    %v2252 = vrot.slane %v2242, 3
    %v2261 = vadd.f32 %v391, %v2246
    %v2262 = vadd.f32 %v396, %v2247
    %v2263 = vadd.f32 %v401, %v2248
    %v2264 = vadd.f32 %v406, %v2249
    %v2265 = vadd.f32 %v411, %v2242
    %v2266 = vadd.f32 %v416, %v2250
    %v2267 = vadd.f32 %v421, %v2251
    %v2268 = vadd.f32 %v426, %v2252
    %v2269 = vmul.f32 %v2261, 0.5
    %v2270 = vmul.f32 %v2262, 0.5
    %v2271 = vmul.f32 %v2263, 0.5
    %v2272 = vmul.f32 %v2264, 0.5
    %v2273 = vmul.f32 %v2265, 0.5
    %v2274 = vmul.f32 %v2266, 0.5
    %v2275 = vmul.f32 %v2267, 0.5
    %v2276 = vmul.f32 %v2268, 0.5
    %v2277 = vtanh.pop %v2269
    %v2278 = vtanh.pop %v2270
    %v2279 = vtanh.pop %v2271
    %v2280 = vtanh.pop %v2272
    %v2281 = vtanh.pop %v2273
    %v2282 = vtanh.pop %v2274
    %v2283 = vtanh.pop %v2275
    %v2284 = vtanh.pop %v2276
    %v2285 = vadd.f32 %v2277, 1.0
    %v2286 = vadd.f32 %v2278, 1.0
    %v2287 = vadd.f32 %v2279, 1.0
    %v2288 = vadd.f32 %v2280, 1.0
    %v2289 = vadd.f32 %v2281, 1.0
    %v2290 = vadd.f32 %v2282, 1.0
    %v2291 = vadd.f32 %v2283, 1.0
    %v2292 = vadd.f32 %v2284, 1.0
    %v2293 = vmul.f32 %v2285, 0.5
    %v2294 = vmul.f32 %v2286, 0.5
    %v2295 = vmul.f32 %v2287, 0.5
    %v2296 = vmul.f32 %v2288, 0.5
    %v2297 = vmul.f32 %v2289, 0.5
    %v2298 = vmul.f32 %v2290, 0.5
    %v2299 = vmul.f32 %v2291, 0.5
    %v2300 = vmul.f32 %v2292, 0.5
    %v2301 = vtanh.pop %v2261
    %v2302 = vtanh.pop %v2262
    %v2303 = vtanh.pop %v2263
    %v2304 = vtanh.pop %v2264
    %v2305 = vtanh.pop %v2265
    %v2306 = vtanh.pop %v2266
    %v2307 = vtanh.pop %v2267
    %v2308 = vtanh.pop %v2268
    %v2317 = vrot.slane %v1967, 7
    %v2318 = vrot.slane %v1968, 7
    %v2319 = vrot.slane %v1969, 7
    %v2320 = vrot.slane %v1970, 7
    %v2321 = vrot.slane %v1971, 7
    %v2322 = vrot.slane %v1972, 7
    %v2323 = vrot.slane %v1973, 7
    %v2324 = vrot.slane %v1974, 7
    %v2333 = vmul.f32 %v2293, %v2317
    %v2334 = vmul.f32 %v2294, %v2318
    %v2335 = vmul.f32 %v2295, %v2319
    %v2336 = vmul.f32 %v2296, %v2320
    %v2337 = vmul.f32 %v2297, %v2321
    %v2338 = vmul.f32 %v2298, %v2322
    %v2339 = vmul.f32 %v2299, %v2323
    %v2340 = vmul.f32 %v2300, %v2324
    %2349 = vrot.lane.b32.xlu0 %v2301, 64
    %v2350 = vpop.permute.xlu0 %2349
    %2351 = vrot.lane.b32.xlu0 %v2302, 64
    %v2352 = vpop.permute.xlu0 %2351
    %2353 = vrot.lane.b32.xlu0 %v2303, 64
    %v2354 = vpop.permute.xlu0 %2353
    %2355 = vrot.lane.b32.xlu0 %v2304, 64
    %v2356 = vpop.permute.xlu0 %2355
    %2357 = vrot.lane.b32.xlu0 %v2305, 64
    %v2358 = vpop.permute.xlu0 %2357
    %2359 = vrot.lane.b32.xlu0 %v2306, 64
    %v2360 = vpop.permute.xlu0 %2359
    %2361 = vrot.lane.b32.xlu0 %v2307, 64
    %v2362 = vpop.permute.xlu0 %2361
    %2363 = vrot.lane.b32.xlu0 %v2308, 64
    %v2364 = vpop.permute.xlu0 %2363
    %v2373 = vmul.f32 %v2293, %v2350
    %v2374 = vmul.f32 %v2294, %v2352
    %v2375 = vmul.f32 %v2295, %v2354
    %v2376 = vmul.f32 %v2296, %v2356
    %v2377 = vmul.f32 %v2297, %v2358
    %v2378 = vmul.f32 %v2298, %v2360
    %v2379 = vmul.f32 %v2299, %v2362
    %v2380 = vmul.f32 %v2300, %v2364
    %2389 = vrot.lane.b32.xlu0 %v2373, 32
    %v2390 = vpop.permute.xlu0 %2389
    %2391 = vrot.lane.b32.xlu0 %v2374, 32
    %v2392 = vpop.permute.xlu0 %2391
    %2393 = vrot.lane.b32.xlu0 %v2375, 32
    %v2394 = vpop.permute.xlu0 %2393
    %2395 = vrot.lane.b32.xlu0 %v2376, 32
    %v2396 = vpop.permute.xlu0 %2395
    %2397 = vrot.lane.b32.xlu0 %v2377, 32
    %v2398 = vpop.permute.xlu0 %2397
    %2399 = vrot.lane.b32.xlu0 %v2378, 32
    %v2400 = vpop.permute.xlu0 %2399
    %2401 = vrot.lane.b32.xlu0 %v2379, 32
    %v2402 = vpop.permute.xlu0 %2401
    %2403 = vrot.lane.b32.xlu0 %v2380, 32
    %v2404 = vpop.permute.xlu0 %2403
    %v2413 = vadd.f32 %v2333, %v2390
    %v2414 = vadd.f32 %v2334, %v2392
    %v2415 = vadd.f32 %v2335, %v2394
    %v2416 = vadd.f32 %v2336, %v2396
    %v2417 = vadd.f32 %v2337, %v2398
    %v2418 = vadd.f32 %v2338, %v2400
    %v2419 = vadd.f32 %v2339, %v2402
    %v2420 = vadd.f32 %v2340, %v2404
    %v2421 = vtanh.pop %v2413
    %v2422 = vtanh.pop %v2414
    %v2423 = vtanh.pop %v2415
    %v2424 = vtanh.pop %v2416
    %v2425 = vtanh.pop %v2417
    %v2426 = vtanh.pop %v2418
    %v2427 = vtanh.pop %v2419
    %v2428 = vtanh.pop %v2420
    %2437 = vrot.lane.b32.xlu0 %v2421, 64
    %v2438 = vpop.permute.xlu0 %2437
    %2439 = vrot.lane.b32.xlu0 %v2422, 64
    %v2440 = vpop.permute.xlu0 %2439
    %2441 = vrot.lane.b32.xlu0 %v2423, 64
    %v2442 = vpop.permute.xlu0 %2441
    %2443 = vrot.lane.b32.xlu0 %v2424, 64
    %v2444 = vpop.permute.xlu0 %2443
    %2445 = vrot.lane.b32.xlu0 %v2425, 64
    %v2446 = vpop.permute.xlu0 %2445
    %2447 = vrot.lane.b32.xlu0 %v2426, 64
    %v2448 = vpop.permute.xlu0 %2447
    %2449 = vrot.lane.b32.xlu0 %v2427, 64
    %v2450 = vpop.permute.xlu0 %2449
    %2451 = vrot.lane.b32.xlu0 %v2428, 64
    %v2452 = vpop.permute.xlu0 %2451
    %v2461 = vmul.f32 %v2293, %v2438
    %v2462 = vmul.f32 %v2294, %v2440
    %v2463 = vmul.f32 %v2295, %v2442
    %v2464 = vmul.f32 %v2296, %v2444
    %v2465 = vmul.f32 %v2297, %v2446
    %v2466 = vmul.f32 %v2298, %v2448
    %v2467 = vmul.f32 %v2299, %v2450
    %v2468 = vmul.f32 %v2300, %v2452
    %v2477 = vrot.slane %v2462, 7
    %v2478 = vsel %vm727, %v2477, %v2461
    %v2479 = vrot.slane %v2463, 6
    %v2480 = vsel %vm730, %v2479, %v2478
    %v2481 = vrot.slane %v2464, 5
    %v2482 = vsel %vm733, %v2481, %v2480
    %v2483 = vrot.slane %v2465, 4
    %v2484 = vrot.slane %v2466, 3
    %v2485 = vsel %vm715, %v2484, %v2483
    %v2486 = vrot.slane %v2467, 2
    %v2487 = vsel %vm718, %v2486, %v2485
    %v2488 = vrot.slane %v2468, 1
    %v2489 = vsel %vm721, %v2488, %v2487
    %2490 = vrot.lane.b32.xlu0 %v2482, 32
    %v2491 = vpop.permute.xlu0 %2490
    %2492 = vrot.lane.b32.xlu0 %v2489, 32
    %v2493 = vpop.permute.xlu0 %2492
    %v2497 = vrot.slane %v2156, 4
    %2498 = vrot.lane.b32.xlu0 %v2497, 64
    %v2499 = vpop.permute.xlu0 %2498
    %v2501 = vsel %vm35, %v2491, %v2499
    %v2502 = vsel %vm35, %v2493, %v2499
    %vm2505 = vcmask 1043456
    %v2506 = vrot.slane %v2501, 4
    %v2507 = vrot.slane %v2502, 4
    %v2508 = vsel %vm2505, %v2506, %v2507
    %v2509 = vsel %vm739, %v2508, 0
    %2511 = vmatprep.subr.mxu0 0.0
    %2512 = vmatpush1.msra.mxu0 %v279
    %2513 = vmatprep.subr.mxu0 0.0
    %2514 = vmatpush1.msra.mxu0 %v280
    %2515 = vmatprep.subr.mxu0 0.0
    %2516 = vmatpush1.msra.mxu0 %v281
    %2517 = vmatprep.subr.mxu0 0.0
    %2518 = vmatpush1.msra.mxu0 %v282
    %2519 = vmatprep.subr.mxu0 0.0
    %2520 = vmatpush1.msra.mxu0 %v283
    %2521 = vmatprep.subr.mxu0 0.0
    %2522 = vmatpush1.msra.mxu0 %v284
    %2523 = vmatprep.subr.mxu0 0.0
    %2524 = vmatpush1.msra.mxu0 %v285
    %2525 = vmatprep.subr.mxu0 0.0
    %2526 = vmatpush1.msra.mxu0 %v286
    %2527 = vmatprep.subr.mxu0 0.0
    %2528 = vmatpush1.msra.mxu0 0.0
    %2529 = vmatprep.subr.mxu0 0.0
    %2530 = vmatpush1.msra.mxu0 0.0
    %2531 = vmatprep.subr.mxu0 0.0
    %2532 = vmatpush1.msra.mxu0 0.0
    %2533 = vmatprep.subr.mxu0 0.0
    %2534 = vmatpush1.msra.mxu0 0.0
    %2535 = vmatprep.subr.mxu0 0.0
    %2536 = vmatpush1.msra.mxu0 0.0
    %2537 = vmatprep.subr.mxu0 0.0
    %2538 = vmatpush1.msra.mxu0 0.0
    %2539 = vmatprep.subr.mxu0 0.0
    %2540 = vmatpush1.msra.mxu0 0.0
    %2541 = vmatprep.subr.mxu0 0.0
    %2542 = vmatpush1.msra.mxu0 0.0
    %2543 = vmatprep.subr.mxu0 0.0
    %2544 = vmatpush1.msra.mxu0 0.0
    %2545 = vmatprep.subr.mxu0 0.0
    %2546 = vmatpush1.msra.mxu0 0.0
    %2547 = vmatprep.subr.mxu0 0.0
    %2548 = vmatpush1.msra.mxu0 0.0
    %2549 = vmatprep.subr.mxu0 0.0
    %2550 = vmatpush1.msra.mxu0 0.0
    %2551 = vmatprep.subr.mxu0 0.0
    %2552 = vmatpush1.msra.mxu0 0.0
    %2553 = vmatprep.subr.mxu0 0.0
    %2554 = vmatpush1.msra.mxu0 0.0
    %2555 = vmatprep.subr.mxu0 0.0
    %2556 = vmatpush1.msra.mxu0 0.0
    %2557 = vmatprep.subr.mxu0 0.0
    %2558 = vmatpush1.msra.mxu0 0.0
    %2559 = vmatprep.subr.mxu0 0.0
    %2560 = vmatpush1.msra.mxu0 0.0
    %2561 = vmatprep.subr.mxu0 0.0
    %2562 = vmatpush1.msra.mxu0 0.0
    %2563 = vmatprep.subr.mxu0 0.0
    %2564 = vmatpush1.msra.mxu0 0.0
    %2565 = vmatprep.subr.mxu0 0.0
    %2566 = vmatpush1.msra.mxu0 0.0
    %2567 = vmatprep.subr.mxu0 0.0
    %2568 = vmatpush1.msra.mxu0 0.0
    %2569 = vmatprep.subr.mxu0 0.0
    %2570 = vmatpush1.msra.mxu0 0.0
    %2571 = vmatprep.subr.mxu0 0.0
    %2572 = vmatpush1.msra.mxu0 0.0
    %2573 = vmatprep.subr.mxu0 0.0
    %2574 = vmatpush1.msra.mxu0 0.0
    %2575 = vmatprep.mubr.f32.mxu0 0.0
    %2576 = vmatmul.mubr.f32.gmra.mrb[0].mxu0 %v2509
    %v2577 = vpop.f32.mrb[0].mxu0
    %v2578 = vadd.f32 %v432, %v2577
    %v2579 = vpop.f32.mrb[0].mxu0
    %2580 = vdwg.mxu0
    %v2581 = vmul.f32 %v2578, 0.5
    %v2582 = vtanh.pop %v2581
    %v2583 = vadd.f32 %v2582, 1.0
    %v2584 = vmul.f32 %v2583, 0.5
    %v2585 = vtanh.pop %v2578
    %v2586 = vmul.f32 %v2584, %v2150
    %2588 = vrot.lane.b32.xlu0 %v2585, 64
    %v2589 = vpop.permute.xlu0 %2588
    %v2591 = vmul.f32 %v2584, %v2589
    %2593 = vrot.lane.b32.xlu0 %v2591, 32
    %v2594 = vpop.permute.xlu0 %2593
    %v2596 = vadd.f32 %v2586, %v2594
    %v2597 = vtanh.pop %v2596
    %2599 = vrot.lane.b32.xlu0 %v2597, 64
    %v2600 = vpop.permute.xlu0 %2599
    %v2602 = vmul.f32 %v2584, %v2600
    %v2603 = vrot.slane %v2461, 4
    %v2604 = vrot.slane %v2462, 3
    %v2605 = vsel %vm715, %v2604, %v2603
    %v2606 = vrot.slane %v2463, 2
    %v2607 = vsel %vm718, %v2606, %v2605
    %v2608 = vrot.slane %v2464, 1
    %v2609 = vsel %vm721, %v2608, %v2607
    %v2610 = vsel %vm724, %v2465, %v2609
    %v2611 = vrot.slane %v2466, 7
    %v2612 = vsel %vm727, %v2611, %v2610
    %v2613 = vrot.slane %v2467, 6
    %v2614 = vsel %vm730, %v2613, %v2612
    %v2615 = vrot.slane %v2468, 5
    %v2616 = vsel %vm733, %v2615, %v2614
    %2617 = vrot.lane.b32.xlu0 %v2616, 32
    %v2618 = vpop.permute.xlu0 %2617
    %v2619 = vsel %vm35, %v2618, 0
    %2621 = vmatprep.subr.mxu0 0.0
    %2622 = vmatpush1.msra.mxu0 %v274
    %2623 = vmatprep.subr.mxu0 0.0
    %2624 = vmatpush1.msra.mxu0 %v275
    %2625 = vmatprep.subr.mxu0 0.0
    %2626 = vmatpush1.msra.mxu0 %v276
    %2627 = vmatprep.subr.mxu0 0.0
    %2628 = vmatpush1.msra.mxu0 %v277
    %2629 = vmatprep.subr.mxu0 0.0
    %2630 = vmatpush1.msra.mxu0 0.0
    %2631 = vmatprep.subr.mxu0 0.0
    %2632 = vmatpush1.msra.mxu0 0.0
    %2633 = vmatprep.subr.mxu0 0.0
    %2634 = vmatpush1.msra.mxu0 0.0
    %2635 = vmatprep.subr.mxu0 0.0
    %2636 = vmatpush1.msra.mxu0 0.0
    %2637 = vmatprep.subr.mxu0 0.0
    %2638 = vmatpush1.msra.mxu0 0.0
    %2639 = vmatprep.subr.mxu0 0.0
    %2640 = vmatpush1.msra.mxu0 0.0
    %2641 = vmatprep.subr.mxu0 0.0
    %2642 = vmatpush1.msra.mxu0 0.0
    %2643 = vmatprep.subr.mxu0 0.0
    %2644 = vmatpush1.msra.mxu0 0.0
    %2645 = vmatprep.subr.mxu0 0.0
    %2646 = vmatpush1.msra.mxu0 0.0
    %2647 = vmatprep.subr.mxu0 0.0
    %2648 = vmatpush1.msra.mxu0 0.0
    %2649 = vmatprep.subr.mxu0 0.0
    %2650 = vmatpush1.msra.mxu0 0.0
    %2651 = vmatprep.subr.mxu0 0.0
    %2652 = vmatpush1.msra.mxu0 0.0
    %2653 = vmatprep.subr.mxu0 0.0
    %2654 = vmatpush1.msra.mxu0 0.0
    %2655 = vmatprep.subr.mxu0 0.0
    %2656 = vmatpush1.msra.mxu0 0.0
    %2657 = vmatprep.subr.mxu0 0.0
    %2658 = vmatpush1.msra.mxu0 0.0
    %2659 = vmatprep.subr.mxu0 0.0
    %2660 = vmatpush1.msra.mxu0 0.0
    %2661 = vmatprep.subr.mxu0 0.0
    %2662 = vmatpush1.msra.mxu0 0.0
    %2663 = vmatprep.subr.mxu0 0.0
    %2664 = vmatpush1.msra.mxu0 0.0
    %2665 = vmatprep.subr.mxu0 0.0
    %2666 = vmatpush1.msra.mxu0 0.0
    %2667 = vmatprep.subr.mxu0 0.0
    %2668 = vmatpush1.msra.mxu0 0.0
    %2669 = vmatprep.subr.mxu0 0.0
    %2670 = vmatpush1.msra.mxu0 0.0
    %2671 = vmatprep.subr.mxu0 0.0
    %2672 = vmatpush1.msra.mxu0 0.0
    %2673 = vmatprep.subr.mxu0 0.0
    %2674 = vmatpush1.msra.mxu0 0.0
    %2675 = vmatprep.subr.mxu0 0.0
    %2676 = vmatpush1.msra.mxu0 0.0
    %2677 = vmatprep.subr.mxu0 0.0
    %2678 = vmatpush1.msra.mxu0 0.0
    %2679 = vmatprep.subr.mxu0 0.0
    %2680 = vmatpush1.msra.mxu0 0.0
    %2681 = vmatprep.subr.mxu0 0.0
    %2682 = vmatpush1.msra.mxu0 0.0
    %2683 = vmatprep.subr.mxu0 0.0
    %2684 = vmatpush1.msra.mxu0 0.0
    %2685 = vmatprep.mubr.f32.mxu0 0.0
    %2686 = vmatmul.mubr.f32.gmra.mrb[0].mxu0 %v2619
    %v2687 = vpop.f32.mrb[0].mxu0
    %v2688 = vadd.f32 0.0, %v2687
    %v2689 = vpop.f32.mrb[0].mxu0
    %2690 = vdwg.mxu0
    %v2692 = vrot.slane %v2688, 3
    %v2693 = vrot.slane %v2688, 4
    %v2694 = vrot.slane %v2688, 5
    %v2695 = vrot.slane %v2688, 6
    %v2696 = vrot.slane %v2688, 7
    %v2697 = vrot.slane %v2688, 1
    %v2698 = vrot.slane %v2688, 2
    %v2707 = vadd.f32 %v391, %v2692
    %v2708 = vadd.f32 %v396, %v2693
    %v2709 = vadd.f32 %v401, %v2694
    %v2710 = vadd.f32 %v406, %v2695
    %v2711 = vadd.f32 %v411, %v2696
    %v2712 = vadd.f32 %v416, %v2688
    %v2713 = vadd.f32 %v421, %v2697
    %v2714 = vadd.f32 %v426, %v2698
    %v2715 = vmul.f32 %v2707, 0.5
    %v2716 = vmul.f32 %v2708, 0.5
    %v2717 = vmul.f32 %v2709, 0.5
    %v2718 = vmul.f32 %v2710, 0.5
    %v2719 = vmul.f32 %v2711, 0.5
    %v2720 = vmul.f32 %v2712, 0.5
    %v2721 = vmul.f32 %v2713, 0.5
    %v2722 = vmul.f32 %v2714, 0.5
    %v2723 = vtanh.pop %v2715
    %v2724 = vtanh.pop %v2716
    %v2725 = vtanh.pop %v2717
    %v2726 = vtanh.pop %v2718
    %v2727 = vtanh.pop %v2719
    %v2728 = vtanh.pop %v2720
    %v2729 = vtanh.pop %v2721
    %v2730 = vtanh.pop %v2722
    %v2731 = vadd.f32 %v2723, 1.0
    %v2732 = vadd.f32 %v2724, 1.0
    %v2733 = vadd.f32 %v2725, 1.0
    %v2734 = vadd.f32 %v2726, 1.0
    %v2735 = vadd.f32 %v2727, 1.0
    %v2736 = vadd.f32 %v2728, 1.0
    %v2737 = vadd.f32 %v2729, 1.0
    %v2738 = vadd.f32 %v2730, 1.0
    %v2739 = vmul.f32 %v2731, 0.5
    %v2740 = vmul.f32 %v2732, 0.5
    %v2741 = vmul.f32 %v2733, 0.5
    %v2742 = vmul.f32 %v2734, 0.5
    %v2743 = vmul.f32 %v2735, 0.5
    %v2744 = vmul.f32 %v2736, 0.5
    %v2745 = vmul.f32 %v2737, 0.5
    %v2746 = vmul.f32 %v2738, 0.5
    %v2747 = vtanh.pop %v2707
    %v2748 = vtanh.pop %v2708
    %v2749 = vtanh.pop %v2709
    %v2750 = vtanh.pop %v2710
    %v2751 = vtanh.pop %v2711
    %v2752 = vtanh.pop %v2712
    %v2753 = vtanh.pop %v2713
    %v2754 = vtanh.pop %v2714
    %v2763 = vrot.slane %v2413, 7
    %v2764 = vrot.slane %v2414, 7
    %v2765 = vrot.slane %v2415, 7
    %v2766 = vrot.slane %v2416, 7
    %v2767 = vrot.slane %v2417, 7
    %v2768 = vrot.slane %v2418, 7
    %v2769 = vrot.slane %v2419, 7
    %v2770 = vrot.slane %v2420, 7
    %v2779 = vmul.f32 %v2739, %v2763
    %v2780 = vmul.f32 %v2740, %v2764
    %v2781 = vmul.f32 %v2741, %v2765
    %v2782 = vmul.f32 %v2742, %v2766
    %v2783 = vmul.f32 %v2743, %v2767
    %v2784 = vmul.f32 %v2744, %v2768
    %v2785 = vmul.f32 %v2745, %v2769
    %v2786 = vmul.f32 %v2746, %v2770
    %2795 = vrot.lane.b32.xlu0 %v2747, 64
    %v2796 = vpop.permute.xlu0 %2795
    %2797 = vrot.lane.b32.xlu0 %v2748, 64
    %v2798 = vpop.permute.xlu0 %2797
    %2799 = vrot.lane.b32.xlu0 %v2749, 64
    %v2800 = vpop.permute.xlu0 %2799
    %2801 = vrot.lane.b32.xlu0 %v2750, 64
    %v2802 = vpop.permute.xlu0 %2801
    %2803 = vrot.lane.b32.xlu0 %v2751, 64
    %v2804 = vpop.permute.xlu0 %2803
    %2805 = vrot.lane.b32.xlu0 %v2752, 64
    %v2806 = vpop.permute.xlu0 %2805
    %2807 = vrot.lane.b32.xlu0 %v2753, 64
    %v2808 = vpop.permute.xlu0 %2807
    %2809 = vrot.lane.b32.xlu0 %v2754, 64
    %v2810 = vpop.permute.xlu0 %2809
    %v2819 = vmul.f32 %v2739, %v2796
    %v2820 = vmul.f32 %v2740, %v2798
    %v2821 = vmul.f32 %v2741, %v2800
    %v2822 = vmul.f32 %v2742, %v2802
    %v2823 = vmul.f32 %v2743, %v2804
    %v2824 = vmul.f32 %v2744, %v2806
    %v2825 = vmul.f32 %v2745, %v2808
    %v2826 = vmul.f32 %v2746, %v2810
    %2835 = vrot.lane.b32.xlu0 %v2819, 32
    %v2836 = vpop.permute.xlu0 %2835
    %2837 = vrot.lane.b32.xlu0 %v2820, 32
    %v2838 = vpop.permute.xlu0 %2837
    %2839 = vrot.lane.b32.xlu0 %v2821, 32
    %v2840 = vpop.permute.xlu0 %2839
    %2841 = vrot.lane.b32.xlu0 %v2822, 32
    %v2842 = vpop.permute.xlu0 %2841
    %2843 = vrot.lane.b32.xlu0 %v2823, 32
    %v2844 = vpop.permute.xlu0 %2843
    %2845 = vrot.lane.b32.xlu0 %v2824, 32
    %v2846 = vpop.permute.xlu0 %2845
    %2847 = vrot.lane.b32.xlu0 %v2825, 32
    %v2848 = vpop.permute.xlu0 %2847
    %2849 = vrot.lane.b32.xlu0 %v2826, 32
    %v2850 = vpop.permute.xlu0 %2849
    %v2859 = vadd.f32 %v2779, %v2836
    %v2860 = vadd.f32 %v2780, %v2838
    %v2861 = vadd.f32 %v2781, %v2840
    %v2862 = vadd.f32 %v2782, %v2842
    %v2863 = vadd.f32 %v2783, %v2844
    %v2864 = vadd.f32 %v2784, %v2846
    %v2865 = vadd.f32 %v2785, %v2848
    %v2866 = vadd.f32 %v2786, %v2850
    %v2867 = vtanh.pop %v2859
    %v2868 = vtanh.pop %v2860
    %v2869 = vtanh.pop %v2861
    %v2870 = vtanh.pop %v2862
    %v2871 = vtanh.pop %v2863
    %v2872 = vtanh.pop %v2864
    %v2873 = vtanh.pop %v2865
    %v2874 = vtanh.pop %v2866
    %2883 = vrot.lane.b32.xlu0 %v2867, 64
    %v2884 = vpop.permute.xlu0 %2883
    %2885 = vrot.lane.b32.xlu0 %v2868, 64
    %v2886 = vpop.permute.xlu0 %2885
    %2887 = vrot.lane.b32.xlu0 %v2869, 64
    %v2888 = vpop.permute.xlu0 %2887
    %2889 = vrot.lane.b32.xlu0 %v2870, 64
    %v2890 = vpop.permute.xlu0 %2889
    %2891 = vrot.lane.b32.xlu0 %v2871, 64
    %v2892 = vpop.permute.xlu0 %2891
    %2893 = vrot.lane.b32.xlu0 %v2872, 64
    %v2894 = vpop.permute.xlu0 %2893
    %2895 = vrot.lane.b32.xlu0 %v2873, 64
    %v2896 = vpop.permute.xlu0 %2895
    %2897 = vrot.lane.b32.xlu0 %v2874, 64
    %v2898 = vpop.permute.xlu0 %2897
    %v2907 = vmul.f32 %v2739, %v2884
    %v2908 = vmul.f32 %v2740, %v2886
    %v2909 = vmul.f32 %v2741, %v2888
    %v2910 = vmul.f32 %v2742, %v2890
    %v2911 = vmul.f32 %v2743, %v2892
    %v2912 = vmul.f32 %v2744, %v2894
    %v2913 = vmul.f32 %v2745, %v2896
    %v2914 = vmul.f32 %v2746, %v2898
    %v2923 = vrot.slane %v2908, 7
    %v2924 = vsel %vm730, %v2923, %v2907
    %v2925 = vrot.slane %v2909, 6
    %v2926 = vsel %vm733, %v2925, %v2924
    %v2927 = vrot.slane %v2910, 5
    %v2928 = vrot.slane %v2911, 4
    %v2929 = vsel %vm715, %v2928, %v2927
    %v2930 = vrot.slane %v2912, 3
    %v2931 = vsel %vm718, %v2930, %v2929
    %v2932 = vrot.slane %v2913, 2
    %v2933 = vsel %vm721, %v2932, %v2931
    %v2934 = vrot.slane %v2914, 1
    %v2935 = vsel %vm724, %v2934, %v2933
    %2936 = vrot.lane.b32.xlu0 %v2926, 32
    %v2937 = vpop.permute.xlu0 %2936
    %2938 = vrot.lane.b32.xlu0 %v2935, 32
    %v2939 = vpop.permute.xlu0 %2938
    %v2943 = vrot.slane %v2602, 3
    %2944 = vrot.lane.b32.xlu0 %v2943, 64
    %v2945 = vpop.permute.xlu0 %2944
    %v2947 = vsel %vm35, %v2937, %v2945
    %v2948 = vsel %vm35, %v2939, %v2945
    %vm2951 = vcmask 1042432
    %v2952 = vrot.slane %v2947, 5
    %v2953 = vrot.slane %v2948, 5
    %v2954 = vsel %vm2951, %v2952, %v2953
    %v2955 = vsel %vm739, %v2954, 0
    %2957 = vmatprep.subr.mxu0 0.0
    %2958 = vmatpush1.msra.mxu0 %v279
    %2959 = vmatprep.subr.mxu0 0.0
    %2960 = vmatpush1.msra.mxu0 %v280
    %2961 = vmatprep.subr.mxu0 0.0
    %2962 = vmatpush1.msra.mxu0 %v281
    %2963 = vmatprep.subr.mxu0 0.0
    %2964 = vmatpush1.msra.mxu0 %v282
    %2965 = vmatprep.subr.mxu0 0.0
    %2966 = vmatpush1.msra.mxu0 %v283
    %2967 = vmatprep.subr.mxu0 0.0
    %2968 = vmatpush1.msra.mxu0 %v284
    %2969 = vmatprep.subr.mxu0 0.0
    %2970 = vmatpush1.msra.mxu0 %v285
    %2971 = vmatprep.subr.mxu0 0.0
    %2972 = vmatpush1.msra.mxu0 %v286
    %2973 = vmatprep.subr.mxu0 0.0
    %2974 = vmatpush1.msra.mxu0 0.0
    %2975 = vmatprep.subr.mxu0 0.0
    %2976 = vmatpush1.msra.mxu0 0.0
    %2977 = vmatprep.subr.mxu0 0.0
    %2978 = vmatpush1.msra.mxu0 0.0
    %2979 = vmatprep.subr.mxu0 0.0
    %2980 = vmatpush1.msra.mxu0 0.0
    %2981 = vmatprep.subr.mxu0 0.0
    %2982 = vmatpush1.msra.mxu0 0.0
    %2983 = vmatprep.subr.mxu0 0.0
    %2984 = vmatpush1.msra.mxu0 0.0
    %2985 = vmatprep.subr.mxu0 0.0
    %2986 = vmatpush1.msra.mxu0 0.0
    %2987 = vmatprep.subr.mxu0 0.0
    %2988 = vmatpush1.msra.mxu0 0.0
    %2989 = vmatprep.subr.mxu0 0.0
    %2990 = vmatpush1.msra.mxu0 0.0
    %2991 = vmatprep.subr.mxu0 0.0
    %2992 = vmatpush1.msra.mxu0 0.0
    %2993 = vmatprep.subr.mxu0 0.0
    %2994 = vmatpush1.msra.mxu0 0.0
    %2995 = vmatprep.subr.mxu0 0.0
    %2996 = vmatpush1.msra.mxu0 0.0
    %2997 = vmatprep.subr.mxu0 0.0
    %2998 = vmatpush1.msra.mxu0 0.0
    %2999 = vmatprep.subr.mxu0 0.0
    %3000 = vmatpush1.msra.mxu0 0.0
    %3001 = vmatprep.subr.mxu0 0.0
    %3002 = vmatpush1.msra.mxu0 0.0
    %3003 = vmatprep.subr.mxu0 0.0
    %3004 = vmatpush1.msra.mxu0 0.0
    %3005 = vmatprep.subr.mxu0 0.0
    %3006 = vmatpush1.msra.mxu0 0.0
    %3007 = vmatprep.subr.mxu0 0.0
    %3008 = vmatpush1.msra.mxu0 0.0
    %3009 = vmatprep.subr.mxu0 0.0
    %3010 = vmatpush1.msra.mxu0 0.0
    %3011 = vmatprep.subr.mxu0 0.0
    %3012 = vmatpush1.msra.mxu0 0.0
    %3013 = vmatprep.subr.mxu0 0.0
    %3014 = vmatpush1.msra.mxu0 0.0
    %3015 = vmatprep.subr.mxu0 0.0
    %3016 = vmatpush1.msra.mxu0 0.0
    %3017 = vmatprep.subr.mxu0 0.0
    %3018 = vmatpush1.msra.mxu0 0.0
    %3019 = vmatprep.subr.mxu0 0.0
    %3020 = vmatpush1.msra.mxu0 0.0
    %3021 = vmatprep.mubr.f32.mxu0 0.0
    %3022 = vmatmul.mubr.f32.gmra.mrb[0].mxu0 %v2955
    %v3023 = vpop.f32.mrb[0].mxu0
    %v3024 = vadd.f32 %v432, %v3023
    %v3025 = vpop.f32.mrb[0].mxu0
    %3026 = vdwg.mxu0
    %v3027 = vmul.f32 %v3024, 0.5
    %v3028 = vtanh.pop %v3027
    %v3029 = vadd.f32 %v3028, 1.0
    %v3030 = vmul.f32 %v3029, 0.5
    %v3031 = vtanh.pop %v3024
    %v3032 = vmul.f32 %v3030, %v2596
    %3034 = vrot.lane.b32.xlu0 %v3031, 64
    %v3035 = vpop.permute.xlu0 %3034
    %v3037 = vmul.f32 %v3030, %v3035
    %3039 = vrot.lane.b32.xlu0 %v3037, 32
    %v3040 = vpop.permute.xlu0 %3039
    %v3042 = vadd.f32 %v3032, %v3040
    %v3043 = vtanh.pop %v3042
    %3045 = vrot.lane.b32.xlu0 %v3043, 64
    %v3046 = vpop.permute.xlu0 %3045
    %v3048 = vmul.f32 %v3030, %v3046
    %v3049 = vrot.slane %v2907, 5
    %v3050 = vrot.slane %v2908, 4
    %v3051 = vsel %vm715, %v3050, %v3049
    %v3052 = vrot.slane %v2909, 3
    %v3053 = vsel %vm718, %v3052, %v3051
    %v3054 = vrot.slane %v2910, 2
    %v3055 = vsel %vm721, %v3054, %v3053
    %v3056 = vrot.slane %v2911, 1
    %v3057 = vsel %vm724, %v3056, %v3055
    %v3058 = vsel %vm727, %v2912, %v3057
    %v3059 = vrot.slane %v2913, 7
    %v3060 = vsel %vm730, %v3059, %v3058
    %v3061 = vrot.slane %v2914, 6
    %v3062 = vsel %vm733, %v3061, %v3060
    %3063 = vrot.lane.b32.xlu0 %v3062, 32
    %v3064 = vpop.permute.xlu0 %3063
    %v3065 = vsel %vm35, %v3064, 0
    %3067 = vmatprep.subr.mxu0 0.0
    %3068 = vmatpush1.msra.mxu0 %v274
    %3069 = vmatprep.subr.mxu0 0.0
    %3070 = vmatpush1.msra.mxu0 %v275
    %3071 = vmatprep.subr.mxu0 0.0
    %3072 = vmatpush1.msra.mxu0 %v276
    %3073 = vmatprep.subr.mxu0 0.0
    %3074 = vmatpush1.msra.mxu0 %v277
    %3075 = vmatprep.subr.mxu0 0.0
    %3076 = vmatpush1.msra.mxu0 0.0
    %3077 = vmatprep.subr.mxu0 0.0
    %3078 = vmatpush1.msra.mxu0 0.0
    %3079 = vmatprep.subr.mxu0 0.0
    %3080 = vmatpush1.msra.mxu0 0.0
    %3081 = vmatprep.subr.mxu0 0.0
    %3082 = vmatpush1.msra.mxu0 0.0
    %3083 = vmatprep.subr.mxu0 0.0
    %3084 = vmatpush1.msra.mxu0 0.0
    %3085 = vmatprep.subr.mxu0 0.0
    %3086 = vmatpush1.msra.mxu0 0.0
    %3087 = vmatprep.subr.mxu0 0.0
    %3088 = vmatpush1.msra.mxu0 0.0
    %3089 = vmatprep.subr.mxu0 0.0
    %3090 = vmatpush1.msra.mxu0 0.0
    %3091 = vmatprep.subr.mxu0 0.0
    %3092 = vmatpush1.msra.mxu0 0.0
    %3093 = vmatprep.subr.mxu0 0.0
    %3094 = vmatpush1.msra.mxu0 0.0
    %3095 = vmatprep.subr.mxu0 0.0
    %3096 = vmatpush1.msra.mxu0 0.0
    %3097 = vmatprep.subr.mxu0 0.0
    %3098 = vmatpush1.msra.mxu0 0.0
    %3099 = vmatprep.subr.mxu0 0.0
    %3100 = vmatpush1.msra.mxu0 0.0
    %3101 = vmatprep.subr.mxu0 0.0
    %3102 = vmatpush1.msra.mxu0 0.0
    %3103 = vmatprep.subr.mxu0 0.0
    %3104 = vmatpush1.msra.mxu0 0.0
    %3105 = vmatprep.subr.mxu0 0.0
    %3106 = vmatpush1.msra.mxu0 0.0
    %3107 = vmatprep.subr.mxu0 0.0
    %3108 = vmatpush1.msra.mxu0 0.0
    %3109 = vmatprep.subr.mxu0 0.0
    %3110 = vmatpush1.msra.mxu0 0.0
    %3111 = vmatprep.subr.mxu0 0.0
    %3112 = vmatpush1.msra.mxu0 0.0
    %3113 = vmatprep.subr.mxu0 0.0
    %3114 = vmatpush1.msra.mxu0 0.0
    %3115 = vmatprep.subr.mxu0 0.0
    %3116 = vmatpush1.msra.mxu0 0.0
    %3117 = vmatprep.subr.mxu0 0.0
    %3118 = vmatpush1.msra.mxu0 0.0
    %3119 = vmatprep.subr.mxu0 0.0
    %3120 = vmatpush1.msra.mxu0 0.0
    %3121 = vmatprep.subr.mxu0 0.0
    %3122 = vmatpush1.msra.mxu0 0.0
    %3123 = vmatprep.subr.mxu0 0.0
    %3124 = vmatpush1.msra.mxu0 0.0
    %3125 = vmatprep.subr.mxu0 0.0
    %3126 = vmatpush1.msra.mxu0 0.0
    %3127 = vmatprep.subr.mxu0 0.0
    %3128 = vmatpush1.msra.mxu0 0.0
    %3129 = vmatprep.subr.mxu0 0.0
    %3130 = vmatpush1.msra.mxu0 0.0
    %3131 = vmatprep.mubr.f32.mxu0 0.0
    %3132 = vmatmul.mubr.f32.gmra.mrb[0].mxu0 %v3065
    %v3133 = vpop.f32.mrb[0].mxu0
    %v3134 = vadd.f32 0.0, %v3133
    %v3135 = vpop.f32.mrb[0].mxu0
    %3136 = vdwg.mxu0
    %v3138 = vrot.slane %v3134, 2
    %v3139 = vrot.slane %v3134, 3
    %v3140 = vrot.slane %v3134, 4
    %v3141 = vrot.slane %v3134, 5
    %v3142 = vrot.slane %v3134, 6
    %v3143 = vrot.slane %v3134, 7
    %v3144 = vrot.slane %v3134, 1
    %v3153 = vadd.f32 %v391, %v3138
    %v3154 = vadd.f32 %v396, %v3139
    %v3155 = vadd.f32 %v401, %v3140
    %v3156 = vadd.f32 %v406, %v3141
    %v3157 = vadd.f32 %v411, %v3142
    %v3158 = vadd.f32 %v416, %v3143
    %v3159 = vadd.f32 %v421, %v3134
    %v3160 = vadd.f32 %v426, %v3144
    %v3161 = vmul.f32 %v3153, 0.5
    %v3162 = vmul.f32 %v3154, 0.5
    %v3163 = vmul.f32 %v3155, 0.5
    %v3164 = vmul.f32 %v3156, 0.5
    %v3165 = vmul.f32 %v3157, 0.5
    %v3166 = vmul.f32 %v3158, 0.5
    %v3167 = vmul.f32 %v3159, 0.5
    %v3168 = vmul.f32 %v3160, 0.5
    %v3169 = vtanh.pop %v3161
    %v3170 = vtanh.pop %v3162
    %v3171 = vtanh.pop %v3163
    %v3172 = vtanh.pop %v3164
    %v3173 = vtanh.pop %v3165
    %v3174 = vtanh.pop %v3166
    %v3175 = vtanh.pop %v3167
    %v3176 = vtanh.pop %v3168
    %v3177 = vadd.f32 %v3169, 1.0
    %v3178 = vadd.f32 %v3170, 1.0
    %v3179 = vadd.f32 %v3171, 1.0
    %v3180 = vadd.f32 %v3172, 1.0
    %v3181 = vadd.f32 %v3173, 1.0
    %v3182 = vadd.f32 %v3174, 1.0
    %v3183 = vadd.f32 %v3175, 1.0
    %v3184 = vadd.f32 %v3176, 1.0
    %v3185 = vmul.f32 %v3177, 0.5
    %v3186 = vmul.f32 %v3178, 0.5
    %v3187 = vmul.f32 %v3179, 0.5
    %v3188 = vmul.f32 %v3180, 0.5
    %v3189 = vmul.f32 %v3181, 0.5
    %v3190 = vmul.f32 %v3182, 0.5
    %v3191 = vmul.f32 %v3183, 0.5
    %v3192 = vmul.f32 %v3184, 0.5
    %v3193 = vtanh.pop %v3153
    %v3194 = vtanh.pop %v3154
    %v3195 = vtanh.pop %v3155
    %v3196 = vtanh.pop %v3156
    %v3197 = vtanh.pop %v3157
    %v3198 = vtanh.pop %v3158
    %v3199 = vtanh.pop %v3159
    %v3200 = vtanh.pop %v3160
    %v3209 = vrot.slane %v2859, 7
    %v3210 = vrot.slane %v2860, 7
    %v3211 = vrot.slane %v2861, 7
    %v3212 = vrot.slane %v2862, 7
    %v3213 = vrot.slane %v2863, 7
    %v3214 = vrot.slane %v2864, 7
    %v3215 = vrot.slane %v2865, 7
    %v3216 = vrot.slane %v2866, 7
    %v3225 = vmul.f32 %v3185, %v3209
    %v3226 = vmul.f32 %v3186, %v3210
    %v3227 = vmul.f32 %v3187, %v3211
    %v3228 = vmul.f32 %v3188, %v3212
    %v3229 = vmul.f32 %v3189, %v3213
    %v3230 = vmul.f32 %v3190, %v3214
    %v3231 = vmul.f32 %v3191, %v3215
    %v3232 = vmul.f32 %v3192, %v3216
    %3241 = vrot.lane.b32.xlu0 %v3193, 64
    %v3242 = vpop.permute.xlu0 %3241
    %3243 = vrot.lane.b32.xlu0 %v3194, 64
    %v3244 = vpop.permute.xlu0 %3243
    %3245 = vrot.lane.b32.xlu0 %v3195, 64
    %v3246 = vpop.permute.xlu0 %3245
    %3247 = vrot.lane.b32.xlu0 %v3196, 64
    %v3248 = vpop.permute.xlu0 %3247
    %3249 = vrot.lane.b32.xlu0 %v3197, 64
    %v3250 = vpop.permute.xlu0 %3249
    %3251 = vrot.lane.b32.xlu0 %v3198, 64
    %v3252 = vpop.permute.xlu0 %3251
    %3253 = vrot.lane.b32.xlu0 %v3199, 64
    %v3254 = vpop.permute.xlu0 %3253
    %3255 = vrot.lane.b32.xlu0 %v3200, 64
    %v3256 = vpop.permute.xlu0 %3255
    %v3265 = vmul.f32 %v3185, %v3242
    %v3266 = vmul.f32 %v3186, %v3244
    %v3267 = vmul.f32 %v3187, %v3246
    %v3268 = vmul.f32 %v3188, %v3248
    %v3269 = vmul.f32 %v3189, %v3250
    %v3270 = vmul.f32 %v3190, %v3252
    %v3271 = vmul.f32 %v3191, %v3254
    %v3272 = vmul.f32 %v3192, %v3256
    %3281 = vrot.lane.b32.xlu0 %v3265, 32
    %v3282 = vpop.permute.xlu0 %3281
    %3283 = vrot.lane.b32.xlu0 %v3266, 32
    %v3284 = vpop.permute.xlu0 %3283
    %3285 = vrot.lane.b32.xlu0 %v3267, 32
    %v3286 = vpop.permute.xlu0 %3285
    %3287 = vrot.lane.b32.xlu0 %v3268, 32
    %v3288 = vpop.permute.xlu0 %3287
    %3289 = vrot.lane.b32.xlu0 %v3269, 32
    %v3290 = vpop.permute.xlu0 %3289
    %3291 = vrot.lane.b32.xlu0 %v3270, 32
    %v3292 = vpop.permute.xlu0 %3291
    %3293 = vrot.lane.b32.xlu0 %v3271, 32
    %v3294 = vpop.permute.xlu0 %3293
    %3295 = vrot.lane.b32.xlu0 %v3272, 32
    %v3296 = vpop.permute.xlu0 %3295
    %v3305 = vadd.f32 %v3225, %v3282
    %v3306 = vadd.f32 %v3226, %v3284
    %v3307 = vadd.f32 %v3227, %v3286
    %v3308 = vadd.f32 %v3228, %v3288
    %v3309 = vadd.f32 %v3229, %v3290
    %v3310 = vadd.f32 %v3230, %v3292
    %v3311 = vadd.f32 %v3231, %v3294
    %v3312 = vadd.f32 %v3232, %v3296
    %v3313 = vtanh.pop %v3305
    %v3314 = vtanh.pop %v3306
    %v3315 = vtanh.pop %v3307
    %v3316 = vtanh.pop %v3308
    %v3317 = vtanh.pop %v3309
    %v3318 = vtanh.pop %v3310
    %v3319 = vtanh.pop %v3311
    %v3320 = vtanh.pop %v3312
    %3329 = vrot.lane.b32.xlu0 %v3313, 64
    %v3330 = vpop.permute.xlu0 %3329
    %3331 = vrot.lane.b32.xlu0 %v3314, 64
    %v3332 = vpop.permute.xlu0 %3331
    %3333 = vrot.lane.b32.xlu0 %v3315, 64
    %v3334 = vpop.permute.xlu0 %3333
    %3335 = vrot.lane.b32.xlu0 %v3316, 64
    %v3336 = vpop.permute.xlu0 %3335
    %3337 = vrot.lane.b32.xlu0 %v3317, 64
    %v3338 = vpop.permute.xlu0 %3337
    %3339 = vrot.lane.b32.xlu0 %v3318, 64
    %v3340 = vpop.permute.xlu0 %3339
    %3341 = vrot.lane.b32.xlu0 %v3319, 64
    %v3342 = vpop.permute.xlu0 %3341
    %3343 = vrot.lane.b32.xlu0 %v3320, 64
    %v3344 = vpop.permute.xlu0 %3343
    %v3353 = vmul.f32 %v3185, %v3330
    %v3354 = vmul.f32 %v3186, %v3332
    %v3355 = vmul.f32 %v3187, %v3334
    %v3356 = vmul.f32 %v3188, %v3336
    %v3357 = vmul.f32 %v3189, %v3338
    %v3358 = vmul.f32 %v3190, %v3340
    %v3359 = vmul.f32 %v3191, %v3342
    %v3360 = vmul.f32 %v3192, %v3344
    %v3369 = vrot.slane %v3354, 7
    %v3370 = vsel %vm733, %v3369, %v3353
    %v3371 = vrot.slane %v3355, 6
    %v3372 = vrot.slane %v3356, 5
    %v3373 = vsel %vm715, %v3372, %v3371
    %v3374 = vrot.slane %v3357, 4
    %v3375 = vsel %vm718, %v3374, %v3373
    %v3376 = vrot.slane %v3358, 3
    %v3377 = vsel %vm721, %v3376, %v3375
    %v3378 = vrot.slane %v3359, 2
    %v3379 = vsel %vm724, %v3378, %v3377
    %v3380 = vrot.slane %v3360, 1
    %v3381 = vsel %vm727, %v3380, %v3379
    %3382 = vrot.lane.b32.xlu0 %v3370, 32
    %v3383 = vpop.permute.xlu0 %3382
    %3384 = vrot.lane.b32.xlu0 %v3381, 32
    %v3385 = vpop.permute.xlu0 %3384
    %v3389 = vrot.slane %v3048, 2
    %3390 = vrot.lane.b32.xlu0 %v3389, 64
    %v3391 = vpop.permute.xlu0 %3390
    %v3393 = vsel %vm35, %v3383, %v3391
    %v3394 = vsel %vm35, %v3385, %v3391
    %vm3397 = vcmask 1041408
    %v3398 = vrot.slane %v3393, 6
    %v3399 = vrot.slane %v3394, 6
    %v3400 = vsel %vm3397, %v3398, %v3399
    %v3401 = vsel %vm739, %v3400, 0
    %3403 = vmatprep.subr.mxu0 0.0
    %3404 = vmatpush1.msra.mxu0 %v279
    %3405 = vmatprep.subr.mxu0 0.0
    %3406 = vmatpush1.msra.mxu0 %v280
    %3407 = vmatprep.subr.mxu0 0.0
    %3408 = vmatpush1.msra.mxu0 %v281
    %3409 = vmatprep.subr.mxu0 0.0
    %3410 = vmatpush1.msra.mxu0 %v282
    %3411 = vmatprep.subr.mxu0 0.0
    %3412 = vmatpush1.msra.mxu0 %v283
    %3413 = vmatprep.subr.mxu0 0.0
    %3414 = vmatpush1.msra.mxu0 %v284
    %3415 = vmatprep.subr.mxu0 0.0
    %3416 = vmatpush1.msra.mxu0 %v285
    %3417 = vmatprep.subr.mxu0 0.0
    %3418 = vmatpush1.msra.mxu0 %v286
    %3419 = vmatprep.subr.mxu0 0.0
    %3420 = vmatpush1.msra.mxu0 0.0
    %3421 = vmatprep.subr.mxu0 0.0
    %3422 = vmatpush1.msra.mxu0 0.0
    %3423 = vmatprep.subr.mxu0 0.0
    %3424 = vmatpush1.msra.mxu0 0.0
    %3425 = vmatprep.subr.mxu0 0.0
    %3426 = vmatpush1.msra.mxu0 0.0
    %3427 = vmatprep.subr.mxu0 0.0
    %3428 = vmatpush1.msra.mxu0 0.0
    %3429 = vmatprep.subr.mxu0 0.0
    %3430 = vmatpush1.msra.mxu0 0.0
    %3431 = vmatprep.subr.mxu0 0.0
    %3432 = vmatpush1.msra.mxu0 0.0
    %3433 = vmatprep.subr.mxu0 0.0
    %3434 = vmatpush1.msra.mxu0 0.0
    %3435 = vmatprep.subr.mxu0 0.0
    %3436 = vmatpush1.msra.mxu0 0.0
    %3437 = vmatprep.subr.mxu0 0.0
    %3438 = vmatpush1.msra.mxu0 0.0
    %3439 = vmatprep.subr.mxu0 0.0
    %3440 = vmatpush1.msra.mxu0 0.0
    %3441 = vmatprep.subr.mxu0 0.0
    %3442 = vmatpush1.msra.mxu0 0.0
    %3443 = vmatprep.subr.mxu0 0.0
    %3444 = vmatpush1.msra.mxu0 0.0
    %3445 = vmatprep.subr.mxu0 0.0
    %3446 = vmatpush1.msra.mxu0 0.0
    %3447 = vmatprep.subr.mxu0 0.0
    %3448 = vmatpush1.msra.mxu0 0.0
    %3449 = vmatprep.subr.mxu0 0.0
    %3450 = vmatpush1.msra.mxu0 0.0
    %3451 = vmatprep.subr.mxu0 0.0
    %3452 = vmatpush1.msra.mxu0 0.0
    %3453 = vmatprep.subr.mxu0 0.0
    %3454 = vmatpush1.msra.mxu0 0.0
    %3455 = vmatprep.subr.mxu0 0.0
    %3456 = vmatpush1.msra.mxu0 0.0
    %3457 = vmatprep.subr.mxu0 0.0
    %3458 = vmatpush1.msra.mxu0 0.0
    %3459 = vmatprep.subr.mxu0 0.0
    %3460 = vmatpush1.msra.mxu0 0.0
    %3461 = vmatprep.subr.mxu0 0.0
    %3462 = vmatpush1.msra.mxu0 0.0
    %3463 = vmatprep.subr.mxu0 0.0
    %3464 = vmatpush1.msra.mxu0 0.0
    %3465 = vmatprep.subr.mxu0 0.0
    %3466 = vmatpush1.msra.mxu0 0.0
    %3467 = vmatprep.mubr.f32.mxu0 0.0
    %3468 = vmatmul.mubr.f32.gmra.mrb[0].mxu0 %v3401
    %v3469 = vpop.f32.mrb[0].mxu0
    %v3470 = vadd.f32 %v432, %v3469
    %v3471 = vpop.f32.mrb[0].mxu0
    %3472 = vdwg.mxu0
    %v3473 = vmul.f32 %v3470, 0.5
    %v3474 = vtanh.pop %v3473
    %v3475 = vadd.f32 %v3474, 1.0
    %v3476 = vmul.f32 %v3475, 0.5
    %v3477 = vtanh.pop %v3470
    %v3478 = vmul.f32 %v3476, %v3042
    %3480 = vrot.lane.b32.xlu0 %v3477, 64
    %v3481 = vpop.permute.xlu0 %3480
    %v3483 = vmul.f32 %v3476, %v3481
    %3485 = vrot.lane.b32.xlu0 %v3483, 32
    %v3486 = vpop.permute.xlu0 %3485
    %v3488 = vadd.f32 %v3478, %v3486
    %v3489 = vtanh.pop %v3488
    %3491 = vrot.lane.b32.xlu0 %v3489, 64
    %v3492 = vpop.permute.xlu0 %3491
    %v3494 = vmul.f32 %v3476, %v3492
    %v3495 = vrot.slane %v3353, 6
    %v3496 = vrot.slane %v3354, 5
    %v3497 = vsel %vm715, %v3496, %v3495
    %v3498 = vrot.slane %v3355, 4
    %v3499 = vsel %vm718, %v3498, %v3497
    %v3500 = vrot.slane %v3356, 3
    %v3501 = vsel %vm721, %v3500, %v3499
    %v3502 = vrot.slane %v3357, 2
    %v3503 = vsel %vm724, %v3502, %v3501
    %v3504 = vrot.slane %v3358, 1
    %v3505 = vsel %vm727, %v3504, %v3503
    %v3506 = vsel %vm730, %v3359, %v3505
    %v3507 = vrot.slane %v3360, 7
    %v3508 = vsel %vm733, %v3507, %v3506
    %3509 = vrot.lane.b32.xlu0 %v3508, 32
    %v3510 = vpop.permute.xlu0 %3509
    %v3511 = vsel %vm35, %v3510, 0
    %3513 = vmatprep.subr.mxu0 0.0
    %3514 = vmatpush1.msra.mxu0 %v274
    %3515 = vmatprep.subr.mxu0 0.0
    %3516 = vmatpush1.msra.mxu0 %v275
    %3517 = vmatprep.subr.mxu0 0.0
    %3518 = vmatpush1.msra.mxu0 %v276
    %3519 = vmatprep.subr.mxu0 0.0
    %3520 = vmatpush1.msra.mxu0 %v277
    %3521 = vmatprep.subr.mxu0 0.0
    %3522 = vmatpush1.msra.mxu0 0.0
    %3523 = vmatprep.subr.mxu0 0.0
    %3524 = vmatpush1.msra.mxu0 0.0
    %3525 = vmatprep.subr.mxu0 0.0
    %3526 = vmatpush1.msra.mxu0 0.0
    %3527 = vmatprep.subr.mxu0 0.0
    %3528 = vmatpush1.msra.mxu0 0.0
    %3529 = vmatprep.subr.mxu0 0.0
    %3530 = vmatpush1.msra.mxu0 0.0
    %3531 = vmatprep.subr.mxu0 0.0
    %3532 = vmatpush1.msra.mxu0 0.0
    %3533 = vmatprep.subr.mxu0 0.0
    %3534 = vmatpush1.msra.mxu0 0.0
    %3535 = vmatprep.subr.mxu0 0.0
    %3536 = vmatpush1.msra.mxu0 0.0
    %3537 = vmatprep.subr.mxu0 0.0
    %3538 = vmatpush1.msra.mxu0 0.0
    %3539 = vmatprep.subr.mxu0 0.0
    %3540 = vmatpush1.msra.mxu0 0.0
    %3541 = vmatprep.subr.mxu0 0.0
    %3542 = vmatpush1.msra.mxu0 0.0
    %3543 = vmatprep.subr.mxu0 0.0
    %3544 = vmatpush1.msra.mxu0 0.0
    %3545 = vmatprep.subr.mxu0 0.0
    %3546 = vmatpush1.msra.mxu0 0.0
    %3547 = vmatprep.subr.mxu0 0.0
    %3548 = vmatpush1.msra.mxu0 0.0
    %3549 = vmatprep.subr.mxu0 0.0
    %3550 = vmatpush1.msra.mxu0 0.0
    %3551 = vmatprep.subr.mxu0 0.0
    %3552 = vmatpush1.msra.mxu0 0.0
    %3553 = vmatprep.subr.mxu0 0.0
    %3554 = vmatpush1.msra.mxu0 0.0
    %3555 = vmatprep.subr.mxu0 0.0
    %3556 = vmatpush1.msra.mxu0 0.0
    %3557 = vmatprep.subr.mxu0 0.0
    %3558 = vmatpush1.msra.mxu0 0.0
    %3559 = vmatprep.subr.mxu0 0.0
    %3560 = vmatpush1.msra.mxu0 0.0
    %3561 = vmatprep.subr.mxu0 0.0
    %3562 = vmatpush1.msra.mxu0 0.0
    %3563 = vmatprep.subr.mxu0 0.0
    %3564 = vmatpush1.msra.mxu0 0.0
    %3565 = vmatprep.subr.mxu0 0.0
    %3566 = vmatpush1.msra.mxu0 0.0
    %3567 = vmatprep.subr.mxu0 0.0
    %3568 = vmatpush1.msra.mxu0 0.0
    %3569 = vmatprep.subr.mxu0 0.0
    %3570 = vmatpush1.msra.mxu0 0.0
    %3571 = vmatprep.subr.mxu0 0.0
    %3572 = vmatpush1.msra.mxu0 0.0
    %3573 = vmatprep.subr.mxu0 0.0
    %3574 = vmatpush1.msra.mxu0 0.0
    %3575 = vmatprep.subr.mxu0 0.0
    %3576 = vmatpush1.msra.mxu0 0.0
    %3577 = vmatprep.mubr.f32.mxu0 0.0
    %3578 = vmatmul.mubr.f32.gmra.mrb[0].mxu0 %v3511
    %v3579 = vpop.f32.mrb[0].mxu0
    %v3580 = vadd.f32 0.0, %v3579
    %v3581 = vpop.f32.mrb[0].mxu0
    %3582 = vdwg.mxu0
    %v3584 = vrot.slane %v3580, 1
    %v3585 = vrot.slane %v3580, 2
    %v3586 = vrot.slane %v3580, 3
    %v3587 = vrot.slane %v3580, 4
    %v3588 = vrot.slane %v3580, 5
    %v3589 = vrot.slane %v3580, 6
    %v3590 = vrot.slane %v3580, 7
    %v3599 = vadd.f32 %v391, %v3584
    %v3600 = vadd.f32 %v396, %v3585
    %v3601 = vadd.f32 %v401, %v3586
    %v3602 = vadd.f32 %v406, %v3587
    %v3603 = vadd.f32 %v411, %v3588
    %v3604 = vadd.f32 %v416, %v3589
    %v3605 = vadd.f32 %v421, %v3590
    %v3606 = vadd.f32 %v426, %v3580
    %v3607 = vmul.f32 %v3599, 0.5
    %v3608 = vmul.f32 %v3600, 0.5
    %v3609 = vmul.f32 %v3601, 0.5
    %v3610 = vmul.f32 %v3602, 0.5
    %v3611 = vmul.f32 %v3603, 0.5
    %v3612 = vmul.f32 %v3604, 0.5
    %v3613 = vmul.f32 %v3605, 0.5
    %v3614 = vmul.f32 %v3606, 0.5
    %v3615 = vtanh.pop %v3607
    %v3616 = vtanh.pop %v3608
    %v3617 = vtanh.pop %v3609
    %v3618 = vtanh.pop %v3610
    %v3619 = vtanh.pop %v3611
    %v3620 = vtanh.pop %v3612
    %v3621 = vtanh.pop %v3613
    %v3622 = vtanh.pop %v3614
    %v3623 = vadd.f32 %v3615, 1.0
    %v3624 = vadd.f32 %v3616, 1.0
    %v3625 = vadd.f32 %v3617, 1.0
    %v3626 = vadd.f32 %v3618, 1.0
    %v3627 = vadd.f32 %v3619, 1.0
    %v3628 = vadd.f32 %v3620, 1.0
    %v3629 = vadd.f32 %v3621, 1.0
    %v3630 = vadd.f32 %v3622, 1.0
    %v3631 = vmul.f32 %v3623, 0.5
    %v3632 = vmul.f32 %v3624, 0.5
    %v3633 = vmul.f32 %v3625, 0.5
    %v3634 = vmul.f32 %v3626, 0.5
    %v3635 = vmul.f32 %v3627, 0.5
    %v3636 = vmul.f32 %v3628, 0.5
    %v3637 = vmul.f32 %v3629, 0.5
    %v3638 = vmul.f32 %v3630, 0.5
    %v3639 = vtanh.pop %v3599
    %v3640 = vtanh.pop %v3600
    %v3641 = vtanh.pop %v3601
    %v3642 = vtanh.pop %v3602
    %v3643 = vtanh.pop %v3603
    %v3644 = vtanh.pop %v3604
    %v3645 = vtanh.pop %v3605
    %v3646 = vtanh.pop %v3606
    %v3655 = vrot.slane %v3305, 7
    %v3656 = vrot.slane %v3306, 7
    %v3657 = vrot.slane %v3307, 7
    %v3658 = vrot.slane %v3308, 7
    %v3659 = vrot.slane %v3309, 7
    %v3660 = vrot.slane %v3310, 7
    %v3661 = vrot.slane %v3311, 7
    %v3662 = vrot.slane %v3312, 7
    %v3671 = vmul.f32 %v3631, %v3655
    %v3672 = vmul.f32 %v3632, %v3656
    %v3673 = vmul.f32 %v3633, %v3657
    %v3674 = vmul.f32 %v3634, %v3658
    %v3675 = vmul.f32 %v3635, %v3659
    %v3676 = vmul.f32 %v3636, %v3660
    %v3677 = vmul.f32 %v3637, %v3661
    %v3678 = vmul.f32 %v3638, %v3662
    %3687 = vrot.lane.b32.xlu0 %v3639, 64
    %v3688 = vpop.permute.xlu0 %3687
    %3689 = vrot.lane.b32.xlu0 %v3640, 64
    %v3690 = vpop.permute.xlu0 %3689
    %3691 = vrot.lane.b32.xlu0 %v3641, 64
    %v3692 = vpop.permute.xlu0 %3691
    %3693 = vrot.lane.b32.xlu0 %v3642, 64
    %v3694 = vpop.permute.xlu0 %3693
    %3695 = vrot.lane.b32.xlu0 %v3643, 64
    %v3696 = vpop.permute.xlu0 %3695
    %3697 = vrot.lane.b32.xlu0 %v3644, 64
    %v3698 = vpop.permute.xlu0 %3697
    %3699 = vrot.lane.b32.xlu0 %v3645, 64
    %v3700 = vpop.permute.xlu0 %3699
    %3701 = vrot.lane.b32.xlu0 %v3646, 64
    %v3702 = vpop.permute.xlu0 %3701
    %v3711 = vmul.f32 %v3631, %v3688
    %v3712 = vmul.f32 %v3632, %v3690
    %v3713 = vmul.f32 %v3633, %v3692
    %v3714 = vmul.f32 %v3634, %v3694
    %v3715 = vmul.f32 %v3635, %v3696
    %v3716 = vmul.f32 %v3636, %v3698
    %v3717 = vmul.f32 %v3637, %v3700
    %v3718 = vmul.f32 %v3638, %v3702
    %3727 = vrot.lane.b32.xlu0 %v3711, 32
    %v3728 = vpop.permute.xlu0 %3727
    %3729 = vrot.lane.b32.xlu0 %v3712, 32
    %v3730 = vpop.permute.xlu0 %3729
    %3731 = vrot.lane.b32.xlu0 %v3713, 32
    %v3732 = vpop.permute.xlu0 %3731
    %3733 = vrot.lane.b32.xlu0 %v3714, 32
    %v3734 = vpop.permute.xlu0 %3733
    %3735 = vrot.lane.b32.xlu0 %v3715, 32
    %v3736 = vpop.permute.xlu0 %3735
    %3737 = vrot.lane.b32.xlu0 %v3716, 32
    %v3738 = vpop.permute.xlu0 %3737
    %3739 = vrot.lane.b32.xlu0 %v3717, 32
    %v3740 = vpop.permute.xlu0 %3739
    %3741 = vrot.lane.b32.xlu0 %v3718, 32
    %v3742 = vpop.permute.xlu0 %3741
    %v3751 = vadd.f32 %v3671, %v3728
    %v3752 = vadd.f32 %v3672, %v3730
    %v3753 = vadd.f32 %v3673, %v3732
    %v3754 = vadd.f32 %v3674, %v3734
    %v3755 = vadd.f32 %v3675, %v3736
    %v3756 = vadd.f32 %v3676, %v3738
    %v3757 = vadd.f32 %v3677, %v3740
    %v3758 = vadd.f32 %v3678, %v3742
    %v3759 = vtanh.pop %v3751
    %v3760 = vtanh.pop %v3752
    %v3761 = vtanh.pop %v3753
    %v3762 = vtanh.pop %v3754
    %v3763 = vtanh.pop %v3755
    %v3764 = vtanh.pop %v3756
    %v3765 = vtanh.pop %v3757
    %v3766 = vtanh.pop %v3758
    %3775 = vrot.lane.b32.xlu0 %v3759, 64
    %v3776 = vpop.permute.xlu0 %3775
    %3777 = vrot.lane.b32.xlu0 %v3760, 64
    %v3778 = vpop.permute.xlu0 %3777
    %3779 = vrot.lane.b32.xlu0 %v3761, 64
    %v3780 = vpop.permute.xlu0 %3779
    %3781 = vrot.lane.b32.xlu0 %v3762, 64
    %v3782 = vpop.permute.xlu0 %3781
    %3783 = vrot.lane.b32.xlu0 %v3763, 64
    %v3784 = vpop.permute.xlu0 %3783
    %3785 = vrot.lane.b32.xlu0 %v3764, 64
    %v3786 = vpop.permute.xlu0 %3785
    %3787 = vrot.lane.b32.xlu0 %v3765, 64
    %v3788 = vpop.permute.xlu0 %3787
    %3789 = vrot.lane.b32.xlu0 %v3766, 64
    %v3790 = vpop.permute.xlu0 %3789
    %v3799 = vmul.f32 %v3631, %v3776
    %v3800 = vmul.f32 %v3632, %v3778
    %v3801 = vmul.f32 %v3633, %v3780
    %v3802 = vmul.f32 %v3634, %v3782
    %v3803 = vmul.f32 %v3635, %v3784
    %v3804 = vmul.f32 %v3636, %v3786
    %v3805 = vmul.f32 %v3637, %v3788
    %v3806 = vmul.f32 %v3638, %v3790
    %v3815 = vrot.slane %v3800, 7
    %v3816 = vrot.slane %v3801, 6
    %v3817 = vsel %vm715, %v3816, %v3815
    %v3818 = vrot.slane %v3802, 5
    %v3819 = vsel %vm718, %v3818, %v3817
    %v3820 = vrot.slane %v3803, 4
    %v3821 = vsel %vm721, %v3820, %v3819
    %v3822 = vrot.slane %v3804, 3
    %v3823 = vsel %vm724, %v3822, %v3821
    %v3824 = vrot.slane %v3805, 2
    %v3825 = vsel %vm727, %v3824, %v3823
    %v3826 = vrot.slane %v3806, 1
    %v3827 = vsel %vm730, %v3826, %v3825
    %3828 = vrot.lane.b32.xlu0 %v3799, 32
    %v3829 = vpop.permute.xlu0 %3828
    %3830 = vrot.lane.b32.xlu0 %v3827, 32
    %v3831 = vpop.permute.xlu0 %3830
    %v3835 = vrot.slane %v3494, 1
    %3836 = vrot.lane.b32.xlu0 %v3835, 64
    %v3837 = vpop.permute.xlu0 %3836
    %v3839 = vsel %vm35, %v3829, %v3837
    %v3840 = vsel %vm35, %v3831, %v3837
    %vm3843 = vcmask 1040384
    %v3844 = vrot.slane %v3839, 7
    %v3845 = vrot.slane %v3840, 7
    %v3846 = vsel %vm3843, %v3844, %v3845
    %v3847 = vsel %vm739, %v3846, 0
    %3849 = vmatprep.subr.mxu0 0.0
    %3850 = vmatpush1.msra.mxu0 %v279
    %3851 = vmatprep.subr.mxu0 0.0
    %3852 = vmatpush1.msra.mxu0 %v280
    %3853 = vmatprep.subr.mxu0 0.0
    %3854 = vmatpush1.msra.mxu0 %v281
    %3855 = vmatprep.subr.mxu0 0.0
    %3856 = vmatpush1.msra.mxu0 %v282
    %3857 = vmatprep.subr.mxu0 0.0
    %3858 = vmatpush1.msra.mxu0 %v283
    %3859 = vmatprep.subr.mxu0 0.0
    %3860 = vmatpush1.msra.mxu0 %v284
    %3861 = vmatprep.subr.mxu0 0.0
    %3862 = vmatpush1.msra.mxu0 %v285
    %3863 = vmatprep.subr.mxu0 0.0
    %3864 = vmatpush1.msra.mxu0 %v286
    %3865 = vmatprep.subr.mxu0 0.0
    %3866 = vmatpush1.msra.mxu0 0.0
    %3867 = vmatprep.subr.mxu0 0.0
    %3868 = vmatpush1.msra.mxu0 0.0
    %3869 = vmatprep.subr.mxu0 0.0
    %3870 = vmatpush1.msra.mxu0 0.0
    %3871 = vmatprep.subr.mxu0 0.0
    %3872 = vmatpush1.msra.mxu0 0.0
    %3873 = vmatprep.subr.mxu0 0.0
    %3874 = vmatpush1.msra.mxu0 0.0
    %3875 = vmatprep.subr.mxu0 0.0
    %3876 = vmatpush1.msra.mxu0 0.0
    %3877 = vmatprep.subr.mxu0 0.0
    %3878 = vmatpush1.msra.mxu0 0.0
    %3879 = vmatprep.subr.mxu0 0.0
    %3880 = vmatpush1.msra.mxu0 0.0
    %3881 = vmatprep.subr.mxu0 0.0
    %3882 = vmatpush1.msra.mxu0 0.0
    %3883 = vmatprep.subr.mxu0 0.0
    %3884 = vmatpush1.msra.mxu0 0.0
    %3885 = vmatprep.subr.mxu0 0.0
    %3886 = vmatpush1.msra.mxu0 0.0
    %3887 = vmatprep.subr.mxu0 0.0
    %3888 = vmatpush1.msra.mxu0 0.0
    %3889 = vmatprep.subr.mxu0 0.0
    %3890 = vmatpush1.msra.mxu0 0.0
    %3891 = vmatprep.subr.mxu0 0.0
    %3892 = vmatpush1.msra.mxu0 0.0
    %3893 = vmatprep.subr.mxu0 0.0
    %3894 = vmatpush1.msra.mxu0 0.0
    %3895 = vmatprep.subr.mxu0 0.0
    %3896 = vmatpush1.msra.mxu0 0.0
    %3897 = vmatprep.subr.mxu0 0.0
    %3898 = vmatpush1.msra.mxu0 0.0
    %3899 = vmatprep.subr.mxu0 0.0
    %3900 = vmatpush1.msra.mxu0 0.0
    %3901 = vmatprep.subr.mxu0 0.0
    %3902 = vmatpush1.msra.mxu0 0.0
    %3903 = vmatprep.subr.mxu0 0.0
    %3904 = vmatpush1.msra.mxu0 0.0
    %3905 = vmatprep.subr.mxu0 0.0
    %3906 = vmatpush1.msra.mxu0 0.0
    %3907 = vmatprep.subr.mxu0 0.0
    %3908 = vmatpush1.msra.mxu0 0.0
    %3909 = vmatprep.subr.mxu0 0.0
    %3910 = vmatpush1.msra.mxu0 0.0
    %3911 = vmatprep.subr.mxu0 0.0
    %3912 = vmatpush1.msra.mxu0 0.0
    %3913 = vmatprep.mubr.f32.mxu0 0.0
    %3914 = vmatmul.mubr.f32.gmra.mrb[0].mxu0 %v3847
    %v3915 = vpop.f32.mrb[0].mxu0
    %v3916 = vadd.f32 %v432, %v3915
    %v3917 = vpop.f32.mrb[0].mxu0
    %3918 = vdwg.mxu0
    %v3919 = vmul.f32 %v3916, 0.5
    %v3920 = vtanh.pop %v3919
    %v3921 = vadd.f32 %v3920, 1.0
    %v3922 = vmul.f32 %v3921, 0.5
    %v3923 = vtanh.pop %v3916
    %v3924 = vmul.f32 %v3922, %v3488
    %3926 = vrot.lane.b32.xlu0 %v3923, 64
    %v3927 = vpop.permute.xlu0 %3926
    %v3929 = vmul.f32 %v3922, %v3927
    %3931 = vrot.lane.b32.xlu0 %v3929, 32
    %v3932 = vpop.permute.xlu0 %3931
    %v3934 = vadd.f32 %v3924, %v3932
    %v3935 = vtanh.pop %v3934
    %3937 = vrot.lane.b32.xlu0 %v3935, 64
    %v3938 = vpop.permute.xlu0 %3937
    %v3940 = vmul.f32 %v3922, %v3938
    %v3941 = vld [vmem:[%s3 + $0x50] sm:$0xff]
    %v3942 = vld [vmem:[%s3 + $0x58] sm:$0xff]
    %v3943 = vld [vmem:[%s3 + $0x60] sm:$0xff]
    %v3944 = vld [vmem:[%s3 + $0x68] sm:$0xff]
    %v3945 = vld [vmem:[%s3 + $0x70] sm:$0xff]
    %v3946 = vld [vmem:[%s3 + $0x78] sm:$0xff]
    %v3947 = vld [vmem:[%s3 + $0x80] sm:$0xff]
    %v3948 = vld [vmem:[%s3 + $0x88] sm:$0xff]
    %v3949 = vld [vmem:[%s3 + $0x92] sm:$0x1]
    %3951 = vrot.lane.b32.xlu0 %v3940, 64
    %v3952 = vpop.permute.xlu0 %3951
    %v3954 = vsel %vm35, %v269, %v3952
    %v3955 = vlaneseq
    %v3956 = vshrl.u32 %v3955, 7
    %v3957 = vsub.s32 0, %v3956
    %v3958 = vrot.slane %v3949, %v3957
    %v3960 = vsel %vm739, %v3954, 0
    %3962 = vmatprep.subr.mxu0 0.0
    %3963 = vmatpush1.msra.mxu0 %v3941
    %3964 = vmatprep.subr.mxu0 0.0
    %3965 = vmatpush1.msra.mxu0 %v3942
    %3966 = vmatprep.subr.mxu0 0.0
    %3967 = vmatpush1.msra.mxu0 %v3943
    %3968 = vmatprep.subr.mxu0 0.0
    %3969 = vmatpush1.msra.mxu0 %v3944
    %3970 = vmatprep.subr.mxu0 0.0
    %3971 = vmatpush1.msra.mxu0 %v3945
    %3972 = vmatprep.subr.mxu0 0.0
    %3973 = vmatpush1.msra.mxu0 %v3946
    %3974 = vmatprep.subr.mxu0 0.0
    %3975 = vmatpush1.msra.mxu0 %v3947
    %3976 = vmatprep.subr.mxu0 0.0
    %3977 = vmatpush1.msra.mxu0 %v3948
    %3978 = vmatprep.subr.mxu0 0.0
    %3979 = vmatpush1.msra.mxu0 0.0
    %3980 = vmatprep.subr.mxu0 0.0
    %3981 = vmatpush1.msra.mxu0 0.0
    %3982 = vmatprep.subr.mxu0 0.0
    %3983 = vmatpush1.msra.mxu0 0.0
    %3984 = vmatprep.subr.mxu0 0.0
    %3985 = vmatpush1.msra.mxu0 0.0
    %3986 = vmatprep.subr.mxu0 0.0
    %3987 = vmatpush1.msra.mxu0 0.0
    %3988 = vmatprep.subr.mxu0 0.0
    %3989 = vmatpush1.msra.mxu0 0.0
    %3990 = vmatprep.subr.mxu0 0.0
    %3991 = vmatpush1.msra.mxu0 0.0
    %3992 = vmatprep.subr.mxu0 0.0
    %3993 = vmatpush1.msra.mxu0 0.0
    %3994 = vmatprep.subr.mxu0 0.0
    %3995 = vmatpush1.msra.mxu0 0.0
    %3996 = vmatprep.subr.mxu0 0.0
    %3997 = vmatpush1.msra.mxu0 0.0
    %3998 = vmatprep.subr.mxu0 0.0
    %3999 = vmatpush1.msra.mxu0 0.0
    %4000 = vmatprep.subr.mxu0 0.0
    %4001 = vmatpush1.msra.mxu0 0.0
    %4002 = vmatprep.subr.mxu0 0.0
    %4003 = vmatpush1.msra.mxu0 0.0
    %4004 = vmatprep.subr.mxu0 0.0
    %4005 = vmatpush1.msra.mxu0 0.0
    %4006 = vmatprep.subr.mxu0 0.0
    %4007 = vmatpush1.msra.mxu0 0.0
    %4008 = vmatprep.subr.mxu0 0.0
    %4009 = vmatpush1.msra.mxu0 0.0
    %4010 = vmatprep.subr.mxu0 0.0
    %4011 = vmatpush1.msra.mxu0 0.0
    %4012 = vmatprep.subr.mxu0 0.0
    %4013 = vmatpush1.msra.mxu0 0.0
    %4014 = vmatprep.subr.mxu0 0.0
    %4015 = vmatpush1.msra.mxu0 0.0
    %4016 = vmatprep.subr.mxu0 0.0
    %4017 = vmatpush1.msra.mxu0 0.0
    %4018 = vmatprep.subr.mxu0 0.0
    %4019 = vmatpush1.msra.mxu0 0.0
    %4020 = vmatprep.subr.mxu0 0.0
    %4021 = vmatpush1.msra.mxu0 0.0
    %4022 = vmatprep.subr.mxu0 0.0
    %4023 = vmatpush1.msra.mxu0 0.0
    %4024 = vmatprep.subr.mxu0 0.0
    %4025 = vmatpush1.msra.mxu0 0.0
    %4026 = vmatprep.mubr.f32.mxu0 0.0
    %4027 = vmatmul.mubr.f32.gmra.mrb[0].mxu0 %v3960
    %v4028 = vpop.f32.mrb[0].mxu0
    %v4029 = vadd.f32 %v3958, %v4028
    %v4030 = vpop.f32.mrb[0].mxu0
    %4031 = vdwg.mxu0
    %v4032 = vmul.f32 %v4029, 0.5
    %v4033 = vtanh.pop %v4032
    %v4034 = vadd.f32 %v4033, 1.0
    %v4035 = vmul.f32 %v4034, 0.5
    %4036 = vrot.lane.b32.xlu0 %v3940, 32
    %v4037 = vpop.permute.xlu0 %4036
    %v4039 = vmul.f32 %v4035, %v4037
    %v4040 = vsub.f32 1.0, %v4035
    %v4041 = vmul.f32 %v4040, %v269
    %v4042 = vadd.f32 %v4039, %v4041
    %4043 = vrot.lane.b32.xlu0 %v198, 32
    %v4044 = vpop.permute.xlu0 %4043
    %v4046 = vsel %vm35, %v4042, %v4044
    %vm4047 = vcmask 392192
    %v4048 = vsel %vm4047, %v4046, 0.0
    %4049 = vst [vmem:[#allocation2] sm:$0xff] %v4048
    // Predicated region
    $region18: #{tpu_custom_call.1} parent=1 // pred_check
      _
    $region19: #{tpu_custom_call.1} parent=1 // pred_check_branch
      %4051 = sbr.rel (0) target = $region21
    $region20: #{tpu_custom_call.1} parent=1 // pred_region
      %s4053 = ssub.s32 128, 128
      %4054 = vsyncadd [#allocation3], %s4053
      %s4056 = sshll.u32 [#allocation2], 4
      %s4057 = int_to_ptr.vmem [resolvable:$true] %s4056
      %4059 = dma.vmem_to_hbm [thread:$0]  %s4057, 128, %s4, [#allocation3]
    $region21: #{tpu_custom_call.1} parent=1 // pred_fallthru
      _
    // Predicated region
    $region22: #{tpu_custom_call.1} parent=1 // pred_check
      _
    $region23: #{tpu_custom_call.1} parent=1 // pred_check_branch
      %4061 = sbr.rel (0) target = $region25
    $region24: #{tpu_custom_call.1} parent=1 // pred_region
      %4062 = dma.done [#allocation3], 128
    $region25: #{tpu_custom_call.1} parent=1 // pred_fallthru
      _
    %4063 = vsyncpa [#allocation3], 1

</llo_original>
